<compile_context>
chip_gen: v7x
topology: tpu7x:2x2x1
jax: 0.10.0
libtpu: 0.0.40
codegen_flags: <defaults>
</compile_context>

<pallas_src>
import functools

import jax
import jax.numpy as jnp
from jax import lax
from jax.experimental import pallas as pl
from jax.experimental.pallas import tpu as pltpu

LANE = 128
BN_EPS = 1e-3


# ----------------------------------------------------------------------------
# In-kernel helpers
# ----------------------------------------------------------------------------
def _silu(x):
    # x * sigmoid(x); the divide goes to the EUP via the approx reciprocal.
    return x * pl.reciprocal(1.0 + jnp.exp(-x), approx=True)


# ----------------------------------------------------------------------------
# Pallas kernel.  grid = (batch, strip, bottleneck)
# ----------------------------------------------------------------------------
def csp_layer_kernel(x_ref, w1_ref, b1_ref, w2_ref, b2_ref,
                     wb1_ref, bb1_ref, wb2_ref, bb2_ref,
                     w3a_ref, w3b_ref, b3_ref,
                     o_ref, h_ref, pad_ref,
                     *, n_blocks, strip_rows, halo, use_add):
    nb = pl.program_id(2)          # bottleneck index (arbitrary axis)
    s = pl.program_id(1)           # row-strip index  (parallel axis)

    _, _, He, W, Cin = x_ref.shape          # He = strip_rows + 2*halo
    Cph = h_ref.shape[-1]
    Cpo = o_ref.shape[-1]
    HW = He * W
    Hs = strip_rows
    f32 = jnp.float32
    bf16 = jnp.bfloat16

    # Column-edge masks for the +-1 width taps (their contiguous flat slices wrap
    # across rows; the wrapped column must read the image's zero padding instead).
    col = lax.broadcasted_iota(jnp.int32, (He, W, 1), 1).reshape(HW, 1)
    left_edge = col == 0
    right_edge = col == (W - 1)

    # ---- per-(batch, strip) init: zero pad-buffer borders once, conv1 -> h ----
    @pl.when(nb == 0)
    def _init():
        zb = jnp.zeros((2 * W, Cph), pad_ref.dtype)
        pad_ref[pl.ds(0, 2 * W), :] = zb                       # two top zero row-blocks
        pad_ref[pl.ds((He + 2) * W, 2 * W), :] = zb            # two bottom zero row-blocks
        xb = x_ref[0, 0].reshape(HW, Cin)
        h_ref[...] = _silu(jnp.dot(xb, w1_ref[...],
                                   preferred_element_type=f32) + b1_ref[...])

    # ---------------------------- bottleneck nb -------------------------------
    h_prev = h_ref[...]                                        # f32 (HW, Cph)
    t = _silu(jnp.dot(h_prev.astype(bf16), wb1_ref[0],
                      preferred_element_type=f32) + bb1_ref[0])

    # Single aligned, contiguous store of the activation into the padded buffer
    # (borders never re-written).  pad_ref layout (flat rows): [0,2W)=0, data, last 2W=0.
    pad_ref[pl.ds(2 * W, HW), :] = t.astype(bf16)

    if halo > 0:
        # Extended-strip rows that lie outside the image must be exactly zero when
        # they feed the 3x3 conv (they otherwise carry SiLU(bias) garbage).
        zh = jnp.zeros((halo * W, Cph), pad_ref.dtype)

        @pl.when(s == 0)
        def _zero_top():
            pad_ref[pl.ds(2 * W, halo * W), :] = zh

        @pl.when(s == pl.num_programs(1) - 1)
        def _zero_bot():
            pad_ref[pl.ds(2 * W + (He - halo) * W, halo * W), :] = zh

    # 3x3 conv == 9 accumulated matmuls; each tap is a contiguous flat slice of the
    # padded buffer (no strided / materialized window copies).  Accumulator starts
    # from the folded BN bias.
    acc = jnp.broadcast_to(bb2_ref[0], (HW, Cph)).astype(f32)
    for dy in range(3):
        for dx in range(3):
            base = (dy + 1) * W + dx - 1
            win = pad_ref[pl.ds(base, HW), :]
            if dx == 0:
                win = jnp.where(left_edge, 0.0, win)
            elif dx == 2:
                win = jnp.where(right_edge, 0.0, win)
            acc = acc + jnp.dot(win, wb2_ref[0, dy, dx],
                                preferred_element_type=f32)
    t2 = _silu(acc)
    h_ref[...] = (t2 + h_prev) if use_add else t2

    # ---- finalize: conv2 on central rows only, concat-free conv3, bf16 out ----
    @pl.when(nb == n_blocks - 1)
    def _fin():
        hc = h_ref[pl.ds(halo * W, Hs * W), :].astype(bf16)
        xc = x_ref[0, 0, pl.ds(halo, Hs), :, :].reshape(Hs * W, Cin)
        x2 = _silu(jnp.dot(xc, w2_ref[...],
                           preferred_element_type=f32) + b2_ref[...]).astype(bf16)
        y = (jnp.dot(hc, w3a_ref[...], preferred_element_type=f32)
             + jnp.dot(x2, w3b_ref[...], preferred_element_type=f32)
             + b3_ref[...])
        o_ref[0, 0] = _silu(y).reshape(Hs, W, Cpo).astype(o_ref.dtype)


# ----------------------------------------------------------------------------
# Parameter folding / padding helpers (wrapper side)
# ----------------------------------------------------------------------------
def _round_up(x, m):
    return ((x + m - 1) // m) * m


def _pad_axis(a, axis, new_size):
    if a.shape[axis] == new_size:
        return a
    pads = [(0, 0)] * a.ndim
    pads[axis] = (0, new_size - a.shape[axis])
    return jnp.pad(a, pads)


def _fold_bn(w_oihw, gamma, beta, mean, var, eps=BN_EPS):
    """Fold inference BatchNorm into the conv weight. Returns HWIO weight + bias."""
    scale = gamma / jnp.sqrt(var + eps)
    w = jnp.transpose(w_oihw, (2, 3, 1, 0)) * scale            # (kh, kw, Cin, Cout)
    b = beta - mean * scale
    return w, b


def _vmem_limit_bytes():
    # Leave headroom below physical per-core VMEM (64 MiB on v7x, 128 MiB on v5e/v6e).
    try:
        return int(pltpu.get_tpu_info().vmem_capacity_bytes * 0.85)
    except Exception:
        return None


# ----------------------------------------------------------------------------
# Wrapper (takes / returns PyTorch-style NCHW)
# ----------------------------------------------------------------------------
def csp_layer(x_nchw, params, *, shortcut=True, strip_rows=None, eps=BN_EPS,
              lane=LANE):
    blocks = params['blocks']
    n = len(blocks)
    assert n >= 1

    N, Cin, H, W = x_nchw.shape
    hidden = params['conv1']['w'].shape[0]
    cout = params['conv3']['w'].shape[0]
    assert params['conv1']['w'].shape[1] == Cin
    assert params['conv3']['w'].shape[1] == 2 * hidden

    Cph = _round_up(hidden, lane)
    Cpo = _round_up(cout, lane)

    # --- spatial row strips (bounds the VMEM working set) with an n-row halo ---
    if strip_rows is None or strip_rows >= H or H % strip_rows != 0:
        strip_rows = H
    S = H // strip_rows
    halo = n if S > 1 else 0
    He = strip_rows + 2 * halo

    # NCHW -> NHWC, true Cin (no HBM channel pad), bf16 MXU operands.
    x = jnp.transpose(x_nchw, (0, 2, 3, 1)).astype(jnp.bfloat16)       # (N,H,W,Cin)
    if S > 1:
        xp = jnp.pad(x, ((0, 0), (halo, halo), (0, 0), (0, 0)))
        x_strips = jnp.stack(
            [xp[:, i * strip_rows:i * strip_rows + He] for i in range(S)], axis=1)
    else:
        x_strips = x.reshape(N, 1, H, W, Cin)

    def fold_1x1(p, kpad, cpad):
        w, b = _fold_bn(p['w'], *p['bn'], eps=eps)
        w = w.reshape(w.shape[2], w.shape[3])                  # (Cin, Cout)
        w = _pad_axis(_pad_axis(w, 0, kpad), 1, cpad).astype(jnp.bfloat16)
        b = _pad_axis(b.reshape(1, -1), -1, cpad).astype(jnp.float32)
        return w, b

    w1, b1 = fold_1x1(params['conv1'], Cin, Cph)
    w2, b2 = fold_1x1(params['conv2'], Cin, Cph)

    # conv3: split into the x_1 (rows 0:hidden) and x_2 (rows hidden:) column blocks.
    w3, b3 = _fold_bn(params['conv3']['w'], *params['conv3']['bn'], eps=eps)
    w3 = w3.reshape(2 * hidden, cout)
    w3a = _pad_axis(_pad_axis(w3[:hidden], 0, Cph), 1, Cpo).astype(jnp.bfloat16)
    w3b = _pad_axis(_pad_axis(w3[hidden:], 0, Cph), 1, Cpo).astype(jnp.bfloat16)
    b3 = _pad_axis(b3.reshape(1, -1), -1, Cpo).astype(jnp.float32)

    wb1_l, bb1_l, wb2_l, bb2_l = [], [], [], []
    for blk in blocks:
        wa, ba = fold_1x1(blk['c1'], Cph, Cph)
        wc, bc = _fold_bn(blk['c2']['w'], *blk['c2']['bn'], eps=eps)   # (3,3,hid,hid)
        wc = _pad_axis(_pad_axis(wc, 2, Cph), 3, Cph).astype(jnp.bfloat16)
        bc = _pad_axis(bc.reshape(1, -1), -1, Cph).astype(jnp.float32)
        wb1_l.append(wa); bb1_l.append(ba); wb2_l.append(wc); bb2_l.append(bc)
    wb1 = jnp.stack(wb1_l); bb1 = jnp.stack(bb1_l)
    wb2 = jnp.stack(wb2_l); bb2 = jnp.stack(bb2_l)

    kern = functools.partial(csp_layer_kernel, n_blocks=n, strip_rows=strip_rows,
                             halo=halo, use_add=bool(shortcut))

    out = pl.pallas_call(
        kern,
        out_shape=jax.ShapeDtypeStruct((N, S, strip_rows, W, Cpo), jnp.bfloat16),
        grid=(N, S, n),
        in_specs=[
            pl.BlockSpec((1, 1, He, W, Cin), lambda b, s, k: (b, s, 0, 0, 0)),
            pl.BlockSpec((Cin, Cph), lambda b, s, k: (0, 0)),
            pl.BlockSpec((1, Cph), lambda b, s, k: (0, 0)),
            pl.BlockSpec((Cin, Cph), lambda b, s, k: (0, 0)),
            pl.BlockSpec((1, Cph), lambda b, s, k: (0, 0)),
            pl.BlockSpec((1, Cph, Cph), lambda b, s, k: (k, 0, 0)),
            pl.BlockSpec((1, 1, Cph), lambda b, s, k: (k, 0, 0)),
            pl.BlockSpec((1, 3, 3, Cph, Cph), lambda b, s, k: (k, 0, 0, 0, 0)),
            pl.BlockSpec((1, 1, Cph), lambda b, s, k: (k, 0, 0)),
            pl.BlockSpec((Cph, Cpo), lambda b, s, k: (0, 0)),
            pl.BlockSpec((Cph, Cpo), lambda b, s, k: (0, 0)),
            pl.BlockSpec((1, Cpo), lambda b, s, k: (0, 0)),
        ],
        out_specs=pl.BlockSpec((1, 1, strip_rows, W, Cpo),
                               lambda b, s, k: (b, s, 0, 0, 0)),
        scratch_shapes=[
            pltpu.VMEM((He * W, Cph), jnp.float32),            # bottleneck chain state h
            pltpu.VMEM(((He + 4) * W, Cph), jnp.bfloat16),     # zero-row-padded 3x3 buffer
        ],
        compiler_params=pltpu.CompilerParams(
            dimension_semantics=("parallel", "parallel", "arbitrary"),
            vmem_limit_bytes=_vmem_limit_bytes()),
    )(x_strips, w1, b1, w2, b2, wb1, bb1, wb2, bb2, w3a, w3b, b3)

    out = out.reshape(N, H, W, Cpo)[..., :cout].astype(jnp.float32)
    return jnp.transpose(out, (0, 3, 1, 2))                    # NHWC -> NCHW


# ----------------------------------------------------------------------------
# Pure-JAX reference (mirrors the bf16-operand / f32-accumulation math)
# ----------------------------------------------------------------------------
def _ref_forward(x_nchw, params, *, shortcut=True, eps=BN_EPS):
    x = jnp.transpose(x_nchw, (0, 2, 3, 1)).astype(jnp.float32)

    def conv_bn_silu(x, p):
        w, b = _fold_bn(p['w'], *p['bn'], eps=eps)             # (kh, kw, Cin, Cout)
        y = jax.lax.conv_general_dilated(
            x.astype(jnp.bfloat16), w.astype(jnp.bfloat16),
            window_strides=(1, 1), padding='SAME',
            dimension_numbers=('NHWC', 'HWIO', 'NHWC'),
            preferred_element_type=jnp.float32) + b
        return y * jax.nn.sigmoid(y)

    x1 = conv_bn_silu(x, params['conv1'])
    x2 = conv_bn_silu(x, params['conv2'])
    for blk in params['blocks']:
        t = conv_bn_silu(x1, blk['c1'])
        t = conv_bn_silu(t, blk['c2'])
        x1 = t + x1 if shortcut else t
    cat = jnp.concatenate([x1, x2], axis=-1)
    y = conv_bn_silu(cat, params['conv3'])
    return jnp.transpose(y, (0, 3, 1, 2))


# ----------------------------------------------------------------------------
# Deterministic PyTorch-layout parameter construction
# ----------------------------------------------------------------------------
def make_params(key, in_channels, out_channels, n=1, expansion=0.5):
    hidden = int(out_channels * expansion)

    def conv_p(k, cin, cout, ksize):
        k1, k2, k3, k4, k5 = jax.random.split(k, 5)
        return {
            'w': 0.1 * jax.random.normal(k1, (cout, cin, ksize, ksize), jnp.float32),
            'bn': (1.0 + 0.1 * jax.random.normal(k2, (cout,), jnp.float32),      # gamma
                   0.1 * jax.random.normal(k3, (cout,), jnp.float32),            # beta
                   0.1 * jax.random.normal(k4, (cout,), jnp.float32),            # running mean
                   0.5 + jnp.abs(jax.random.normal(k5, (cout,), jnp.float32))),  # running var
        }

    keys = jax.random.split(key, 3 + 2 * n)
    return {
        'conv1': conv_p(keys[0], in_channels, hidden, 1),
        'conv2': conv_p(keys[1], in_channels, hidden, 1),
        'conv3': conv_p(keys[2], 2 * hidden, out_channels, 1),
        'blocks': [{'c1': conv_p(keys[3 + 2 * i], hidden, hidden, 1),
                    'c2': conv_p(keys[4 + 2 * i], hidden, hidden, 3)}
                   for i in range(n)],
    }


if __name__ == "__main__":
    N, Cin, H, W = 2, 16, 16, 16
    Cout = 16
    n_blocks = 2          # exercises the bottleneck grid axis and multi-row halos

    key = jax.random.PRNGKey(0)
    kx, kp = jax.random.split(key)
    x = jax.random.normal(kx, (N, Cin, H, W), jnp.float32)      # PyTorch NCHW input
    params = make_params(kp, Cin, Cout, n=n_blocks)

    # strip_rows=8 -> 2 row strips per image, halo = n_blocks rows per side.
    out = jax.block_until_ready(csp_layer(x, params, shortcut=True, strip_rows=8))
    assert out.shape == (N, Cout, H, W), out.shape

    ref = jax.block_until_ready(_ref_forward(x, params, shortcut=True))
    err = float(jnp.max(jnp.abs(out - ref)))
    # bf16 matmul operands + bf16 output + EUP approx reciprocal in SiLU.
    assert jnp.allclose(out, ref, atol=3e-2, rtol=3e-2), err

    print("KERNEL_OK")
</pallas_src>

<mosaic_0001>
module attributes {stable_mosaic.version = 11 : i64} {
  func.func @csp_layer_kernel(%arg0: i32, %arg1: i32, %arg2: i32, %arg3: memref<1x1x12x16x16xbf16, #tpu.memory_space<vmem>>, %arg4: memref<16x128xbf16, #tpu.memory_space<vmem>>, %arg5: memref<1x128xf32, #tpu.memory_space<vmem>>, %arg6: memref<16x128xbf16, #tpu.memory_space<vmem>>, %arg7: memref<1x128xf32, #tpu.memory_space<vmem>>, %arg8: memref<1x128x128xbf16, #tpu.memory_space<vmem>>, %arg9: memref<1x1x128xf32, #tpu.memory_space<vmem>>, %arg10: memref<1x3x3x128x128xbf16, #tpu.memory_space<vmem>>, %arg11: memref<1x1x128xf32, #tpu.memory_space<vmem>>, %arg12: memref<128x128xbf16, #tpu.memory_space<vmem>>, %arg13: memref<128x128xbf16, #tpu.memory_space<vmem>>, %arg14: memref<1x128xf32, #tpu.memory_space<vmem>>, %arg15: memref<1x1x8x16x128xbf16, #tpu.memory_space<vmem>>, %arg16: memref<192x128xf32, #tpu.memory_space<vmem>>, %arg17: memref<256x128xbf16, #tpu.memory_space<vmem>>) attributes {dimension_semantics = [#tpu.dimension_semantics<parallel>, #tpu.dimension_semantics<parallel>, #tpu.dimension_semantics<arbitrary>], iteration_bounds = array<i64: 2, 2, 2>, scalar_prefetch = 0 : i64, scratch_operands = 2 : i64, tpu.core_type = #tpu.core_type<tc>, window_params = [{transform_indices = @transform_0, window_bounds = array<i64: 1, 1, 12, 16, 16>}, {pipeline_mode = #tpu.pipeline_mode<synchronous>, transform_indices = @transform_1, window_bounds = array<i64: 16, 128>}, {pipeline_mode = #tpu.pipeline_mode<synchronous>, transform_indices = @transform_2, window_bounds = array<i64: 1, 128>}, {pipeline_mode = #tpu.pipeline_mode<synchronous>, transform_indices = @transform_3, window_bounds = array<i64: 16, 128>}, {pipeline_mode = #tpu.pipeline_mode<synchronous>, transform_indices = @transform_4, window_bounds = array<i64: 1, 128>}, {transform_indices = @transform_5, window_bounds = array<i64: 1, 128, 128>}, {transform_indices = @transform_6, window_bounds = array<i64: 1, 1, 128>}, {transform_indices = @transform_7, window_bounds = array<i64: 1, 3, 3, 128, 128>}, {transform_indices = @transform_8, window_bounds = array<i64: 1, 1, 128>}, {pipeline_mode = #tpu.pipeline_mode<synchronous>, transform_indices = @transform_9, window_bounds = array<i64: 128, 128>}, {pipeline_mode = #tpu.pipeline_mode<synchronous>, transform_indices = @transform_10, window_bounds = array<i64: 128, 128>}, {pipeline_mode = #tpu.pipeline_mode<synchronous>, transform_indices = @transform_11, window_bounds = array<i64: 1, 128>}, {transform_indices = @transform_12, window_bounds = array<i64: 1, 1, 8, 16, 128>}]} {
    %0 = tpu.iota {dimensions = array<i32: 1>} : vector<12x16x1xi32>
    %1 = vector.shape_cast %0 : vector<12x16x1xi32> to vector<192x1xi32>
    %c0_i32 = arith.constant 0 : i32
    %2 = vector.broadcast %c0_i32 : i32 to vector<192x1xi32>
    %3 = arith.cmpi eq, %1, %2 : vector<192x1xi32>
    %c15_i32 = arith.constant 15 : i32
    %4 = vector.broadcast %c15_i32 : i32 to vector<192x1xi32>
    %5 = arith.cmpi eq, %1, %4 : vector<192x1xi32>
    %c0_i32_0 = arith.constant 0 : i32
    %6 = arith.cmpi eq, %arg2, %c0_i32_0 : i32
    %7 = arith.extui %6 : i1 to i32
    %c0_i32_1 = arith.constant 0 : i32
    %8 = arith.cmpi ne, %7, %c0_i32_1 : i32
    scf.if %8 {
      %cst_93 = arith.constant 0.000000e+00 : bf16
      %125 = vector.broadcast %cst_93 : bf16 to vector<32x128xbf16>
      %c0_94 = arith.constant 0 : index
      %c0_95 = arith.constant 0 : index
      %126 = vector.load %arg17[%c0_94, %c0_95] : memref<256x128xbf16, #tpu.memory_space<vmem>>, vector<32x128xbf16>
      tpu.vector_store %arg17[%c0_94, %c0_95], %125 {strides = array<i32>} : memref<256x128xbf16, #tpu.memory_space<vmem>>, vector<32x128xbf16>,
      %c224 = arith.constant 224 : index
      %c0_96 = arith.constant 0 : index
      %127 = vector.load %arg17[%c224, %c0_96] : memref<256x128xbf16, #tpu.memory_space<vmem>>, vector<32x128xbf16>
      tpu.vector_store %arg17[%c224, %c0_96], %125 {strides = array<i32>} : memref<256x128xbf16, #tpu.memory_space<vmem>>, vector<32x128xbf16>,
      %c0_97 = arith.constant 0 : index
      %c0_98 = arith.constant 0 : index
      %c0_99 = arith.constant 0 : index
      %c0_100 = arith.constant 0 : index
      %c0_101 = arith.constant 0 : index
      %128 = vector.load %arg3[%c0_97, %c0_98, %c0_99, %c0_100, %c0_101] : memref<1x1x12x16x16xbf16, #tpu.memory_space<vmem>>, vector<1x1x12x16x16xbf16>
      %129 = vector.shape_cast %128 : vector<1x1x12x16x16xbf16> to vector<12x16x16xbf16>
      %130 = vector.shape_cast %129 : vector<12x16x16xbf16> to vector<192x16xbf16>
      %c0_102 = arith.constant 0 : index
      %c0_103 = arith.constant 0 : index
      %131 = vector.load %arg4[%c0_102, %c0_103] : memref<16x128xbf16, #tpu.memory_space<vmem>>, vector<16x128xbf16>
      %cst_104 = arith.constant dense<0.000000e+00> : vector<192x128xf32>
      %132 = tpu.matmul %130, %131, %cst_104 {dimension_numbers = #tpu.dot_dimension_numbers<[1], [0], [0], [1], [0, 0, 1, 1], [], []>} : vector<192x16xbf16>, vector<16x128xbf16>, vector<192x128xf32> -> vector<192x128xf32>
      %c0_105 = arith.constant 0 : index
      %c0_106 = arith.constant 0 : index
      %133 = vector.load %arg5[%c0_105, %c0_106] : memref<1x128xf32, #tpu.memory_space<vmem>>, vector<1x128xf32>
      %134 = vector.broadcast %133 : vector<1x128xf32> to vector<192x128xf32>
      %135 = arith.addf %132, %134 : vector<192x128xf32>
      %cst_107 = arith.constant 0.000000e+00 : f32
      %136 = vector.broadcast %cst_107 : f32 to vector<192x128xf32>
      %137 = arith.subf %136, %135 : vector<192x128xf32>
      %138 = math.exp %137 : vector<192x128xf32>
      %cst_108 = arith.constant 1.000000e+00 : f32
      %139 = vector.broadcast %cst_108 : f32 to vector<192x128xf32>
      %140 = arith.addf %139, %138 : vector<192x128xf32>
      %141 = tpu.reciprocal %140 {approx = true} : vector<192x128xf32> -> vector<192x128xf32>
      %142 = arith.mulf %135, %141 : vector<192x128xf32>
      %c0_109 = arith.constant 0 : index
      %c0_110 = arith.constant 0 : index
      %143 = vector.load %arg16[%c0_109, %c0_110] : memref<192x128xf32, #tpu.memory_space<vmem>>, vector<192x128xf32>
      tpu.vector_store %arg16[%c0_109, %c0_110], %142 {strides = array<i32>} : memref<192x128xf32, #tpu.memory_space<vmem>>, vector<192x128xf32>,
    } else {
    }
    %c0 = arith.constant 0 : index
    %c0_2 = arith.constant 0 : index
    %9 = vector.load %arg16[%c0, %c0_2] : memref<192x128xf32, #tpu.memory_space<vmem>>, vector<192x128xf32>
    %10 = arith.truncf %9 : vector<192x128xf32> to vector<192x128xbf16>
    %c0_3 = arith.constant 0 : index
    %c0_4 = arith.constant 0 : index
    %c0_5 = arith.constant 0 : index
    %11 = vector.load %arg8[%c0_3, %c0_4, %c0_5] : memref<1x128x128xbf16, #tpu.memory_space<vmem>>, vector<1x128x128xbf16>
    %12 = vector.shape_cast %11 : vector<1x128x128xbf16> to vector<128x128xbf16>
    %cst = arith.constant dense<0.000000e+00> : vector<192x128xf32>
    %13 = tpu.matmul %10, %12, %cst {dimension_numbers = #tpu.dot_dimension_numbers<[1], [0], [0], [1], [0, 0, 1, 1], [], []>} : vector<192x128xbf16>, vector<128x128xbf16>, vector<192x128xf32> -> vector<192x128xf32>
    %c0_6 = arith.constant 0 : index
    %c0_7 = arith.constant 0 : index
    %c0_8 = arith.constant 0 : index
    %14 = vector.load %arg9[%c0_6, %c0_7, %c0_8] : memref<1x1x128xf32, #tpu.memory_space<vmem>>, vector<1x1x128xf32>
    %15 = vector.shape_cast %14 : vector<1x1x128xf32> to vector<1x128xf32>
    %16 = vector.broadcast %15 : vector<1x128xf32> to vector<192x128xf32>
    %17 = arith.addf %13, %16 : vector<192x128xf32>
    %cst_9 = arith.constant 0.000000e+00 : f32
    %18 = vector.broadcast %cst_9 : f32 to vector<192x128xf32>
    %19 = arith.subf %18, %17 : vector<192x128xf32>
    %20 = math.exp %19 : vector<192x128xf32>
    %cst_10 = arith.constant 1.000000e+00 : f32
    %21 = vector.broadcast %cst_10 : f32 to vector<192x128xf32>
    %22 = arith.addf %21, %20 : vector<192x128xf32>
    %23 = tpu.reciprocal %22 {approx = true} : vector<192x128xf32> -> vector<192x128xf32>
    %24 = arith.mulf %17, %23 : vector<192x128xf32>
    %25 = arith.truncf %24 : vector<192x128xf32> to vector<192x128xbf16>
    %c32 = arith.constant 32 : index
    %c0_11 = arith.constant 0 : index
    %26 = vector.load %arg17[%c32, %c0_11] : memref<256x128xbf16, #tpu.memory_space<vmem>>, vector<192x128xbf16>
    tpu.vector_store %arg17[%c32, %c0_11], %25 {strides = array<i32>} : memref<256x128xbf16, #tpu.memory_space<vmem>>, vector<192x128xbf16>,
    %cst_12 = arith.constant 0.000000e+00 : bf16
    %27 = vector.broadcast %cst_12 : bf16 to vector<32x128xbf16>
    %c0_i32_13 = arith.constant 0 : i32
    %28 = arith.cmpi eq, %arg1, %c0_i32_13 : i32
    %29 = arith.extui %28 : i1 to i32
    %c0_i32_14 = arith.constant 0 : i32
    %30 = arith.cmpi ne, %29, %c0_i32_14 : i32
    scf.if %30 {
      %c32_93 = arith.constant 32 : index
      %c0_94 = arith.constant 0 : index
      %125 = vector.load %arg17[%c32_93, %c0_94] : memref<256x128xbf16, #tpu.memory_space<vmem>>, vector<32x128xbf16>
      tpu.vector_store %arg17[%c32_93, %c0_94], %27 {strides = array<i32>} : memref<256x128xbf16, #tpu.memory_space<vmem>>, vector<32x128xbf16>,
    } else {
    }
    %c1_i32 = arith.constant 1 : i32
    %31 = arith.cmpi eq, %arg1, %c1_i32 : i32
    %32 = arith.extui %31 : i1 to i32
    %c0_i32_15 = arith.constant 0 : i32
    %33 = arith.cmpi ne, %32, %c0_i32_15 : i32
    scf.if %33 {
      %c192 = arith.constant 192 : index
      %c0_93 = arith.constant 0 : index
      %125 = vector.load %arg17[%c192, %c0_93] : memref<256x128xbf16, #tpu.memory_space<vmem>>, vector<32x128xbf16>
      tpu.vector_store %arg17[%c192, %c0_93], %27 {strides = array<i32>} : memref<256x128xbf16, #tpu.memory_space<vmem>>, vector<32x128xbf16>,
    } else {
    }
    %c0_16 = arith.constant 0 : index
    %c0_17 = arith.constant 0 : index
    %c0_18 = arith.constant 0 : index
    %34 = vector.load %arg11[%c0_16, %c0_17, %c0_18] : memref<1x1x128xf32, #tpu.memory_space<vmem>>, vector<1x1x128xf32>
    %35 = vector.shape_cast %34 : vector<1x1x128xf32> to vector<1x128xf32>
    %36 = vector.shape_cast %35 : vector<1x128xf32> to vector<1x128xf32>
    %37 = vector.broadcast %36 : vector<1x128xf32> to vector<192x128xf32>
    %c15 = arith.constant 15 : index
    %c0_19 = arith.constant 0 : index
    %38 = vector.load %arg17[%c15, %c0_19] : memref<256x128xbf16, #tpu.memory_space<vmem>>, vector<192x128xbf16>
    %cst_20 = arith.constant 0.000000e+00 : f32
    %39 = arith.truncf %cst_20 : f32 to bf16
    %40 = vector.shape_cast %3 : vector<192x1xi1> to vector<192x1xi1>
    %41 = vector.broadcast %40 : vector<192x1xi1> to vector<192x128xi1>
    %42 = vector.broadcast %39 : bf16 to vector<192x128xbf16>
    %43 = arith.select %41, %42, %38 : vector<192x128xi1>, vector<192x128xbf16>
    %c0_21 = arith.constant 0 : index
    %c0_22 = arith.constant 0 : index
    %c0_23 = arith.constant 0 : index
    %c0_24 = arith.constant 0 : index
    %c0_25 = arith.constant 0 : index
    %44 = vector.load %arg10[%c0_21, %c0_22, %c0_23, %c0_24, %c0_25] : memref<1x3x3x128x128xbf16, #tpu.memory_space<vmem>>, vector<1x1x1x128x128xbf16>
    %45 = vector.shape_cast %44 : vector<1x1x1x128x128xbf16> to vector<128x128xbf16>
    %cst_26 = arith.constant dense<0.000000e+00> : vector<192x128xf32>
    %46 = tpu.matmul %43, %45, %cst_26 {dimension_numbers = #tpu.dot_dimension_numbers<[1], [0], [0], [1], [0, 0, 1, 1], [], []>} : vector<192x128xbf16>, vector<128x128xbf16>, vector<192x128xf32> -> vector<192x128xf32>
    %47 = arith.addf %37, %46 : vector<192x128xf32>
    %c16 = arith.constant 16 : index
    %c0_27 = arith.constant 0 : index
    %48 = vector.load %arg17[%c16, %c0_27] : memref<256x128xbf16, #tpu.memory_space<vmem>>, vector<192x128xbf16>
    %c0_28 = arith.constant 0 : index
    %c0_29 = arith.constant 0 : index
    %c1 = arith.constant 1 : index
    %c0_30 = arith.constant 0 : index
    %c0_31 = arith.constant 0 : index
    %49 = vector.load %arg10[%c0_28, %c0_29, %c1, %c0_30, %c0_31] : memref<1x3x3x128x128xbf16, #tpu.memory_space<vmem>>, vector<1x1x1x128x128xbf16>
    %50 = vector.shape_cast %49 : vector<1x1x1x128x128xbf16> to vector<128x128xbf16>
    %cst_32 = arith.constant dense<0.000000e+00> : vector<192x128xf32>
    %51 = tpu.matmul %48, %50, %cst_32 {dimension_numbers = #tpu.dot_dimension_numbers<[1], [0], [0], [1], [0, 0, 1, 1], [], []>} : vector<192x128xbf16>, vector<128x128xbf16>, vector<192x128xf32> -> vector<192x128xf32>
    %52 = arith.addf %47, %51 : vector<192x128xf32>
    %c17 = arith.constant 17 : index
    %c0_33 = arith.constant 0 : index
    %53 = vector.load %arg17[%c17, %c0_33] : memref<256x128xbf16, #tpu.memory_space<vmem>>, vector<192x128xbf16>
    %cst_34 = arith.constant 0.000000e+00 : f32
    %54 = arith.truncf %cst_34 : f32 to bf16
    %55 = vector.shape_cast %5 : vector<192x1xi1> to vector<192x1xi1>
    %56 = vector.broadcast %55 : vector<192x1xi1> to vector<192x128xi1>
    %57 = vector.broadcast %54 : bf16 to vector<192x128xbf16>
    %58 = arith.select %56, %57, %53 : vector<192x128xi1>, vector<192x128xbf16>
    %c0_35 = arith.constant 0 : index
    %c0_36 = arith.constant 0 : index
    %c2 = arith.constant 2 : index
    %c0_37 = arith.constant 0 : index
    %c0_38 = arith.constant 0 : index
    %59 = vector.load %arg10[%c0_35, %c0_36, %c2, %c0_37, %c0_38] : memref<1x3x3x128x128xbf16, #tpu.memory_space<vmem>>, vector<1x1x1x128x128xbf16>
    %60 = vector.shape_cast %59 : vector<1x1x1x128x128xbf16> to vector<128x128xbf16>
    %cst_39 = arith.constant dense<0.000000e+00> : vector<192x128xf32>
    %61 = tpu.matmul %58, %60, %cst_39 {dimension_numbers = #tpu.dot_dimension_numbers<[1], [0], [0], [1], [0, 0, 1, 1], [], []>} : vector<192x128xbf16>, vector<128x128xbf16>, vector<192x128xf32> -> vector<192x128xf32>
    %62 = arith.addf %52, %61 : vector<192x128xf32>
    %c31 = arith.constant 31 : index
    %c0_40 = arith.constant 0 : index
    %63 = vector.load %arg17[%c31, %c0_40] : memref<256x128xbf16, #tpu.memory_space<vmem>>, vector<192x128xbf16>
    %cst_41 = arith.constant 0.000000e+00 : f32
    %64 = arith.truncf %cst_41 : f32 to bf16
    %65 = vector.shape_cast %3 : vector<192x1xi1> to vector<192x1xi1>
    %66 = vector.broadcast %65 : vector<192x1xi1> to vector<192x128xi1>
    %67 = vector.broadcast %64 : bf16 to vector<192x128xbf16>
    %68 = arith.select %66, %67, %63 : vector<192x128xi1>, vector<192x128xbf16>
    %c0_42 = arith.constant 0 : index
    %c1_43 = arith.constant 1 : index
    %c0_44 = arith.constant 0 : index
    %c0_45 = arith.constant 0 : index
    %c0_46 = arith.constant 0 : index
    %69 = vector.load %arg10[%c0_42, %c1_43, %c0_44, %c0_45, %c0_46] : memref<1x3x3x128x128xbf16, #tpu.memory_space<vmem>>, vector<1x1x1x128x128xbf16>
    %70 = vector.shape_cast %69 : vector<1x1x1x128x128xbf16> to vector<128x128xbf16>
    %cst_47 = arith.constant dense<0.000000e+00> : vector<192x128xf32>
    %71 = tpu.matmul %68, %70, %cst_47 {dimension_numbers = #tpu.dot_dimension_numbers<[1], [0], [0], [1], [0, 0, 1, 1], [], []>} : vector<192x128xbf16>, vector<128x128xbf16>, vector<192x128xf32> -> vector<192x128xf32>
    %72 = arith.addf %62, %71 : vector<192x128xf32>
    %c32_48 = arith.constant 32 : index
    %c0_49 = arith.constant 0 : index
    %73 = vector.load %arg17[%c32_48, %c0_49] : memref<256x128xbf16, #tpu.memory_space<vmem>>, vector<192x128xbf16>
    %c0_50 = arith.constant 0 : index
    %c1_51 = arith.constant 1 : index
    %c1_52 = arith.constant 1 : index
    %c0_53 = arith.constant 0 : index
    %c0_54 = arith.constant 0 : index
    %74 = vector.load %arg10[%c0_50, %c1_51, %c1_52, %c0_53, %c0_54] : memref<1x3x3x128x128xbf16, #tpu.memory_space<vmem>>, vector<1x1x1x128x128xbf16>
    %75 = vector.shape_cast %74 : vector<1x1x1x128x128xbf16> to vector<128x128xbf16>
    %cst_55 = arith.constant dense<0.000000e+00> : vector<192x128xf32>
    %76 = tpu.matmul %73, %75, %cst_55 {dimension_numbers = #tpu.dot_dimension_numbers<[1], [0], [0], [1], [0, 0, 1, 1], [], []>} : vector<192x128xbf16>, vector<128x128xbf16>, vector<192x128xf32> -> vector<192x128xf32>
    %77 = arith.addf %72, %76 : vector<192x128xf32>
    %c33 = arith.constant 33 : index
    %c0_56 = arith.constant 0 : index
    %78 = vector.load %arg17[%c33, %c0_56] : memref<256x128xbf16, #tpu.memory_space<vmem>>, vector<192x128xbf16>
    %cst_57 = arith.constant 0.000000e+00 : f32
    %79 = arith.truncf %cst_57 : f32 to bf16
    %80 = vector.shape_cast %5 : vector<192x1xi1> to vector<192x1xi1>
    %81 = vector.broadcast %80 : vector<192x1xi1> to vector<192x128xi1>
    %82 = vector.broadcast %79 : bf16 to vector<192x128xbf16>
    %83 = arith.select %81, %82, %78 : vector<192x128xi1>, vector<192x128xbf16>
    %c0_58 = arith.constant 0 : index
    %c1_59 = arith.constant 1 : index
    %c2_60 = arith.constant 2 : index
    %c0_61 = arith.constant 0 : index
    %c0_62 = arith.constant 0 : index
    %84 = vector.load %arg10[%c0_58, %c1_59, %c2_60, %c0_61, %c0_62] : memref<1x3x3x128x128xbf16, #tpu.memory_space<vmem>>, vector<1x1x1x128x128xbf16>
    %85 = vector.shape_cast %84 : vector<1x1x1x128x128xbf16> to vector<128x128xbf16>
    %cst_63 = arith.constant dense<0.000000e+00> : vector<192x128xf32>
    %86 = tpu.matmul %83, %85, %cst_63 {dimension_numbers = #tpu.dot_dimension_numbers<[1], [0], [0], [1], [0, 0, 1, 1], [], []>} : vector<192x128xbf16>, vector<128x128xbf16>, vector<192x128xf32> -> vector<192x128xf32>
    %87 = arith.addf %77, %86 : vector<192x128xf32>
    %c47 = arith.constant 47 : index
    %c0_64 = arith.constant 0 : index
    %88 = vector.load %arg17[%c47, %c0_64] : memref<256x128xbf16, #tpu.memory_space<vmem>>, vector<192x128xbf16>
    %cst_65 = arith.constant 0.000000e+00 : f32
    %89 = arith.truncf %cst_65 : f32 to bf16
    %90 = vector.shape_cast %3 : vector<192x1xi1> to vector<192x1xi1>
    %91 = vector.broadcast %90 : vector<192x1xi1> to vector<192x128xi1>
    %92 = vector.broadcast %89 : bf16 to vector<192x128xbf16>
    %93 = arith.select %91, %92, %88 : vector<192x128xi1>, vector<192x128xbf16>
    %c0_66 = arith.constant 0 : index
    %c2_67 = arith.constant 2 : index
    %c0_68 = arith.constant 0 : index
    %c0_69 = arith.constant 0 : index
    %c0_70 = arith.constant 0 : index
    %94 = vector.load %arg10[%c0_66, %c2_67, %c0_68, %c0_69, %c0_70] : memref<1x3x3x128x128xbf16, #tpu.memory_space<vmem>>, vector<1x1x1x128x128xbf16>
    %95 = vector.shape_cast %94 : vector<1x1x1x128x128xbf16> to vector<128x128xbf16>
    %cst_71 = arith.constant dense<0.000000e+00> : vector<192x128xf32>
    %96 = tpu.matmul %93, %95, %cst_71 {dimension_numbers = #tpu.dot_dimension_numbers<[1], [0], [0], [1], [0, 0, 1, 1], [], []>} : vector<192x128xbf16>, vector<128x128xbf16>, vector<192x128xf32> -> vector<192x128xf32>
    %97 = arith.addf %87, %96 : vector<192x128xf32>
    %c48 = arith.constant 48 : index
    %c0_72 = arith.constant 0 : index
    %98 = vector.load %arg17[%c48, %c0_72] : memref<256x128xbf16, #tpu.memory_space<vmem>>, vector<192x128xbf16>
    %c0_73 = arith.constant 0 : index
    %c2_74 = arith.constant 2 : index
    %c1_75 = arith.constant 1 : index
    %c0_76 = arith.constant 0 : index
    %c0_77 = arith.constant 0 : index
    %99 = vector.load %arg10[%c0_73, %c2_74, %c1_75, %c0_76, %c0_77] : memref<1x3x3x128x128xbf16, #tpu.memory_space<vmem>>, vector<1x1x1x128x128xbf16>
    %100 = vector.shape_cast %99 : vector<1x1x1x128x128xbf16> to vector<128x128xbf16>
    %cst_78 = arith.constant dense<0.000000e+00> : vector<192x128xf32>
    %101 = tpu.matmul %98, %100, %cst_78 {dimension_numbers = #tpu.dot_dimension_numbers<[1], [0], [0], [1], [0, 0, 1, 1], [], []>} : vector<192x128xbf16>, vector<128x128xbf16>, vector<192x128xf32> -> vector<192x128xf32>
    %102 = arith.addf %97, %101 : vector<192x128xf32>
    %c49 = arith.constant 49 : index
    %c0_79 = arith.constant 0 : index
    %103 = vector.load %arg17[%c49, %c0_79] : memref<256x128xbf16, #tpu.memory_space<vmem>>, vector<192x128xbf16>
    %cst_80 = arith.constant 0.000000e+00 : f32
    %104 = arith.truncf %cst_80 : f32 to bf16
    %105 = vector.shape_cast %5 : vector<192x1xi1> to vector<192x1xi1>
    %106 = vector.broadcast %105 : vector<192x1xi1> to vector<192x128xi1>
    %107 = vector.broadcast %104 : bf16 to vector<192x128xbf16>
    %108 = arith.select %106, %107, %103 : vector<192x128xi1>, vector<192x128xbf16>
    %c0_81 = arith.constant 0 : index
    %c2_82 = arith.constant 2 : index
    %c2_83 = arith.constant 2 : index
    %c0_84 = arith.constant 0 : index
    %c0_85 = arith.constant 0 : index
    %109 = vector.load %arg10[%c0_81, %c2_82, %c2_83, %c0_84, %c0_85] : memref<1x3x3x128x128xbf16, #tpu.memory_space<vmem>>, vector<1x1x1x128x128xbf16>
    %110 = vector.shape_cast %109 : vector<1x1x1x128x128xbf16> to vector<128x128xbf16>
    %cst_86 = arith.constant dense<0.000000e+00> : vector<192x128xf32>
    %111 = tpu.matmul %108, %110, %cst_86 {dimension_numbers = #tpu.dot_dimension_numbers<[1], [0], [0], [1], [0, 0, 1, 1], [], []>} : vector<192x128xbf16>, vector<128x128xbf16>, vector<192x128xf32> -> vector<192x128xf32>
    %112 = arith.addf %102, %111 : vector<192x128xf32>
    %cst_87 = arith.constant 0.000000e+00 : f32
    %113 = vector.broadcast %cst_87 : f32 to vector<192x128xf32>
    %114 = arith.subf %113, %112 : vector<192x128xf32>
    %115 = math.exp %114 : vector<192x128xf32>
    %cst_88 = arith.constant 1.000000e+00 : f32
    %116 = vector.broadcast %cst_88 : f32 to vector<192x128xf32>
    %117 = arith.addf %116, %115 : vector<192x128xf32>
    %118 = tpu.reciprocal %117 {approx = true} : vector<192x128xf32> -> vector<192x128xf32>
    %119 = arith.mulf %112, %118 : vector<192x128xf32>
    %120 = arith.addf %119, %9 : vector<192x128xf32>
    %c0_89 = arith.constant 0 : index
    %c0_90 = arith.constant 0 : index
    %121 = vector.load %arg16[%c0_89, %c0_90] : memref<192x128xf32, #tpu.memory_space<vmem>>, vector<192x128xf32>
    tpu.vector_store %arg16[%c0_89, %c0_90], %120 {strides = array<i32>} : memref<192x128xf32, #tpu.memory_space<vmem>>, vector<192x128xf32>,
    %c1_i32_91 = arith.constant 1 : i32
    %122 = arith.cmpi eq, %arg2, %c1_i32_91 : i32
    %123 = arith.extui %122 : i1 to i32
    %c0_i32_92 = arith.constant 0 : i32
    %124 = arith.cmpi ne, %123, %c0_i32_92 : i32
    scf.if %124 {
      %c32_93 = arith.constant 32 : index
      %c0_94 = arith.constant 0 : index
      %125 = vector.load %arg16[%c32_93, %c0_94] : memref<192x128xf32, #tpu.memory_space<vmem>>, vector<128x128xf32>
      %126 = arith.truncf %125 : vector<128x128xf32> to vector<128x128xbf16>
      %c0_95 = arith.constant 0 : index
      %c0_96 = arith.constant 0 : index
      %c2_97 = arith.constant 2 : index
      %c0_98 = arith.constant 0 : index
      %c0_99 = arith.constant 0 : index
      %127 = vector.load %arg3[%c0_95, %c0_96, %c2_97, %c0_98, %c0_99] : memref<1x1x12x16x16xbf16, #tpu.memory_space<vmem>>, vector<1x1x8x16x16xbf16>
      %128 = vector.shape_cast %127 : vector<1x1x8x16x16xbf16> to vector<8x16x16xbf16>
      %129 = vector.shape_cast %128 : vector<8x16x16xbf16> to vector<128x16xbf16>
      %c0_100 = arith.constant 0 : index
      %c0_101 = arith.constant 0 : index
      %130 = vector.load %arg6[%c0_100, %c0_101] : memref<16x128xbf16, #tpu.memory_space<vmem>>, vector<16x128xbf16>
      %cst_102 = arith.constant dense<0.000000e+00> : vector<128x128xf32>
      %131 = tpu.matmul %129, %130, %cst_102 {dimension_numbers = #tpu.dot_dimension_numbers<[1], [0], [0], [1], [0, 0, 1, 1], [], []>} : vector<128x16xbf16>, vector<16x128xbf16>, vector<128x128xf32> -> vector<128x128xf32>
      %c0_103 = arith.constant 0 : index
      %c0_104 = arith.constant 0 : index
      %132 = vector.load %arg7[%c0_103, %c0_104] : memref<1x128xf32, #tpu.memory_space<vmem>>, vector<1x128xf32>
      %133 = vector.broadcast %132 : vector<1x128xf32> to vector<128x128xf32>
      %134 = arith.addf %131, %133 : vector<128x128xf32>
      %cst_105 = arith.constant 0.000000e+00 : f32
      %135 = vector.broadcast %cst_105 : f32 to vector<128x128xf32>
      %136 = arith.subf %135, %134 : vector<128x128xf32>
      %137 = math.exp %136 : vector<128x128xf32>
      %cst_106 = arith.constant 1.000000e+00 : f32
      %138 = vector.broadcast %cst_106 : f32 to vector<128x128xf32>
      %139 = arith.addf %138, %137 : vector<128x128xf32>
      %140 = tpu.reciprocal %139 {approx = true} : vector<128x128xf32> -> vector<128x128xf32>
      %141 = arith.mulf %134, %140 : vector<128x128xf32>
      %142 = arith.truncf %141 : vector<128x128xf32> to vector<128x128xbf16>
      %c0_107 = arith.constant 0 : index
      %c0_108 = arith.constant 0 : index
      %143 = vector.load %arg12[%c0_107, %c0_108] : memref<128x128xbf16, #tpu.memory_space<vmem>>, vector<128x128xbf16>
      %cst_109 = arith.constant dense<0.000000e+00> : vector<128x128xf32>
      %144 = tpu.matmul %126, %143, %cst_109 {dimension_numbers = #tpu.dot_dimension_numbers<[1], [0], [0], [1], [0, 0, 1, 1], [], []>} : vector<128x128xbf16>, vector<128x128xbf16>, vector<128x128xf32> -> vector<128x128xf32>
      %c0_110 = arith.constant 0 : index
      %c0_111 = arith.constant 0 : index
      %145 = vector.load %arg13[%c0_110, %c0_111] : memref<128x128xbf16, #tpu.memory_space<vmem>>, vector<128x128xbf16>
      %cst_112 = arith.constant dense<0.000000e+00> : vector<128x128xf32>
      %146 = tpu.matmul %142, %145, %cst_112 {dimension_numbers = #tpu.dot_dimension_numbers<[1], [0], [0], [1], [0, 0, 1, 1], [], []>} : vector<128x128xbf16>, vector<128x128xbf16>, vector<128x128xf32> -> vector<128x128xf32>
      %147 = arith.addf %144, %146 : vector<128x128xf32>
      %c0_113 = arith.constant 0 : index
      %c0_114 = arith.constant 0 : index
      %148 = vector.load %arg14[%c0_113, %c0_114] : memref<1x128xf32, #tpu.memory_space<vmem>>, vector<1x128xf32>
      %149 = vector.broadcast %148 : vector<1x128xf32> to vector<128x128xf32>
      %150 = arith.addf %147, %149 : vector<128x128xf32>
      %cst_115 = arith.constant 0.000000e+00 : f32
      %151 = vector.broadcast %cst_115 : f32 to vector<128x128xf32>
      %152 = arith.subf %151, %150 : vector<128x128xf32>
      %153 = math.exp %152 : vector<128x128xf32>
      %cst_116 = arith.constant 1.000000e+00 : f32
      %154 = vector.broadcast %cst_116 : f32 to vector<128x128xf32>
      %155 = arith.addf %154, %153 : vector<128x128xf32>
      %156 = tpu.reciprocal %155 {approx = true} : vector<128x128xf32> -> vector<128x128xf32>
      %157 = arith.mulf %150, %156 : vector<128x128xf32>
      %158 = vector.shape_cast %157 : vector<128x128xf32> to vector<8x16x128xf32>
      %159 = arith.truncf %158 : vector<8x16x128xf32> to vector<8x16x128xbf16>
      %c0_117 = arith.constant 0 : index
      %c0_118 = arith.constant 0 : index
      %c0_119 = arith.constant 0 : index
      %c0_120 = arith.constant 0 : index
      %c0_121 = arith.constant 0 : index
      %160 = vector.load %arg15[%c0_117, %c0_118, %c0_119, %c0_120, %c0_121] : memref<1x1x8x16x128xbf16, #tpu.memory_space<vmem>>, vector<1x1x8x16x128xbf16>
      %161 = vector.shape_cast %160 : vector<1x1x8x16x128xbf16> to vector<8x16x128xbf16>
      %162 = vector.shape_cast %159 : vector<8x16x128xbf16> to vector<1x1x8x16x128xbf16>
      tpu.vector_store %arg15[%c0_117, %c0_118, %c0_119, %c0_120, %c0_121], %162 {strides = array<i32>} : memref<1x1x8x16x128xbf16, #tpu.memory_space<vmem>>, vector<1x1x8x16x128xbf16>,
    } else {
    }
    return
  }
  func.func @transform_0(%arg0: i32, %arg1: i32, %arg2: i32) -> (i32, i32, i32, i32, i32) {
    %c0_i32 = arith.constant 0 : i32
    %c0_i32_0 = arith.constant 0 : i32
    %c0_i32_1 = arith.constant 0 : i32
    %c0_i32_2 = arith.constant 0 : i32
    return %arg0, %arg1, %c0_i32, %c0_i32_0, %c0_i32_1 : i32, i32, i32, i32, i32
  }
  func.func @transform_1(%arg0: i32, %arg1: i32, %arg2: i32) -> (i32, i32) {
    %c0_i32 = arith.constant 0 : i32
    %c0_i32_0 = arith.constant 0 : i32
    %c0_i32_1 = arith.constant 0 : i32
    return %c0_i32, %c0_i32_0 : i32, i32
  }
  func.func @transform_2(%arg0: i32, %arg1: i32, %arg2: i32) -> (i32, i32) {
    %c0_i32 = arith.constant 0 : i32
    %c0_i32_0 = arith.constant 0 : i32
    %c0_i32_1 = arith.constant 0 : i32
    return %c0_i32, %c0_i32_0 : i32, i32
  }
  func.func @transform_3(%arg0: i32, %arg1: i32, %arg2: i32) -> (i32, i32) {
    %c0_i32 = arith.constant 0 : i32
    %c0_i32_0 = arith.constant 0 : i32
    %c0_i32_1 = arith.constant 0 : i32
    return %c0_i32, %c0_i32_0 : i32, i32
  }
  func.func @transform_4(%arg0: i32, %arg1: i32, %arg2: i32) -> (i32, i32) {
    %c0_i32 = arith.constant 0 : i32
    %c0_i32_0 = arith.constant 0 : i32
    %c0_i32_1 = arith.constant 0 : i32
    return %c0_i32, %c0_i32_0 : i32, i32
  }
  func.func @transform_5(%arg0: i32, %arg1: i32, %arg2: i32) -> (i32, i32, i32) {
    %c0_i32 = arith.constant 0 : i32
    %c0_i32_0 = arith.constant 0 : i32
    %c0_i32_1 = arith.constant 0 : i32
    return %arg2, %c0_i32, %c0_i32_0 : i32, i32, i32
  }
  func.func @transform_6(%arg0: i32, %arg1: i32, %arg2: i32) -> (i32, i32, i32) {
    %c0_i32 = arith.constant 0 : i32
    %c0_i32_0 = arith.constant 0 : i32
    %c0_i32_1 = arith.constant 0 : i32
    return %arg2, %c0_i32, %c0_i32_0 : i32, i32, i32
  }
  func.func @transform_7(%arg0: i32, %arg1: i32, %arg2: i32) -> (i32, i32, i32, i32, i32) {
    %c0_i32 = arith.constant 0 : i32
    %c0_i32_0 = arith.constant 0 : i32
    %c0_i32_1 = arith.constant 0 : i32
    %c0_i32_2 = arith.constant 0 : i32
    %c0_i32_3 = arith.constant 0 : i32
    return %arg2, %c0_i32, %c0_i32_0, %c0_i32_1, %c0_i32_2 : i32, i32, i32, i32, i32
  }
  func.func @transform_8(%arg0: i32, %arg1: i32, %arg2: i32) -> (i32, i32, i32) {
    %c0_i32 = arith.constant 0 : i32
    %c0_i32_0 = arith.constant 0 : i32
    %c0_i32_1 = arith.constant 0 : i32
    return %arg2, %c0_i32, %c0_i32_0 : i32, i32, i32
  }
  func.func @transform_9(%arg0: i32, %arg1: i32, %arg2: i32) -> (i32, i32) {
    %c0_i32 = arith.constant 0 : i32
    %c0_i32_0 = arith.constant 0 : i32
    %c0_i32_1 = arith.constant 0 : i32
    return %c0_i32, %c0_i32_0 : i32, i32
  }
  func.func @transform_10(%arg0: i32, %arg1: i32, %arg2: i32) -> (i32, i32) {
    %c0_i32 = arith.constant 0 : i32
    %c0_i32_0 = arith.constant 0 : i32
    %c0_i32_1 = arith.constant 0 : i32
    return %c0_i32, %c0_i32_0 : i32, i32
  }
  func.func @transform_11(%arg0: i32, %arg1: i32, %arg2: i32) -> (i32, i32) {
    %c0_i32 = arith.constant 0 : i32
    %c0_i32_0 = arith.constant 0 : i32
    %c0_i32_1 = arith.constant 0 : i32
    return %c0_i32, %c0_i32_0 : i32, i32
  }
  func.func @transform_12(%arg0: i32, %arg1: i32, %arg2: i32) -> (i32, i32, i32, i32, i32) {
    %c0_i32 = arith.constant 0 : i32
    %c0_i32_0 = arith.constant 0 : i32
    %c0_i32_1 = arith.constant 0 : i32
    %c0_i32_2 = arith.constant 0 : i32
    return %arg0, %arg1, %c0_i32, %c0_i32_0, %c0_i32_1 : i32, i32, i32, i32, i32
  }
}

</mosaic_0001>

<llo_original>
// kernel: tpu_custom_call.1
$region0: #{tpu_custom_call.1}
  #allocation0 [shape = 'u32[]', space=smem, size = 0x4, offset = 0x4, fixed_abs, tag = 'smem constant byte address 0x4 - core index']
  #allocation1 [shape = 'u32[144,128]{1,0:T(1,128)}', space=vmem, size = 0x12000, scoped, tag = 'internal scratch']
  #allocation2 [shape = 'f32[192,128]{1,0:T(8,128)}', space=vmem, size = 0x18000, scoped, tag = 'scratch operand']
  #allocation3 [shape = 'bf16[256,128]{1,0:T(16,128)(2,1)}', space=vmem, size = 0x10000, scoped, tag = 'scratch operand']
  %s0 = inlined_call_operand.hbm [shape: bf16[2,2,12,16,16], index: 0, kind: input, shape index: {}]
  %s1 = inlined_call_operand.hbm [shape: bf16[16,128], index: 1, kind: input, shape index: {}]
  %s2 = inlined_call_operand.vmem [shape: f32[1,128], index: 2, kind: input, shape index: {}]
  %s3 = inlined_call_operand.vmem [shape: bf16[16,128], index: 3, kind: input, shape index: {}]
  %s4 = inlined_call_operand.vmem [shape: f32[1,128], index: 4, kind: input, shape index: {}]
  %s5 = inlined_call_operand.hbm [shape: bf16[2,128,128], index: 5, kind: input, shape index: {}]
  %s6 = inlined_call_operand.vmem [shape: f32[2,1,128], index: 6, kind: input, shape index: {}]
  %s7 = inlined_call_operand.hbm [shape: bf16[2,3,3,128,128], index: 7, kind: input, shape index: {}]
  %s8 = inlined_call_operand.vmem [shape: f32[2,1,128], index: 8, kind: input, shape index: {}]
  %s9 = inlined_call_operand.hbm [shape: bf16[128,128], index: 9, kind: input, shape index: {}]
  %s10 = inlined_call_operand.hbm [shape: bf16[128,128], index: 10, kind: input, shape index: {}]
  %s11 = inlined_call_operand.vmem [shape: f32[1,128], index: 11, kind: input, shape index: {}]
  %s12 = inlined_call_operand.hbm [shape: bf16[2,2,8,16,128], index: 12, kind: output, shape index: {}]
  %s13 = sld [smem:[#allocation0]]
  $region121: #{tpu_custom_call.1} parent=0
    _
  %s15 = ssub.s32 1, %s13
  %s16 = scalar_select 0, %s15, %s13
  $region1: #{tpu_custom_call.1} parent=0
    #allocation4 [shape = 'u8[98304]{0}', space=vmem, size = 0x18000, scoped, tag = 'input window, operand 0']
    #allocation5 [shape = 's32[2]{0}', space=sflag, size = 0x8, scoped, tag = 'scoped memory for tpu_custom_call.1']
    #allocation6 [shape = 's32[2]{0}', space=sflag, size = 0x8, scoped, tag = 'scoped memory for tpu_custom_call.1']
    #allocation7 [shape = 'u8[4096]{0}', space=vmem, size = 0x1000, scoped, tag = 'input window, operand 1, single buffered']
    #allocation8 [shape = 's32[1]{0}', space=sflag, size = 0x4, scoped, tag = 'scoped memory for tpu_custom_call.1']
    #allocation9 [shape = 'u8[65536]{0}', space=vmem, size = 0x10000, scoped, tag = 'input window, operand 5']
    #allocation10 [shape = 'u8[589824]{0}', space=vmem, size = 0x90000, scoped, tag = 'input window, operand 7']
    #allocation11 [shape = 'u8[32768]{0}', space=vmem, size = 0x8000, scoped, tag = 'input window, operand 9, single buffered']
    #allocation12 [shape = 'u8[32768]{0}', space=vmem, size = 0x8000, scoped, tag = 'input window, operand 10, single buffered']
    #allocation13 [shape = 's32[1]{0}', space=sflag, size = 0x4, scoped, tag = 'scoped memory for tpu_custom_call.1']
    #allocation14 [shape = 'u8[65536]{0}', space=vmem, size = 0x10000, scoped, tag = 'output window, operand 0']
    %17 = vsyncpa [#allocation5], 0
    %s18 = scalar_lea.sflag [#allocation5], 1
    %19 = vsyncpa %s18, 0
    %20 = vsyncpa [#allocation8], 0
    %21 = vsyncpa [#allocation13], 0
    %22 = vsyncpa [#allocation6], 0
    %s23 = scalar_lea.sflag [#allocation6], 1
    %24 = vsyncpa %s23, 0
    loop: start=0, step=1, limit=10
    $region2: #{tpu_custom_call.1} parent=1 // loop_pre_header
      _
    $region3: #{tpu_custom_call.1} parent=1 // loop_header
      %s26 = sphi 0, %s30
      %p27 = scmp.ge.s32.totalorder %s26, 10
      %s33 = sphi 0, %s52
      %s34 = sphi 0, %s48
      %s35 = sphi 0, %s44
      %s36 = sphi 0, %s33
      %s37 = sphi 0, %s34
      %s38 = sphi 0, %s35
      %s39 = sphi 0, %s36
      %s40 = sphi 0, %s37
      %s41 = sphi 0, %s38
      %s57 = sphi 0, %s59
      %s60 = sphi 0, %s57
      %s61 = sphi 0, %s60
      %s77 = sphi 0, %s61
      %s81 = sphi 0, %s81
      %s83 = sphi 0, %s81
      %s84 = sphi 0, %s83
      %s98 = sphi 0, %s84
      %s102 = sphi 0, %s102
      %s104 = sphi 0, %s102
      %s105 = sphi 0, %s104
      %s119 = sphi 0, %s105
      %s123 = sphi 0, %s123
      %s125 = sphi 0, %s123
      %s126 = sphi 0, %s125
      %s140 = sphi 0, %s126
      %s144 = sphi 0, %s144
      %s146 = sphi 0, %s144
      %s147 = sphi 0, %s146
      %s161 = sphi 0, %s147
      %s167 = sphi 0, %s169
      %s170 = sphi 0, %s167
      %s171 = sphi 0, %s170
      %s187 = sphi 0, %s171
      %s193 = sphi 0, %s195
      %s196 = sphi 0, %s193
      %s197 = sphi 0, %s196
      %s213 = sphi 0, %s197
      %s219 = sphi 0, %s221
      %s222 = sphi 0, %s219
      %s223 = sphi 0, %s222
      %s239 = sphi 0, %s223
      %s245 = sphi 0, %s247
      %s248 = sphi 0, %s245
      %s249 = sphi 0, %s248
      %s265 = sphi 0, %s249
      %s269 = sphi 0, %s269
      %s271 = sphi 0, %s269
      %s272 = sphi 0, %s271
      %s286 = sphi 0, %s272
      %s290 = sphi 0, %s290
      %s292 = sphi 0, %s290
      %s293 = sphi 0, %s292
      %s307 = sphi 0, %s293
      %s311 = sphi 0, %s311
      %s313 = sphi 0, %s311
      %s314 = sphi 0, %s313
      %s328 = sphi 0, %s314
      %s336 = sphi 0, %s338
      %s339 = sphi 0, %s336
      %s340 = sphi 0, %s339
      %s356 = sphi 0, %s340
    $region4: #{tpu_custom_call.1} parent=1 // loop_header_branch
      %29 = sbr.rel (%p27) target = $region8
    $region5: #{tpu_custom_call.1} parent=1 // loop_body
      %s31 = ssub.s32 %s26, 1
      %s32 = ssub.s32 %s26, 2
      %s42 = sadd.s32 1, %s35
      %p43 = scmp.ge.s32.totalorder %s42, 2
      %s44 = scalar_select %p43, 0, %s42
      %s45 = sadd.s32 1, %s34
      %s46 = scalar_select %p43, %s45, %s34
      %p47 = scmp.ge.s32.totalorder %s46, 2
      %s48 = scalar_select %p47, 0, %s46
      %s49 = sadd.s32 1, %s33
      %s50 = scalar_select %p47, %s49, %s33
      %p51 = scmp.ge.s32.totalorder %s50, 2
      %s52 = scalar_select %p51, 0, %s50
      %s53 = ssub.s32 %s33, %s52
      %s54 = ssub.s32 %s34, %s48
      %s55 = sor.u32 %s53, %s54
      %p56 = scmp.eq.s32.totalorder %s55, 0
      %s58 = sadd.s32 %s57, 1
      %s59 = scalar_select %p56, %s57, %s58
      %p62 = pneg %p56
      %p63 = scmp.eq.s32.totalorder %s26, 7
      %p64 = por %p62, %p63
      %p65 = scmp.ne.s32.totalorder %s57, %s60
      %p66 = scmp.eq.s32.totalorder %s26, 0
      %p67 = por %p65, %p66
      %p68 = scmp.ne.s32.totalorder %s57, %s60
      %p69 = scmp.eq.s32.totalorder %s31, 7
      %p70 = por %p68, %p69
      %p71 = scmp.ne.s32.totalorder %s60, %s61
      %p72 = scmp.eq.s32.totalorder %s31, 0
      %p73 = por %p71, %p72
      %p74 = scmp.ne.s32.totalorder %s60, %s61
      %p75 = scmp.eq.s32.totalorder %s32, 7
      %p76 = por %p74, %p75
      %p78 = scmp.ne.s32.totalorder %s61, %s77
      %p79 = scmp.eq.s32.totalorder %s32, 0
      %p80 = por %p78, %p79
      %s82 = sadd.s32 %s81, 1
      %p85 = scmp.eq.s32.totalorder %s26, 7
      %p86 = scmp.ne.s32.totalorder %s81, %s83
      %p87 = scmp.eq.s32.totalorder %s26, 0
      %p88 = por %p86, %p87
      %p89 = scmp.ne.s32.totalorder %s81, %s83
      %p90 = scmp.eq.s32.totalorder %s31, 7
      %p91 = por %p89, %p90
      %p92 = scmp.ne.s32.totalorder %s83, %s84
      %p93 = scmp.eq.s32.totalorder %s31, 0
      %p94 = por %p92, %p93
      %p95 = scmp.ne.s32.totalorder %s83, %s84
      %p96 = scmp.eq.s32.totalorder %s32, 7
      %p97 = por %p95, %p96
      %p99 = scmp.ne.s32.totalorder %s84, %s98
      %p100 = scmp.eq.s32.totalorder %s32, 0
      %p101 = por %p99, %p100
      %s103 = sadd.s32 %s102, 1
      %p106 = scmp.eq.s32.totalorder %s26, 7
      %p107 = scmp.ne.s32.totalorder %s102, %s104
      %p108 = scmp.eq.s32.totalorder %s26, 0
      %p109 = por %p107, %p108
      %p110 = scmp.ne.s32.totalorder %s102, %s104
      %p111 = scmp.eq.s32.totalorder %s31, 7
      %p112 = por %p110, %p111
      %p113 = scmp.ne.s32.totalorder %s104, %s105
      %p114 = scmp.eq.s32.totalorder %s31, 0
      %p115 = por %p113, %p114
      %p116 = scmp.ne.s32.totalorder %s104, %s105
      %p117 = scmp.eq.s32.totalorder %s32, 7
      %p118 = por %p116, %p117
      %p120 = scmp.ne.s32.totalorder %s105, %s119
      %p121 = scmp.eq.s32.totalorder %s32, 0
      %p122 = por %p120, %p121
      %s124 = sadd.s32 %s123, 1
      %p127 = scmp.eq.s32.totalorder %s26, 7
      %p128 = scmp.ne.s32.totalorder %s123, %s125
      %p129 = scmp.eq.s32.totalorder %s26, 0
      %p130 = por %p128, %p129
      %p131 = scmp.ne.s32.totalorder %s123, %s125
      %p132 = scmp.eq.s32.totalorder %s31, 7
      %p133 = por %p131, %p132
      %p134 = scmp.ne.s32.totalorder %s125, %s126
      %p135 = scmp.eq.s32.totalorder %s31, 0
      %p136 = por %p134, %p135
      %p137 = scmp.ne.s32.totalorder %s125, %s126
      %p138 = scmp.eq.s32.totalorder %s32, 7
      %p139 = por %p137, %p138
      %p141 = scmp.ne.s32.totalorder %s126, %s140
      %p142 = scmp.eq.s32.totalorder %s32, 0
      %p143 = por %p141, %p142
      %s145 = sadd.s32 %s144, 1
      %p148 = scmp.eq.s32.totalorder %s26, 7
      %p149 = scmp.ne.s32.totalorder %s144, %s146
      %p150 = scmp.eq.s32.totalorder %s26, 0
      %p151 = por %p149, %p150
      %p152 = scmp.ne.s32.totalorder %s144, %s146
      %p153 = scmp.eq.s32.totalorder %s31, 7
      %p154 = por %p152, %p153
      %p155 = scmp.ne.s32.totalorder %s146, %s147
      %p156 = scmp.eq.s32.totalorder %s31, 0
      %p157 = por %p155, %p156
      %p158 = scmp.ne.s32.totalorder %s146, %s147
      %p159 = scmp.eq.s32.totalorder %s32, 7
      %p160 = por %p158, %p159
      %p162 = scmp.ne.s32.totalorder %s147, %s161
      %p163 = scmp.eq.s32.totalorder %s32, 0
      %p164 = por %p162, %p163
      %s165 = ssub.s32 %s35, %s44
      %p166 = scmp.eq.s32.totalorder %s165, 0
      %s168 = sadd.s32 %s167, 1
      %s169 = scalar_select %p166, %s167, %s168
      %p172 = pneg %p166
      %p173 = scmp.eq.s32.totalorder %s26, 7
      %p174 = por %p172, %p173
      %p175 = scmp.ne.s32.totalorder %s167, %s170
      %p176 = scmp.eq.s32.totalorder %s26, 0
      %p177 = por %p175, %p176
      %p178 = scmp.ne.s32.totalorder %s167, %s170
      %p179 = scmp.eq.s32.totalorder %s31, 7
      %p180 = por %p178, %p179
      %p181 = scmp.ne.s32.totalorder %s170, %s171
      %p182 = scmp.eq.s32.totalorder %s31, 0
      %p183 = por %p181, %p182
      %p184 = scmp.ne.s32.totalorder %s170, %s171
      %p185 = scmp.eq.s32.totalorder %s32, 7
      %p186 = por %p184, %p185
      %p188 = scmp.ne.s32.totalorder %s171, %s187
      %p189 = scmp.eq.s32.totalorder %s32, 0
      %p190 = por %p188, %p189
      %s191 = ssub.s32 %s35, %s44
      %p192 = scmp.eq.s32.totalorder %s191, 0
      %s194 = sadd.s32 %s193, 1
      %s195 = scalar_select %p192, %s193, %s194
      %p198 = pneg %p192
      %p199 = scmp.eq.s32.totalorder %s26, 7
      %p200 = por %p198, %p199
      %p201 = scmp.ne.s32.totalorder %s193, %s196
      %p202 = scmp.eq.s32.totalorder %s26, 0
      %p203 = por %p201, %p202
      %p204 = scmp.ne.s32.totalorder %s193, %s196
      %p205 = scmp.eq.s32.totalorder %s31, 7
      %p206 = por %p204, %p205
      %p207 = scmp.ne.s32.totalorder %s196, %s197
      %p208 = scmp.eq.s32.totalorder %s31, 0
      %p209 = por %p207, %p208
      %p210 = scmp.ne.s32.totalorder %s196, %s197
      %p211 = scmp.eq.s32.totalorder %s32, 7
      %p212 = por %p210, %p211
      %p214 = scmp.ne.s32.totalorder %s197, %s213
      %p215 = scmp.eq.s32.totalorder %s32, 0
      %p216 = por %p214, %p215
      %s217 = ssub.s32 %s35, %s44
      %p218 = scmp.eq.s32.totalorder %s217, 0
      %s220 = sadd.s32 %s219, 1
      %s221 = scalar_select %p218, %s219, %s220
      %p224 = pneg %p218
      %p225 = scmp.eq.s32.totalorder %s26, 7
      %p226 = por %p224, %p225
      %p227 = scmp.ne.s32.totalorder %s219, %s222
      %p228 = scmp.eq.s32.totalorder %s26, 0
      %p229 = por %p227, %p228
      %p230 = scmp.ne.s32.totalorder %s219, %s222
      %p231 = scmp.eq.s32.totalorder %s31, 7
      %p232 = por %p230, %p231
      %p233 = scmp.ne.s32.totalorder %s222, %s223
      %p234 = scmp.eq.s32.totalorder %s31, 0
      %p235 = por %p233, %p234
      %p236 = scmp.ne.s32.totalorder %s222, %s223
      %p237 = scmp.eq.s32.totalorder %s32, 7
      %p238 = por %p236, %p237
      %p240 = scmp.ne.s32.totalorder %s223, %s239
      %p241 = scmp.eq.s32.totalorder %s32, 0
      %p242 = por %p240, %p241
      %s243 = ssub.s32 %s35, %s44
      %p244 = scmp.eq.s32.totalorder %s243, 0
      %s246 = sadd.s32 %s245, 1
      %s247 = scalar_select %p244, %s245, %s246
      %p250 = pneg %p244
      %p251 = scmp.eq.s32.totalorder %s26, 7
      %p252 = por %p250, %p251
      %p253 = scmp.ne.s32.totalorder %s245, %s248
      %p254 = scmp.eq.s32.totalorder %s26, 0
      %p255 = por %p253, %p254
      %p256 = scmp.ne.s32.totalorder %s245, %s248
      %p257 = scmp.eq.s32.totalorder %s31, 7
      %p258 = por %p256, %p257
      %p259 = scmp.ne.s32.totalorder %s248, %s249
      %p260 = scmp.eq.s32.totalorder %s31, 0
      %p261 = por %p259, %p260
      %p262 = scmp.ne.s32.totalorder %s248, %s249
      %p263 = scmp.eq.s32.totalorder %s32, 7
      %p264 = por %p262, %p263
      %p266 = scmp.ne.s32.totalorder %s249, %s265
      %p267 = scmp.eq.s32.totalorder %s32, 0
      %p268 = por %p266, %p267
      %s270 = sadd.s32 %s269, 1
      %p273 = scmp.eq.s32.totalorder %s26, 7
      %p274 = scmp.ne.s32.totalorder %s269, %s271
      %p275 = scmp.eq.s32.totalorder %s26, 0
      %p276 = por %p274, %p275
      %p277 = scmp.ne.s32.totalorder %s269, %s271
      %p278 = scmp.eq.s32.totalorder %s31, 7
      %p279 = por %p277, %p278
      %p280 = scmp.ne.s32.totalorder %s271, %s272
      %p281 = scmp.eq.s32.totalorder %s31, 0
      %p282 = por %p280, %p281
      %p283 = scmp.ne.s32.totalorder %s271, %s272
      %p284 = scmp.eq.s32.totalorder %s32, 7
      %p285 = por %p283, %p284
      %p287 = scmp.ne.s32.totalorder %s272, %s286
      %p288 = scmp.eq.s32.totalorder %s32, 0
      %p289 = por %p287, %p288
      %s291 = sadd.s32 %s290, 1
      %p294 = scmp.eq.s32.totalorder %s26, 7
      %p295 = scmp.ne.s32.totalorder %s290, %s292
      %p296 = scmp.eq.s32.totalorder %s26, 0
      %p297 = por %p295, %p296
      %p298 = scmp.ne.s32.totalorder %s290, %s292
      %p299 = scmp.eq.s32.totalorder %s31, 7
      %p300 = por %p298, %p299
      %p301 = scmp.ne.s32.totalorder %s292, %s293
      %p302 = scmp.eq.s32.totalorder %s31, 0
      %p303 = por %p301, %p302
      %p304 = scmp.ne.s32.totalorder %s292, %s293
      %p305 = scmp.eq.s32.totalorder %s32, 7
      %p306 = por %p304, %p305
      %p308 = scmp.ne.s32.totalorder %s293, %s307
      %p309 = scmp.eq.s32.totalorder %s32, 0
      %p310 = por %p308, %p309
      %s312 = sadd.s32 %s311, 1
      %p315 = scmp.eq.s32.totalorder %s26, 7
      %p316 = scmp.ne.s32.totalorder %s311, %s313
      %p317 = scmp.eq.s32.totalorder %s26, 0
      %p318 = por %p316, %p317
      %p319 = scmp.ne.s32.totalorder %s311, %s313
      %p320 = scmp.eq.s32.totalorder %s31, 7
      %p321 = por %p319, %p320
      %p322 = scmp.ne.s32.totalorder %s313, %s314
      %p323 = scmp.eq.s32.totalorder %s31, 0
      %p324 = por %p322, %p323
      %p325 = scmp.ne.s32.totalorder %s313, %s314
      %p326 = scmp.eq.s32.totalorder %s32, 7
      %p327 = por %p325, %p326
      %p329 = scmp.ne.s32.totalorder %s314, %s328
      %p330 = scmp.eq.s32.totalorder %s32, 0
      %p331 = por %p329, %p330
      %s332 = ssub.s32 %s33, %s52
      %s333 = ssub.s32 %s34, %s48
      %s334 = sor.u32 %s332, %s333
      %p335 = scmp.eq.s32.totalorder %s334, 0
      %s337 = sadd.s32 %s336, 1
      %s338 = scalar_select %p335, %s336, %s337
      %p341 = pneg %p335
      %p342 = scmp.eq.s32.totalorder %s26, 7
      %p343 = por %p341, %p342
      %p344 = scmp.ne.s32.totalorder %s336, %s339
      %p345 = scmp.eq.s32.totalorder %s26, 0
      %p346 = por %p344, %p345
      %p347 = scmp.ne.s32.totalorder %s336, %s339
      %p348 = scmp.eq.s32.totalorder %s31, 7
      %p349 = por %p347, %p348
      %p350 = scmp.ne.s32.totalorder %s339, %s340
      %p351 = scmp.eq.s32.totalorder %s31, 0
      %p352 = por %p350, %p351
      %p353 = scmp.ne.s32.totalorder %s339, %s340
      %p354 = scmp.eq.s32.totalorder %s32, 7
      %p355 = por %p353, %p354
      %p357 = scmp.ne.s32.totalorder %s340, %s356
      %p358 = scmp.eq.s32.totalorder %s32, 0
      %p359 = por %p357, %p358
      %p360 = scmp.le.s32.totalorder 1, %s26
      %p361 = scmp.lt.s32.totalorder %s26, 9
      %p362 = pnand %p360, %p361
      %p363 = pneg %p362
      // Predicated region
      $region9: #{tpu_custom_call.1} parent=5 // pred_check
        _
      $region10: #{tpu_custom_call.1} parent=5 // pred_check_branch
        %365 = sbr.rel (%p362) target = $region12
      $region11: #{tpu_custom_call.1} parent=5 // pred_region
        %s366 = ssub.s32 %s26, 1
        // Predicated region
        $region13: #{tpu_custom_call.1} parent=11 // pred_check
          %p367 = pneg %p94
        $region14: #{tpu_custom_call.1} parent=11 // pred_check_branch
          %369 = sbr.rel (%p367) target = $region16
        $region15: #{tpu_custom_call.1} parent=11 // pred_region
          %s371 = ssub.s32 128, 128
          %372 = vsyncadd [#allocation8], %s371
          %s373 = sshll.u32 [#allocation7], 4
          %s374 = int_to_ptr.vmem [resolvable:$true] %s373
          %379 = dma.hbm_to_vmem [thread:$0]  %s1, 128, %s374, [#allocation8], 64, 64, 4
        $region16: #{tpu_custom_call.1} parent=11 // pred_fallthru
          _
        // Predicated region
        $region17: #{tpu_custom_call.1} parent=11 // pred_check
          %p380 = pneg %p115
        $region18: #{tpu_custom_call.1} parent=11 // pred_check_branch
          %382 = sbr.rel (%p380) target = $region20
        $region19: #{tpu_custom_call.1} parent=11 // pred_region
          _
        $region20: #{tpu_custom_call.1} parent=11 // pred_fallthru
          _
        // Predicated region
        $region21: #{tpu_custom_call.1} parent=11 // pred_check
          %p383 = pneg %p136
        $region22: #{tpu_custom_call.1} parent=11 // pred_check_branch
          %385 = sbr.rel (%p383) target = $region24
        $region23: #{tpu_custom_call.1} parent=11 // pred_region
          _
        $region24: #{tpu_custom_call.1} parent=11 // pred_fallthru
          _
        // Predicated region
        $region25: #{tpu_custom_call.1} parent=11 // pred_check
          %p386 = pneg %p157
        $region26: #{tpu_custom_call.1} parent=11 // pred_check_branch
          %388 = sbr.rel (%p386) target = $region28
        $region27: #{tpu_custom_call.1} parent=11 // pred_region
          _
        $region28: #{tpu_custom_call.1} parent=11 // pred_fallthru
          _
        // Predicated region
        $region29: #{tpu_custom_call.1} parent=11 // pred_check
          %p389 = pneg %p282
        $region30: #{tpu_custom_call.1} parent=11 // pred_check_branch
          %391 = sbr.rel (%p389) target = $region32
        $region31: #{tpu_custom_call.1} parent=11 // pred_region
          %s393 = ssub.s32 1024, 1024
          %394 = vsyncadd [#allocation8], %s393
          %s395 = sshll.u32 [#allocation11], 4
          %s396 = int_to_ptr.vmem [resolvable:$true] %s395
          %401 = dma.hbm_to_vmem [thread:$0]  %s9, 1024, %s396, [#allocation8], 64, 64, 4
        $region32: #{tpu_custom_call.1} parent=11 // pred_fallthru
          _
        // Predicated region
        $region33: #{tpu_custom_call.1} parent=11 // pred_check
          %p402 = pneg %p303
        $region34: #{tpu_custom_call.1} parent=11 // pred_check_branch
          %404 = sbr.rel (%p402) target = $region36
        $region35: #{tpu_custom_call.1} parent=11 // pred_region
          %s406 = ssub.s32 1024, 1024
          %407 = vsyncadd [#allocation13], %s406
          %s408 = sshll.u32 [#allocation12], 4
          %s409 = int_to_ptr.vmem [resolvable:$true] %s408
          %414 = dma.hbm_to_vmem [thread:$0]  %s10, 1024, %s409, [#allocation13], 64, 64, 4
        $region36: #{tpu_custom_call.1} parent=11 // pred_fallthru
          _
        // Predicated region
        $region37: #{tpu_custom_call.1} parent=11 // pred_check
          %p415 = pneg %p324
        $region38: #{tpu_custom_call.1} parent=11 // pred_check_branch
          %417 = sbr.rel (%p415) target = $region40
        $region39: #{tpu_custom_call.1} parent=11 // pred_region
          _
        $region40: #{tpu_custom_call.1} parent=11 // pred_fallthru
          _
      $region12: #{tpu_custom_call.1} parent=5 // pred_fallthru
        _
      %p418 = scmp.lt.s32.totalorder %s26, 8
      // Predicated region
      $region41: #{tpu_custom_call.1} parent=5 // pred_check
        %p419 = pneg %p418
      $region42: #{tpu_custom_call.1} parent=5 // pred_check_branch
        %421 = sbr.rel (%p419) target = $region44
      $region43: #{tpu_custom_call.1} parent=5 // pred_region
        // Predicated region
        $region45: #{tpu_custom_call.1} parent=43 // pred_check
          %p422 = pneg %p67
        $region46: #{tpu_custom_call.1} parent=43 // pred_check_branch
          %424 = sbr.rel (%p422) target = $region48
        $region47: #{tpu_custom_call.1} parent=43 // pred_region
          %s425 = sand.u32 %s26, 1
          %s426 = scalar_lea.sflag [#allocation5], %s425
          %s427 = sand.u32 %s57, 1
          %s428 = smul.addr %s427, 96
          %s429 = scalar_lea.vmem [#allocation4], %s428
          %s431 = ssub.s32 1536, 1536
          %432 = vsyncadd %s426, %s431
          %s433 = smul.addr %s34, 24
          %s434 = smul.addr %s33, 48
          %s435 = sadd.s32 %s433, %s434
          %s436 = smul.addr %s435, 64
          %s437 = scalar_lea.hbm %s0, %s436
          %s438 = sshll.u32 %s429, 4
          %s439 = int_to_ptr.vmem [resolvable:$true] %s438
          %444 = dma.hbm_to_vmem [thread:$0]  %s437, 1536, %s439, %s426, 64, 64, 4
        $region48: #{tpu_custom_call.1} parent=43 // pred_fallthru
          _
        // Predicated region
        $region49: #{tpu_custom_call.1} parent=43 // pred_check
          %p445 = pneg %p177
        $region50: #{tpu_custom_call.1} parent=43 // pred_check_branch
          %447 = sbr.rel (%p445) target = $region52
        $region51: #{tpu_custom_call.1} parent=43 // pred_region
          %s448 = sand.u32 %s26, 1
          %s449 = scalar_lea.sflag [#allocation5], %s448
          %s450 = sand.u32 %s167, 1
          %s451 = smul.addr %s450, 64
          %s452 = scalar_lea.vmem [#allocation9], %s451
          %s454 = ssub.s32 1024, 1024
          %455 = vsyncadd %s449, %s454
          %s456 = smul.addr %s35, 16
          %s457 = smul.addr %s456, 64
          %s458 = scalar_lea.hbm %s5, %s457
          %s459 = sshll.u32 %s452, 4
          %s460 = int_to_ptr.vmem [resolvable:$true] %s459
          %465 = dma.hbm_to_vmem [thread:$0]  %s458, 1024, %s460, %s449, 64, 64, 4
        $region52: #{tpu_custom_call.1} parent=43 // pred_fallthru
          _
        // Predicated region
        $region53: #{tpu_custom_call.1} parent=43 // pred_check
          %p466 = pneg %p203
        $region54: #{tpu_custom_call.1} parent=43 // pred_check_branch
          %468 = sbr.rel (%p466) target = $region56
        $region55: #{tpu_custom_call.1} parent=43 // pred_region
          %p469 = scmp.lt.s32.totalorder %s35, 1
          %s470 = scalar_select %p469, %s35, 1
          %s471 = scalar_lea.vmem %s6, %s470
        $region56: #{tpu_custom_call.1} parent=43 // pred_fallthru
          _
        // Predicated region
        $region57: #{tpu_custom_call.1} parent=43 // pred_check
          %p472 = pneg %p229
        $region58: #{tpu_custom_call.1} parent=43 // pred_check_branch
          %474 = sbr.rel (%p472) target = $region60
        $region59: #{tpu_custom_call.1} parent=43 // pred_region
          %s475 = sand.u32 %s26, 1
          %s476 = scalar_lea.sflag [#allocation5], %s475
          %s477 = sand.u32 %s219, 1
          %s478 = smul.addr %s477, 576
          %s479 = scalar_lea.vmem [#allocation10], %s478
          %s481 = ssub.s32 9216, 9216
          %482 = vsyncadd %s476, %s481
          %s483 = smul.addr %s35, 144
          %s484 = smul.addr %s483, 64
          %s485 = scalar_lea.hbm %s7, %s484
          %s486 = sshll.u32 %s479, 4
          %s487 = int_to_ptr.vmem [resolvable:$true] %s486
          %492 = dma.hbm_to_vmem [thread:$0]  %s485, 9216, %s487, %s476, 64, 64, 4
        $region60: #{tpu_custom_call.1} parent=43 // pred_fallthru
          _
        // Predicated region
        $region61: #{tpu_custom_call.1} parent=43 // pred_check
          %p493 = pneg %p255
        $region62: #{tpu_custom_call.1} parent=43 // pred_check_branch
          %495 = sbr.rel (%p493) target = $region64
        $region63: #{tpu_custom_call.1} parent=43 // pred_region
          %p496 = scmp.lt.s32.totalorder %s35, 1
          %s497 = scalar_select %p496, %s35, 1
          %s498 = scalar_lea.vmem %s8, %s497
        $region64: #{tpu_custom_call.1} parent=43 // pred_fallthru
          _
      $region44: #{tpu_custom_call.1} parent=5 // pred_fallthru
        _
      %p499 = scmp.le.s32.totalorder 1, %s26
      %p500 = scmp.lt.s32.totalorder %s26, 9
      %p501 = pnand %p499, %p500
      %p502 = pneg %p501
      // Predicated region
      $region65: #{tpu_custom_call.1} parent=5 // pred_check
        _
      $region66: #{tpu_custom_call.1} parent=5 // pred_check_branch
        %504 = sbr.rel (%p501) target = $region68
      $region67: #{tpu_custom_call.1} parent=5 // pred_region
        %s505 = ssub.s32 %s26, 1
        %s506 = sand.u32 %s31, 1
        %s507 = scalar_lea.sflag [#allocation5], %s506
        %s508 = sand.u32 %s60, 1
        %s509 = smul.addr %s508, 96
        %s510 = scalar_lea.vmem [#allocation4], %s509
        // Predicated region
        $region69: #{tpu_custom_call.1} parent=67 // pred_check
          %p511 = pneg %p73
        $region70: #{tpu_custom_call.1} parent=67 // pred_check_branch
          %513 = sbr.rel (%p511) target = $region72
        $region71: #{tpu_custom_call.1} parent=67 // pred_region
          %514 = dma.done %s507, 1536
        $region72: #{tpu_custom_call.1} parent=67 // pred_fallthru
          _
        // Predicated region
        $region73: #{tpu_custom_call.1} parent=67 // pred_check
          %p515 = pneg %p94
        $region74: #{tpu_custom_call.1} parent=67 // pred_check_branch
          %517 = sbr.rel (%p515) target = $region76
        $region75: #{tpu_custom_call.1} parent=67 // pred_region
          %518 = dma.done [#allocation8], 128
        $region76: #{tpu_custom_call.1} parent=67 // pred_fallthru
          _
        %s519 = sand.u32 %s31, 1
        %s520 = scalar_lea.sflag [#allocation5], %s519
        %s521 = sand.u32 %s170, 1
        %s522 = smul.addr %s521, 64
        %s523 = scalar_lea.vmem [#allocation9], %s522
        // Predicated region
        $region77: #{tpu_custom_call.1} parent=67 // pred_check
          %p524 = pneg %p183
        $region78: #{tpu_custom_call.1} parent=67 // pred_check_branch
          %526 = sbr.rel (%p524) target = $region80
        $region79: #{tpu_custom_call.1} parent=67 // pred_region
          %527 = dma.done %s520, 1024
        $region80: #{tpu_custom_call.1} parent=67 // pred_fallthru
          _
        %s528 = sand.u32 %s31, 1
        %s529 = scalar_lea.sflag [#allocation5], %s528
        %s530 = sand.u32 %s222, 1
        %s531 = smul.addr %s530, 576
        %s532 = scalar_lea.vmem [#allocation10], %s531
        // Predicated region
        $region81: #{tpu_custom_call.1} parent=67 // pred_check
          %p533 = pneg %p235
        $region82: #{tpu_custom_call.1} parent=67 // pred_check_branch
          %535 = sbr.rel (%p533) target = $region84
        $region83: #{tpu_custom_call.1} parent=67 // pred_region
          %536 = dma.done %s529, 9216
        $region84: #{tpu_custom_call.1} parent=67 // pred_fallthru
          _
        // Predicated region
        $region85: #{tpu_custom_call.1} parent=67 // pred_check
          %p537 = pneg %p282
        $region86: #{tpu_custom_call.1} parent=67 // pred_check_branch
          %539 = sbr.rel (%p537) target = $region88
        $region87: #{tpu_custom_call.1} parent=67 // pred_region
          %540 = dma.done [#allocation8], 1024
        $region88: #{tpu_custom_call.1} parent=67 // pred_fallthru
          _
        // Predicated region
        $region89: #{tpu_custom_call.1} parent=67 // pred_check
          %p541 = pneg %p303
        $region90: #{tpu_custom_call.1} parent=67 // pred_check_branch
          %543 = sbr.rel (%p541) target = $region92
        $region91: #{tpu_custom_call.1} parent=67 // pred_region
          %544 = dma.done [#allocation13], 1024
        $region92: #{tpu_custom_call.1} parent=67 // pred_fallthru
          _
        %s545 = sand.u32 %s31, 1
        %s546 = scalar_lea.sflag [#allocation5], %s545
        %s547 = sand.u32 %s60, 1
        %s548 = smul.addr %s547, 96
        %s549 = scalar_lea.vmem [#allocation4], %s548
        %p550 = pneg %p73
        %p551 = pneg %p70
        %p552 = pneg %p94
        %p553 = pneg %p91
        %p554 = pneg %p115
        %p555 = pneg %p112
        %p556 = pneg %p136
        %p557 = pneg %p133
        %p558 = pneg %p157
        %p559 = pneg %p154
        %s560 = sand.u32 %s31, 1
        %s561 = scalar_lea.sflag [#allocation5], %s560
        %s562 = sand.u32 %s170, 1
        %s563 = smul.addr %s562, 64
        %s564 = scalar_lea.vmem [#allocation9], %s563
        %p565 = pneg %p183
        %p566 = pneg %p180
        %p567 = scmp.lt.s32.totalorder %s38, 1
        %s568 = scalar_select %p567, %s38, 1
        %s569 = scalar_lea.vmem %s6, %s568
        %p570 = pneg %p209
        %p571 = pneg %p206
        %s572 = sand.u32 %s31, 1
        %s573 = scalar_lea.sflag [#allocation5], %s572
        %s574 = sand.u32 %s222, 1
        %s575 = smul.addr %s574, 576
        %s576 = scalar_lea.vmem [#allocation10], %s575
        %p577 = pneg %p235
        %p578 = pneg %p232
        %p579 = scmp.lt.s32.totalorder %s38, 1
        %s580 = scalar_select %p579, %s38, 1
        %s581 = scalar_lea.vmem %s8, %s580
        %p582 = pneg %p261
        %p583 = pneg %p258
        %p584 = pneg %p282
        %p585 = pneg %p279
        %p586 = pneg %p303
        %p587 = pneg %p300
        %p588 = pneg %p324
        %p589 = pneg %p321
        %p590 = pneg %p352
        %p591 = pneg %p349
        %s592 = sand.u32 %s339, 1
        %s593 = scalar_lea.sflag [#allocation6], %s592
        %s594 = sand.u32 %s339, 1
        %s595 = smul.addr %s594, 64
        %s596 = scalar_lea.vmem [#allocation14], %s595
        %p597 = scmp.lt.s32.totalorder %s38, 1
        %s598 = scalar_select %p597, %s38, 1
        %s599 = scalar_lea.vmem %s6, %s598
        %p600 = scmp.lt.s32.totalorder %s38, 1
        %s601 = scalar_select %p600, %s38, 1
        %s602 = scalar_lea.vmem %s8, %s601
        %v606 = vlaneseq
        %v607 = vshrl.u32 %v606, 7
        %v608 = vadd.s32 %v607, 8
        %vm609 = vcmp.eq.s32.totalorder %v607, 0
        %vm610 = vcmp.eq.s32.totalorder %v608, 0
        %vm611 = vcmp.eq.s32.totalorder %v607, 15
        %vm612 = vcmp.eq.s32.totalorder %v608, 15
        %p613 = scmp.eq.s32.totalorder %s38, 0
        // Predicated region
        $region93: #{tpu_custom_call.1} parent=67 // pred_check
          %p614 = pneg %p613
        $region94: #{tpu_custom_call.1} parent=67 // pred_check_branch
          %616 = sbr.rel (%p614) target = $region96
        $region95: #{tpu_custom_call.1} parent=67 // pred_region
          %617 = vst [vmem:[#allocation3] sm:$0xff] 0
          %618 = vst [vmem:[#allocation3 + $0x8] sm:$0xff] 0
          %619 = vst [vmem:[#allocation3 + $0x70] sm:$0xff] 0
          %620 = vst [vmem:[#allocation3 + $0x78] sm:$0xff] 0
          %v621 = vld [vmem:[%s510] sm:$0xf]
          %v622 = vld [vmem:[%s510 + $0x4] sm:$0xf]
          %v623 = vld [vmem:[%s510 + $0x8] sm:$0xf]
          %v624 = vld [vmem:[%s510 + $0xc] sm:$0xf]
          %v625 = vld [vmem:[%s510 + $0x10] sm:$0xf]
          %v626 = vld [vmem:[%s510 + $0x14] sm:$0xf]
          %v627 = vld [vmem:[%s510 + $0x18] sm:$0xf]
          %v628 = vld [vmem:[%s510 + $0x1c] sm:$0xf]
          %v629 = vld [vmem:[%s510 + $0x20] sm:$0xf]
          %v630 = vld [vmem:[%s510 + $0x24] sm:$0xf]
          %v631 = vld [vmem:[%s510 + $0x28] sm:$0xf]
          %v632 = vld [vmem:[%s510 + $0x2c] sm:$0xf]
          %v633 = vld [vmem:[%s510 + $0x30] sm:$0xf]
          %v634 = vld [vmem:[%s510 + $0x34] sm:$0xf]
          %v635 = vld [vmem:[%s510 + $0x38] sm:$0xf]
          %v636 = vld [vmem:[%s510 + $0x3c] sm:$0xf]
          %v637 = vld [vmem:[%s510 + $0x40] sm:$0xf]
          %v638 = vld [vmem:[%s510 + $0x44] sm:$0xf]
          %v639 = vld [vmem:[%s510 + $0x48] sm:$0xf]
          %v640 = vld [vmem:[%s510 + $0x4c] sm:$0xf]
          %v641 = vld [vmem:[%s510 + $0x50] sm:$0xf]
          %v642 = vld [vmem:[%s510 + $0x54] sm:$0xf]
          %v643 = vld [vmem:[%s510 + $0x58] sm:$0xf]
          %v644 = vld [vmem:[%s510 + $0x5c] sm:$0xf]
          %v645 = vld [vmem:[#allocation7] sm:$0xf]
          %v646 = vld [vmem:[#allocation7 + $0x4] sm:$0xf]
          %v647 = vld [vmem:[%s2] sm:$0x1]
          %v649 = vlaneseq
          %v650 = vshrl.u32 %v649, 7
          %v651 = vsub.s32 0, %v650
          %v652 = vrot.slane %v647, %v651
          %v678 = vunpack.c.l.b16 %v621
          %v679 = vunpack.c.l.b16 %v622
          %v680 = vunpack.c.l.b16 %v623
          %v681 = vunpack.c.l.b16 %v624
          %v682 = vunpack.c.l.b16 %v625
          %v683 = vunpack.c.l.b16 %v626
          %v684 = vunpack.c.l.b16 %v627
          %v685 = vunpack.c.l.b16 %v628
          %v686 = vunpack.c.l.b16 %v629
          %v687 = vunpack.c.l.b16 %v630
          %v688 = vunpack.c.l.b16 %v631
          %v689 = vunpack.c.l.b16 %v632
          %v690 = vunpack.c.l.b16 %v633
          %v691 = vunpack.c.l.b16 %v634
          %v692 = vunpack.c.l.b16 %v635
          %v693 = vunpack.c.l.b16 %v636
          %v694 = vunpack.c.l.b16 %v637
          %v695 = vunpack.c.l.b16 %v638
          %v696 = vunpack.c.l.b16 %v639
          %v697 = vunpack.c.l.b16 %v640
          %v698 = vunpack.c.l.b16 %v641
          %v699 = vunpack.c.l.b16 %v642
          %v700 = vunpack.c.l.b16 %v643
          %v701 = vunpack.c.l.b16 %v644
          %v702 = vpack.c.b16 %v679, %v678
          %v703 = vpack.c.b16 %v681, %v680
          %v704 = vpack.c.b16 %v683, %v682
          %v705 = vpack.c.b16 %v685, %v684
          %v706 = vpack.c.b16 %v687, %v686
          %v707 = vpack.c.b16 %v689, %v688
          %v708 = vpack.c.b16 %v691, %v690
          %v709 = vpack.c.b16 %v693, %v692
          %v710 = vpack.c.b16 %v695, %v694
          %v711 = vpack.c.b16 %v697, %v696
          %v712 = vpack.c.b16 %v699, %v698
          %v713 = vpack.c.b16 %v701, %v700
          %v716 = vunpack.c.l.b16 %v645
          %v717 = vunpack.c.l.b16 %v646
          %v718 = vpack.c.b16 %v717, %v716
          %vm720 = vcmask 130048
          %v722 = vsel %vm720, %v702, 0
          %v725 = vsel %vm720, %v703, 0
          %v728 = vsel %vm720, %v704, 0
          %v731 = vsel %vm720, %v705, 0
          %v734 = vsel %vm720, %v706, 0
          %v737 = vsel %vm720, %v707, 0
          %v740 = vsel %vm720, %v708, 0
          %v743 = vsel %vm720, %v709, 0
          %v746 = vsel %vm720, %v710, 0
          %v749 = vsel %vm720, %v711, 0
          %v752 = vsel %vm720, %v712, 0
          %v755 = vsel %vm720, %v713, 0
          %757 = vmatprep.subr.bf16.mxu0 0
          %758 = vmatpush1.bf16.msra.mxu0 %v718
          %759 = vmatprep.subr.bf16.mxu0 0
          %760 = vmatpush1.bf16.msra.mxu0 0
          %761 = vmatprep.subr.bf16.mxu0 0
          %762 = vmatpush1.bf16.msra.mxu0 0
          %763 = vmatprep.subr.bf16.mxu0 0
          %764 = vmatpush1.bf16.msra.mxu0 0
          %765 = vmatprep.subr.bf16.mxu0 0
          %766 = vmatpush1.bf16.msra.mxu0 0
          %767 = vmatprep.subr.bf16.mxu0 0
          %768 = vmatpush1.bf16.msra.mxu0 0
          %769 = vmatprep.subr.bf16.mxu0 0
          %770 = vmatpush1.bf16.msra.mxu0 0
          %771 = vmatprep.subr.bf16.mxu0 0
          %772 = vmatpush1.bf16.msra.mxu0 0
          %773 = vmatprep.subr.bf16.mxu0 0
          %774 = vmatpush1.bf16.msra.mxu0 0
          %775 = vmatprep.subr.bf16.mxu0 0
          %776 = vmatpush1.bf16.msra.mxu0 0
          %777 = vmatprep.subr.bf16.mxu0 0
          %778 = vmatpush1.bf16.msra.mxu0 0
          %779 = vmatprep.subr.bf16.mxu0 0
          %780 = vmatpush1.bf16.msra.mxu0 0
          %781 = vmatprep.subr.bf16.mxu0 0
          %782 = vmatpush1.bf16.msra.mxu0 0
          %783 = vmatprep.subr.bf16.mxu0 0
          %784 = vmatpush1.bf16.msra.mxu0 0
          %785 = vmatprep.subr.bf16.mxu0 0
          %786 = vmatpush1.bf16.msra.mxu0 0
          %787 = vmatprep.subr.bf16.mxu0 0
          %788 = vmatpush1.bf16.msra.mxu0 0
          %789 = vmatprep.mubr.bf16.mxu0 0
          %790 = vmatmul.mubr.bf16.gmra.mrb[0].mxu0 %v722
          %v791 = vpop.f32.mrb[0].mxu0
          %v792 = vadd.f32 %v652, %v791
          %v793 = vpop.f32.mrb[0].mxu0
          %v794 = vpop.f32.mrb[0].mxu0
          %v795 = vadd.f32 %v652, %v794
          %v796 = vpop.f32.mrb[0].mxu0
          %797 = vmatprep.mubr.bf16.mxu0 0
          %798 = vmatmul.mubr.bf16.gmra.mrb[0].mxu0 %v725
          %v799 = vpop.f32.mrb[0].mxu0
          %v800 = vadd.f32 %v652, %v799
          %v801 = vpop.f32.mrb[0].mxu0
          %v802 = vpop.f32.mrb[0].mxu0
          %v803 = vadd.f32 %v652, %v802
          %v804 = vpop.f32.mrb[0].mxu0
          %805 = vmatprep.mubr.bf16.mxu0 0
          %806 = vmatmul.mubr.bf16.gmra.mrb[0].mxu0 %v728
          %v807 = vpop.f32.mrb[0].mxu0
          %v808 = vadd.f32 %v652, %v807
          %v809 = vpop.f32.mrb[0].mxu0
          %v810 = vpop.f32.mrb[0].mxu0
          %v811 = vadd.f32 %v652, %v810
          %v812 = vpop.f32.mrb[0].mxu0
          %813 = vmatprep.mubr.bf16.mxu0 0
          %814 = vmatmul.mubr.bf16.gmra.mrb[0].mxu0 %v731
          %v815 = vpop.f32.mrb[0].mxu0
          %v816 = vadd.f32 %v652, %v815
          %v817 = vpop.f32.mrb[0].mxu0
          %v818 = vpop.f32.mrb[0].mxu0
          %v819 = vadd.f32 %v652, %v818
          %v820 = vpop.f32.mrb[0].mxu0
          %821 = vmatprep.mubr.bf16.mxu0 0
          %822 = vmatmul.mubr.bf16.gmra.mrb[0].mxu0 %v734
          %v823 = vpop.f32.mrb[0].mxu0
          %v824 = vadd.f32 %v652, %v823
          %v825 = vpop.f32.mrb[0].mxu0
          %v826 = vpop.f32.mrb[0].mxu0
          %v827 = vadd.f32 %v652, %v826
          %v828 = vpop.f32.mrb[0].mxu0
          %829 = vmatprep.mubr.bf16.mxu0 0
          %830 = vmatmul.mubr.bf16.gmra.mrb[0].mxu0 %v737
          %v831 = vpop.f32.mrb[0].mxu0
          %v832 = vadd.f32 %v652, %v831
          %v833 = vpop.f32.mrb[0].mxu0
          %v834 = vpop.f32.mrb[0].mxu0
          %v835 = vadd.f32 %v652, %v834
          %v836 = vpop.f32.mrb[0].mxu0
          %837 = vmatprep.mubr.bf16.mxu0 0
          %838 = vmatmul.mubr.bf16.gmra.mrb[0].mxu0 %v740
          %v839 = vpop.f32.mrb[0].mxu0
          %v840 = vadd.f32 %v652, %v839
          %v841 = vpop.f32.mrb[0].mxu0
          %v842 = vpop.f32.mrb[0].mxu0
          %v843 = vadd.f32 %v652, %v842
          %v844 = vpop.f32.mrb[0].mxu0
          %845 = vmatprep.mubr.bf16.mxu0 0
          %846 = vmatmul.mubr.bf16.gmra.mrb[0].mxu0 %v743
          %v847 = vpop.f32.mrb[0].mxu0
          %v848 = vadd.f32 %v652, %v847
          %v849 = vpop.f32.mrb[0].mxu0
          %v850 = vpop.f32.mrb[0].mxu0
          %v851 = vadd.f32 %v652, %v850
          %v852 = vpop.f32.mrb[0].mxu0
          %853 = vmatprep.mubr.bf16.mxu0 0
          %854 = vmatmul.mubr.bf16.gmra.mrb[0].mxu0 %v746
          %v855 = vpop.f32.mrb[0].mxu0
          %v856 = vadd.f32 %v652, %v855
          %v857 = vpop.f32.mrb[0].mxu0
          %v858 = vpop.f32.mrb[0].mxu0
          %v859 = vadd.f32 %v652, %v858
          %v860 = vpop.f32.mrb[0].mxu0
          %861 = vmatprep.mubr.bf16.mxu0 0
          %862 = vmatmul.mubr.bf16.gmra.mrb[0].mxu0 %v749
          %v863 = vpop.f32.mrb[0].mxu0
          %v864 = vadd.f32 %v652, %v863
          %v865 = vpop.f32.mrb[0].mxu0
          %v866 = vpop.f32.mrb[0].mxu0
          %v867 = vadd.f32 %v652, %v866
          %v868 = vpop.f32.mrb[0].mxu0
          %869 = vmatprep.mubr.bf16.mxu0 0
          %870 = vmatmul.mubr.bf16.gmra.mrb[0].mxu0 %v752
          %v871 = vpop.f32.mrb[0].mxu0
          %v872 = vadd.f32 %v652, %v871
          %v873 = vpop.f32.mrb[0].mxu0
          %v874 = vpop.f32.mrb[0].mxu0
          %v875 = vadd.f32 %v652, %v874
          %v876 = vpop.f32.mrb[0].mxu0
          %877 = vmatprep.mubr.bf16.mxu0 0
          %878 = vmatmul.mubr.bf16.gmra.mrb[0].mxu0 %v755
          %v879 = vpop.f32.mrb[0].mxu0
          %v880 = vadd.f32 %v652, %v879
          %v881 = vpop.f32.mrb[0].mxu0
          %v882 = vpop.f32.mrb[0].mxu0
          %v883 = vadd.f32 %v652, %v882
          %v884 = vpop.f32.mrb[0].mxu0
          %885 = vdwg.mxu0
          %v886 = vsub.f32 0.0, %v792
          %v887 = vsub.f32 0.0, %v795
          %v888 = vsub.f32 0.0, %v800
          %v889 = vsub.f32 0.0, %v803
          %v890 = vsub.f32 0.0, %v808
          %v891 = vsub.f32 0.0, %v811
          %v892 = vsub.f32 0.0, %v816
          %v893 = vsub.f32 0.0, %v819
          %v894 = vsub.f32 0.0, %v824
          %v895 = vsub.f32 0.0, %v827
          %v896 = vsub.f32 0.0, %v832
          %v897 = vsub.f32 0.0, %v835
          %v898 = vsub.f32 0.0, %v840
          %v899 = vsub.f32 0.0, %v843
          %v900 = vsub.f32 0.0, %v848
          %v901 = vsub.f32 0.0, %v851
          %v902 = vsub.f32 0.0, %v856
          %v903 = vsub.f32 0.0, %v859
          %v904 = vsub.f32 0.0, %v864
          %v905 = vsub.f32 0.0, %v867
          %v906 = vsub.f32 0.0, %v872
          %v907 = vsub.f32 0.0, %v875
          %v908 = vsub.f32 0.0, %v880
          %v909 = vsub.f32 0.0, %v883
          %v910 = vmul.f32 %v886, 1.442695
          %v911 = vpow.pop %v910
          %v912 = vmul.f32 %v887, 1.442695
          %v913 = vpow.pop %v912
          %v914 = vmul.f32 %v888, 1.442695
          %v915 = vpow.pop %v914
          %v916 = vmul.f32 %v889, 1.442695
          %v917 = vpow.pop %v916
          %v918 = vmul.f32 %v890, 1.442695
          %v919 = vpow.pop %v918
          %v920 = vmul.f32 %v891, 1.442695
          %v921 = vpow.pop %v920
          %v922 = vmul.f32 %v892, 1.442695
          %v923 = vpow.pop %v922
          %v924 = vmul.f32 %v893, 1.442695
          %v925 = vpow.pop %v924
          %v926 = vmul.f32 %v894, 1.442695
          %v927 = vpow.pop %v926
          %v928 = vmul.f32 %v895, 1.442695
          %v929 = vpow.pop %v928
          %v930 = vmul.f32 %v896, 1.442695
          %v931 = vpow.pop %v930
          %v932 = vmul.f32 %v897, 1.442695
          %v933 = vpow.pop %v932
          %v934 = vmul.f32 %v898, 1.442695
          %v935 = vpow.pop %v934
          %v936 = vmul.f32 %v899, 1.442695
          %v937 = vpow.pop %v936
          %v938 = vmul.f32 %v900, 1.442695
          %v939 = vpow.pop %v938
          %v940 = vmul.f32 %v901, 1.442695
          %v941 = vpow.pop %v940
          %v942 = vmul.f32 %v902, 1.442695
          %v943 = vpow.pop %v942
          %v944 = vmul.f32 %v903, 1.442695
          %v945 = vpow.pop %v944
          %v946 = vmul.f32 %v904, 1.442695
          %v947 = vpow.pop %v946
          %v948 = vmul.f32 %v905, 1.442695
          %v949 = vpow.pop %v948
          %v950 = vmul.f32 %v906, 1.442695
          %v951 = vpow.pop %v950
          %v952 = vmul.f32 %v907, 1.442695
          %v953 = vpow.pop %v952
          %v954 = vmul.f32 %v908, 1.442695
          %v955 = vpow.pop %v954
          %v956 = vmul.f32 %v909, 1.442695
          %v957 = vpow.pop %v956
          %v958 = vadd.f32 %v911, 1.0
          %v959 = vadd.f32 %v913, 1.0
          %v960 = vadd.f32 %v915, 1.0
          %v961 = vadd.f32 %v917, 1.0
          %v962 = vadd.f32 %v919, 1.0
          %v963 = vadd.f32 %v921, 1.0
          %v964 = vadd.f32 %v923, 1.0
          %v965 = vadd.f32 %v925, 1.0
          %v966 = vadd.f32 %v927, 1.0
          %v967 = vadd.f32 %v929, 1.0
          %v968 = vadd.f32 %v931, 1.0
          %v969 = vadd.f32 %v933, 1.0
          %v970 = vadd.f32 %v935, 1.0
          %v971 = vadd.f32 %v937, 1.0
          %v972 = vadd.f32 %v939, 1.0
          %v973 = vadd.f32 %v941, 1.0
          %v974 = vadd.f32 %v943, 1.0
          %v975 = vadd.f32 %v945, 1.0
          %v976 = vadd.f32 %v947, 1.0
          %v977 = vadd.f32 %v949, 1.0
          %v978 = vadd.f32 %v951, 1.0
          %v979 = vadd.f32 %v953, 1.0
          %v980 = vadd.f32 %v955, 1.0
          %v981 = vadd.f32 %v957, 1.0
          %v982 = vrcp.pop %v958
          %v983 = vrcp.pop %v959
          %v984 = vrcp.pop %v960
          %v985 = vrcp.pop %v961
          %v986 = vrcp.pop %v962
          %v987 = vrcp.pop %v963
          %v988 = vrcp.pop %v964
          %v989 = vrcp.pop %v965
          %v990 = vrcp.pop %v966
          %v991 = vrcp.pop %v967
          %v992 = vrcp.pop %v968
          %v993 = vrcp.pop %v969
          %v994 = vrcp.pop %v970
          %v995 = vrcp.pop %v971
          %v996 = vrcp.pop %v972
          %v997 = vrcp.pop %v973
          %v998 = vrcp.pop %v974
          %v999 = vrcp.pop %v975
          %v1000 = vrcp.pop %v976
          %v1001 = vrcp.pop %v977
          %v1002 = vrcp.pop %v978
          %v1003 = vrcp.pop %v979
          %v1004 = vrcp.pop %v980
          %v1005 = vrcp.pop %v981
          %v1006 = vmul.f32 %v792, %v982
          %v1007 = vmul.f32 %v795, %v983
          %v1008 = vmul.f32 %v800, %v984
          %v1009 = vmul.f32 %v803, %v985
          %v1010 = vmul.f32 %v808, %v986
          %v1011 = vmul.f32 %v811, %v987
          %v1012 = vmul.f32 %v816, %v988
          %v1013 = vmul.f32 %v819, %v989
          %v1014 = vmul.f32 %v824, %v990
          %v1015 = vmul.f32 %v827, %v991
          %v1016 = vmul.f32 %v832, %v992
          %v1017 = vmul.f32 %v835, %v993
          %v1018 = vmul.f32 %v840, %v994
          %v1019 = vmul.f32 %v843, %v995
          %v1020 = vmul.f32 %v848, %v996
          %v1021 = vmul.f32 %v851, %v997
          %v1022 = vmul.f32 %v856, %v998
          %v1023 = vmul.f32 %v859, %v999
          %v1024 = vmul.f32 %v864, %v1000
          %v1025 = vmul.f32 %v867, %v1001
          %v1026 = vmul.f32 %v872, %v1002
          %v1027 = vmul.f32 %v875, %v1003
          %v1028 = vmul.f32 %v880, %v1004
          %v1029 = vmul.f32 %v883, %v1005
          %1030 = vst [vmem:[#allocation2] sm:$0xff] %v1006
          %1031 = vst [vmem:[#allocation2 + $0x8] sm:$0xff] %v1007
          %1032 = vst [vmem:[#allocation2 + $0x10] sm:$0xff] %v1008
          %1033 = vst [vmem:[#allocation2 + $0x18] sm:$0xff] %v1009
          %1034 = vst [vmem:[#allocation2 + $0x20] sm:$0xff] %v1010
          %1035 = vst [vmem:[#allocation2 + $0x28] sm:$0xff] %v1011
          %1036 = vst [vmem:[#allocation2 + $0x30] sm:$0xff] %v1012
          %1037 = vst [vmem:[#allocation2 + $0x38] sm:$0xff] %v1013
          %1038 = vst [vmem:[#allocation2 + $0x40] sm:$0xff] %v1014
          %1039 = vst [vmem:[#allocation2 + $0x48] sm:$0xff] %v1015
          %1040 = vst [vmem:[#allocation2 + $0x50] sm:$0xff] %v1016
          %1041 = vst [vmem:[#allocation2 + $0x58] sm:$0xff] %v1017
          %1042 = vst [vmem:[#allocation2 + $0x60] sm:$0xff] %v1018
          %1043 = vst [vmem:[#allocation2 + $0x68] sm:$0xff] %v1019
          %1044 = vst [vmem:[#allocation2 + $0x70] sm:$0xff] %v1020
          %1045 = vst [vmem:[#allocation2 + $0x78] sm:$0xff] %v1021
          %1046 = vst [vmem:[#allocation2 + $0x80] sm:$0xff] %v1022
          %1047 = vst [vmem:[#allocation2 + $0x88] sm:$0xff] %v1023
          %1048 = vst [vmem:[#allocation2 + $0x90] sm:$0xff] %v1024
          %1049 = vst [vmem:[#allocation2 + $0x98] sm:$0xff] %v1025
          %1050 = vst [vmem:[#allocation2 + $0xa0] sm:$0xff] %v1026
          %1051 = vst [vmem:[#allocation2 + $0xa8] sm:$0xff] %v1027
          %1052 = vst [vmem:[#allocation2 + $0xb0] sm:$0xff] %v1028
          %1053 = vst [vmem:[#allocation2 + $0xb8] sm:$0xff] %v1029
        $region96: #{tpu_custom_call.1} parent=67 // pred_fallthru
          _
        %v1054 = vld [vmem:[#allocation2] sm:$0xff]
        %v1055 = vld [vmem:[#allocation2 + $0x8] sm:$0xff]
        %v1056 = vld [vmem:[#allocation2 + $0x10] sm:$0xff]
        %v1057 = vld [vmem:[#allocation2 + $0x18] sm:$0xff]
        %v1058 = vld [vmem:[#allocation2 + $0x20] sm:$0xff]
        %v1059 = vld [vmem:[#allocation2 + $0x28] sm:$0xff]
        %v1060 = vld [vmem:[#allocation2 + $0x30] sm:$0xff]
        %v1061 = vld [vmem:[#allocation2 + $0x38] sm:$0xff]
        %v1062 = vld [vmem:[#allocation2 + $0x40] sm:$0xff]
        %v1063 = vld [vmem:[#allocation2 + $0x48] sm:$0xff]
        %v1064 = vld [vmem:[#allocation2 + $0x50] sm:$0xff]
        %v1065 = vld [vmem:[#allocation2 + $0x58] sm:$0xff]
        %v1066 = vld [vmem:[#allocation2 + $0x60] sm:$0xff]
        %v1067 = vld [vmem:[#allocation2 + $0x68] sm:$0xff]
        %v1068 = vld [vmem:[#allocation2 + $0x70] sm:$0xff]
        %v1069 = vld [vmem:[#allocation2 + $0x78] sm:$0xff]
        %v1070 = vld [vmem:[#allocation2 + $0x80] sm:$0xff]
        %v1071 = vld [vmem:[#allocation2 + $0x88] sm:$0xff]
        %v1072 = vld [vmem:[#allocation2 + $0x90] sm:$0xff]
        %v1073 = vld [vmem:[#allocation2 + $0x98] sm:$0xff]
        %v1074 = vld [vmem:[#allocation2 + $0xa0] sm:$0xff]
        %v1075 = vld [vmem:[#allocation2 + $0xa8] sm:$0xff]
        %v1076 = vld [vmem:[#allocation2 + $0xb0] sm:$0xff]
        %v1077 = vld [vmem:[#allocation2 + $0xb8] sm:$0xff]
        %v1078 = vpack.c.bf16 %v1055, %v1054
        %v1079 = vpack.c.bf16 %v1057, %v1056
        %v1080 = vpack.c.bf16 %v1059, %v1058
        %v1081 = vpack.c.bf16 %v1061, %v1060
        %v1082 = vpack.c.bf16 %v1063, %v1062
        %v1083 = vpack.c.bf16 %v1065, %v1064
        %v1084 = vpack.c.bf16 %v1067, %v1066
        %v1085 = vpack.c.bf16 %v1069, %v1068
        %v1086 = vpack.c.bf16 %v1071, %v1070
        %v1087 = vpack.c.bf16 %v1073, %v1072
        %v1088 = vpack.c.bf16 %v1075, %v1074
        %v1089 = vpack.c.bf16 %v1077, %v1076
        %v1090 = vld [vmem:[%s523] sm:$0xf]
        %v1091 = vld [vmem:[%s523 + $0x4] sm:$0xf]
        %v1092 = vld [vmem:[%s523 + $0x8] sm:$0xf]
        %v1093 = vld [vmem:[%s523 + $0xc] sm:$0xf]
        %v1094 = vld [vmem:[%s523 + $0x10] sm:$0xf]
        %v1095 = vld [vmem:[%s523 + $0x14] sm:$0xf]
        %v1096 = vld [vmem:[%s523 + $0x18] sm:$0xf]
        %v1097 = vld [vmem:[%s523 + $0x1c] sm:$0xf]
        %v1098 = vld [vmem:[%s523 + $0x20] sm:$0xf]
        %v1099 = vld [vmem:[%s523 + $0x24] sm:$0xf]
        %v1100 = vld [vmem:[%s523 + $0x28] sm:$0xf]
        %v1101 = vld [vmem:[%s523 + $0x2c] sm:$0xf]
        %v1102 = vld [vmem:[%s523 + $0x30] sm:$0xf]
        %v1103 = vld [vmem:[%s523 + $0x34] sm:$0xf]
        %v1104 = vld [vmem:[%s523 + $0x38] sm:$0xf]
        %v1105 = vld [vmem:[%s523 + $0x3c] sm:$0xf]
        %v1106 = vld [vmem:[%s599] sm:$0x1]
        %v1108 = vlaneseq
        %v1109 = vshrl.u32 %v1108, 7
        %v1110 = vsub.s32 0, %v1109
        %v1111 = vrot.slane %v1106, %v1110
        %v1129 = vunpack.c.l.b16 %v1090
        %v1130 = vunpack.c.l.b16 %v1091
        %v1131 = vunpack.c.l.b16 %v1092
        %v1132 = vunpack.c.l.b16 %v1093
        %v1133 = vunpack.c.l.b16 %v1094
        %v1134 = vunpack.c.l.b16 %v1095
        %v1135 = vunpack.c.l.b16 %v1096
        %v1136 = vunpack.c.l.b16 %v1097
        %v1137 = vunpack.c.l.b16 %v1098
        %v1138 = vunpack.c.l.b16 %v1099
        %v1139 = vunpack.c.l.b16 %v1100
        %v1140 = vunpack.c.l.b16 %v1101
        %v1141 = vunpack.c.l.b16 %v1102
        %v1142 = vunpack.c.l.b16 %v1103
        %v1143 = vunpack.c.l.b16 %v1104
        %v1144 = vunpack.c.l.b16 %v1105
        %v1145 = vpack.c.b16 %v1130, %v1129
        %v1146 = vpack.c.b16 %v1132, %v1131
        %v1147 = vpack.c.b16 %v1134, %v1133
        %v1148 = vpack.c.b16 %v1136, %v1135
        %v1149 = vpack.c.b16 %v1138, %v1137
        %v1150 = vpack.c.b16 %v1140, %v1139
        %v1151 = vpack.c.b16 %v1142, %v1141
        %v1152 = vpack.c.b16 %v1144, %v1143
        %1161 = vmatprep.subr.bf16.mxu0 0
        %1162 = vmatpush1.bf16.msra.mxu0 %v1145
        %1163 = vmatprep.subr.bf16.mxu0 0
        %1164 = vmatpush1.bf16.msra.mxu0 %v1146
        %1165 = vmatprep.subr.bf16.mxu0 0
        %1166 = vmatpush1.bf16.msra.mxu0 %v1147
        %1167 = vmatprep.subr.bf16.mxu0 0
        %1168 = vmatpush1.bf16.msra.mxu0 %v1148
        %1169 = vmatprep.subr.bf16.mxu0 0
        %1170 = vmatpush1.bf16.msra.mxu0 %v1149
        %1171 = vmatprep.subr.bf16.mxu0 0
        %1172 = vmatpush1.bf16.msra.mxu0 %v1150
        %1173 = vmatprep.subr.bf16.mxu0 0
        %1174 = vmatpush1.bf16.msra.mxu0 %v1151
        %1175 = vmatprep.subr.bf16.mxu0 0
        %1176 = vmatpush1.bf16.msra.mxu0 %v1152
        %1177 = vmatprep.subr.bf16.mxu0 0
        %1178 = vmatpush1.bf16.msra.mxu0 0
        %1179 = vmatprep.subr.bf16.mxu0 0
        %1180 = vmatpush1.bf16.msra.mxu0 0
        %1181 = vmatprep.subr.bf16.mxu0 0
        %1182 = vmatpush1.bf16.msra.mxu0 0
        %1183 = vmatprep.subr.bf16.mxu0 0
        %1184 = vmatpush1.bf16.msra.mxu0 0
        %1185 = vmatprep.subr.bf16.mxu0 0
        %1186 = vmatpush1.bf16.msra.mxu0 0
        %1187 = vmatprep.subr.bf16.mxu0 0
        %1188 = vmatpush1.bf16.msra.mxu0 0
        %1189 = vmatprep.subr.bf16.mxu0 0
        %1190 = vmatpush1.bf16.msra.mxu0 0
        %1191 = vmatprep.subr.bf16.mxu0 0
        %1192 = vmatpush1.bf16.msra.mxu0 0
        %1193 = vmatprep.mubr.bf16.mxu0 0
        %1194 = vmatmul.mubr.bf16.gmra.mrb[0].mxu0 %v1078
        %v1195 = vpop.f32.mrb[0].mxu0
        %v1196 = vadd.f32 %v1111, %v1195
        %v1197 = vpop.f32.mrb[0].mxu0
        %v1198 = vpop.f32.mrb[0].mxu0
        %v1199 = vadd.f32 %v1111, %v1198
        %v1200 = vpop.f32.mrb[0].mxu0
        %1201 = vmatprep.mubr.bf16.mxu0 0
        %1202 = vmatmul.mubr.bf16.gmra.mrb[0].mxu0 %v1079
        %v1203 = vpop.f32.mrb[0].mxu0
        %v1204 = vadd.f32 %v1111, %v1203
        %v1205 = vpop.f32.mrb[0].mxu0
        %v1206 = vpop.f32.mrb[0].mxu0
        %v1207 = vadd.f32 %v1111, %v1206
        %v1208 = vpop.f32.mrb[0].mxu0
        %1209 = vmatprep.mubr.bf16.mxu0 0
        %1210 = vmatmul.mubr.bf16.gmra.mrb[0].mxu0 %v1080
        %v1211 = vpop.f32.mrb[0].mxu0
        %v1212 = vadd.f32 %v1111, %v1211
        %v1213 = vpop.f32.mrb[0].mxu0
        %v1214 = vpop.f32.mrb[0].mxu0
        %v1215 = vadd.f32 %v1111, %v1214
        %v1216 = vpop.f32.mrb[0].mxu0
        %1217 = vmatprep.mubr.bf16.mxu0 0
        %1218 = vmatmul.mubr.bf16.gmra.mrb[0].mxu0 %v1081
        %v1219 = vpop.f32.mrb[0].mxu0
        %v1220 = vadd.f32 %v1111, %v1219
        %v1221 = vpop.f32.mrb[0].mxu0
        %v1222 = vpop.f32.mrb[0].mxu0
        %v1223 = vadd.f32 %v1111, %v1222
        %v1224 = vpop.f32.mrb[0].mxu0
        %1225 = vmatprep.mubr.bf16.mxu0 0
        %1226 = vmatmul.mubr.bf16.gmra.mrb[0].mxu0 %v1082
        %v1227 = vpop.f32.mrb[0].mxu0
        %v1228 = vadd.f32 %v1111, %v1227
        %v1229 = vpop.f32.mrb[0].mxu0
        %v1230 = vpop.f32.mrb[0].mxu0
        %v1231 = vadd.f32 %v1111, %v1230
        %v1232 = vpop.f32.mrb[0].mxu0
        %1233 = vmatprep.mubr.bf16.mxu0 0
        %1234 = vmatmul.mubr.bf16.gmra.mrb[0].mxu0 %v1083
        %v1235 = vpop.f32.mrb[0].mxu0
        %v1236 = vadd.f32 %v1111, %v1235
        %v1237 = vpop.f32.mrb[0].mxu0
        %v1238 = vpop.f32.mrb[0].mxu0
        %v1239 = vadd.f32 %v1111, %v1238
        %v1240 = vpop.f32.mrb[0].mxu0
        %1241 = vmatprep.mubr.bf16.mxu0 0
        %1242 = vmatmul.mubr.bf16.gmra.mrb[0].mxu0 %v1084
        %v1243 = vpop.f32.mrb[0].mxu0
        %v1244 = vadd.f32 %v1111, %v1243
        %v1245 = vpop.f32.mrb[0].mxu0
        %v1246 = vpop.f32.mrb[0].mxu0
        %v1247 = vadd.f32 %v1111, %v1246
        %v1248 = vpop.f32.mrb[0].mxu0
        %1249 = vmatprep.mubr.bf16.mxu0 0
        %1250 = vmatmul.mubr.bf16.gmra.mrb[0].mxu0 %v1085
        %v1251 = vpop.f32.mrb[0].mxu0
        %v1252 = vadd.f32 %v1111, %v1251
        %v1253 = vpop.f32.mrb[0].mxu0
        %v1254 = vpop.f32.mrb[0].mxu0
        %v1255 = vadd.f32 %v1111, %v1254
        %v1256 = vpop.f32.mrb[0].mxu0
        %1257 = vmatprep.mubr.bf16.mxu0 0
        %1258 = vmatmul.mubr.bf16.gmra.mrb[0].mxu0 %v1086
        %v1259 = vpop.f32.mrb[0].mxu0
        %v1260 = vadd.f32 %v1111, %v1259
        %v1261 = vpop.f32.mrb[0].mxu0
        %v1262 = vpop.f32.mrb[0].mxu0
        %v1263 = vadd.f32 %v1111, %v1262
        %v1264 = vpop.f32.mrb[0].mxu0
        %1265 = vmatprep.mubr.bf16.mxu0 0
        %1266 = vmatmul.mubr.bf16.gmra.mrb[0].mxu0 %v1087
        %v1267 = vpop.f32.mrb[0].mxu0
        %v1268 = vadd.f32 %v1111, %v1267
        %v1269 = vpop.f32.mrb[0].mxu0
        %v1270 = vpop.f32.mrb[0].mxu0
        %v1271 = vadd.f32 %v1111, %v1270
        %v1272 = vpop.f32.mrb[0].mxu0
        %1273 = vmatprep.mubr.bf16.mxu0 0
        %1274 = vmatmul.mubr.bf16.gmra.mrb[0].mxu0 %v1088
        %v1275 = vpop.f32.mrb[0].mxu0
        %v1276 = vadd.f32 %v1111, %v1275
        %v1277 = vpop.f32.mrb[0].mxu0
        %v1278 = vpop.f32.mrb[0].mxu0
        %v1279 = vadd.f32 %v1111, %v1278
        %v1280 = vpop.f32.mrb[0].mxu0
        %1281 = vmatprep.mubr.bf16.mxu0 0
        %1282 = vmatmul.mubr.bf16.gmra.mrb[0].mxu0 %v1089
        %v1283 = vpop.f32.mrb[0].mxu0
        %v1284 = vadd.f32 %v1111, %v1283
        %v1285 = vpop.f32.mrb[0].mxu0
        %v1286 = vpop.f32.mrb[0].mxu0
        %v1287 = vadd.f32 %v1111, %v1286
        %v1288 = vpop.f32.mrb[0].mxu0
        %1289 = vdwg.mxu0
        %v1290 = vsub.f32 0.0, %v1196
        %v1291 = vsub.f32 0.0, %v1199
        %v1292 = vsub.f32 0.0, %v1204
        %v1293 = vsub.f32 0.0, %v1207
        %v1294 = vsub.f32 0.0, %v1212
        %v1295 = vsub.f32 0.0, %v1215
        %v1296 = vsub.f32 0.0, %v1220
        %v1297 = vsub.f32 0.0, %v1223
        %v1298 = vsub.f32 0.0, %v1228
        %v1299 = vsub.f32 0.0, %v1231
        %v1300 = vsub.f32 0.0, %v1236
        %v1301 = vsub.f32 0.0, %v1239
        %v1302 = vsub.f32 0.0, %v1244
        %v1303 = vsub.f32 0.0, %v1247
        %v1304 = vsub.f32 0.0, %v1252
        %v1305 = vsub.f32 0.0, %v1255
        %v1306 = vsub.f32 0.0, %v1260
        %v1307 = vsub.f32 0.0, %v1263
        %v1308 = vsub.f32 0.0, %v1268
        %v1309 = vsub.f32 0.0, %v1271
        %v1310 = vsub.f32 0.0, %v1276
        %v1311 = vsub.f32 0.0, %v1279
        %v1312 = vsub.f32 0.0, %v1284
        %v1313 = vsub.f32 0.0, %v1287
        %v1314 = vmul.f32 %v1290, 1.442695
        %v1315 = vpow.pop %v1314
        %v1316 = vmul.f32 %v1291, 1.442695
        %v1317 = vpow.pop %v1316
        %v1318 = vmul.f32 %v1292, 1.442695
        %v1319 = vpow.pop %v1318
        %v1320 = vmul.f32 %v1293, 1.442695
        %v1321 = vpow.pop %v1320
        %v1322 = vmul.f32 %v1294, 1.442695
        %v1323 = vpow.pop %v1322
        %v1324 = vmul.f32 %v1295, 1.442695
        %v1325 = vpow.pop %v1324
        %v1326 = vmul.f32 %v1296, 1.442695
        %v1327 = vpow.pop %v1326
        %v1328 = vmul.f32 %v1297, 1.442695
        %v1329 = vpow.pop %v1328
        %v1330 = vmul.f32 %v1298, 1.442695
        %v1331 = vpow.pop %v1330
        %v1332 = vmul.f32 %v1299, 1.442695
        %v1333 = vpow.pop %v1332
        %v1334 = vmul.f32 %v1300, 1.442695
        %v1335 = vpow.pop %v1334
        %v1336 = vmul.f32 %v1301, 1.442695
        %v1337 = vpow.pop %v1336
        %v1338 = vmul.f32 %v1302, 1.442695
        %v1339 = vpow.pop %v1338
        %v1340 = vmul.f32 %v1303, 1.442695
        %v1341 = vpow.pop %v1340
        %v1342 = vmul.f32 %v1304, 1.442695
        %v1343 = vpow.pop %v1342
        %v1344 = vmul.f32 %v1305, 1.442695
        %v1345 = vpow.pop %v1344
        %v1346 = vmul.f32 %v1306, 1.442695
        %v1347 = vpow.pop %v1346
        %v1348 = vmul.f32 %v1307, 1.442695
        %v1349 = vpow.pop %v1348
        %v1350 = vmul.f32 %v1308, 1.442695
        %v1351 = vpow.pop %v1350
        %v1352 = vmul.f32 %v1309, 1.442695
        %v1353 = vpow.pop %v1352
        %v1354 = vmul.f32 %v1310, 1.442695
        %v1355 = vpow.pop %v1354
        %v1356 = vmul.f32 %v1311, 1.442695
        %v1357 = vpow.pop %v1356
        %v1358 = vmul.f32 %v1312, 1.442695
        %v1359 = vpow.pop %v1358
        %v1360 = vmul.f32 %v1313, 1.442695
        %v1361 = vpow.pop %v1360
        %v1362 = vadd.f32 %v1315, 1.0
        %v1363 = vadd.f32 %v1317, 1.0
        %v1364 = vadd.f32 %v1319, 1.0
        %v1365 = vadd.f32 %v1321, 1.0
        %v1366 = vadd.f32 %v1323, 1.0
        %v1367 = vadd.f32 %v1325, 1.0
        %v1368 = vadd.f32 %v1327, 1.0
        %v1369 = vadd.f32 %v1329, 1.0
        %v1370 = vadd.f32 %v1331, 1.0
        %v1371 = vadd.f32 %v1333, 1.0
        %v1372 = vadd.f32 %v1335, 1.0
        %v1373 = vadd.f32 %v1337, 1.0
        %v1374 = vadd.f32 %v1339, 1.0
        %v1375 = vadd.f32 %v1341, 1.0
        %v1376 = vadd.f32 %v1343, 1.0
        %v1377 = vadd.f32 %v1345, 1.0
        %v1378 = vadd.f32 %v1347, 1.0
        %v1379 = vadd.f32 %v1349, 1.0
        %v1380 = vadd.f32 %v1351, 1.0
        %v1381 = vadd.f32 %v1353, 1.0
        %v1382 = vadd.f32 %v1355, 1.0
        %v1383 = vadd.f32 %v1357, 1.0
        %v1384 = vadd.f32 %v1359, 1.0
        %v1385 = vadd.f32 %v1361, 1.0
        %v1386 = vrcp.pop %v1362
        %v1387 = vrcp.pop %v1363
        %v1388 = vrcp.pop %v1364
        %v1389 = vrcp.pop %v1365
        %v1390 = vrcp.pop %v1366
        %v1391 = vrcp.pop %v1367
        %v1392 = vrcp.pop %v1368
        %v1393 = vrcp.pop %v1369
        %v1394 = vrcp.pop %v1370
        %v1395 = vrcp.pop %v1371
        %v1396 = vrcp.pop %v1372
        %v1397 = vrcp.pop %v1373
        %v1398 = vrcp.pop %v1374
        %v1399 = vrcp.pop %v1375
        %v1400 = vrcp.pop %v1376
        %v1401 = vrcp.pop %v1377
        %v1402 = vrcp.pop %v1378
        %v1403 = vrcp.pop %v1379
        %v1404 = vrcp.pop %v1380
        %v1405 = vrcp.pop %v1381
        %v1406 = vrcp.pop %v1382
        %v1407 = vrcp.pop %v1383
        %v1408 = vrcp.pop %v1384
        %v1409 = vrcp.pop %v1385
        %v1410 = vmul.f32 %v1196, %v1386
        %v1411 = vmul.f32 %v1199, %v1387
        %v1412 = vmul.f32 %v1204, %v1388
        %v1413 = vmul.f32 %v1207, %v1389
        %v1414 = vmul.f32 %v1212, %v1390
        %v1415 = vmul.f32 %v1215, %v1391
        %v1416 = vmul.f32 %v1220, %v1392
        %v1417 = vmul.f32 %v1223, %v1393
        %v1418 = vmul.f32 %v1228, %v1394
        %v1419 = vmul.f32 %v1231, %v1395
        %v1420 = vmul.f32 %v1236, %v1396
        %v1421 = vmul.f32 %v1239, %v1397
        %v1422 = vmul.f32 %v1244, %v1398
        %v1423 = vmul.f32 %v1247, %v1399
        %v1424 = vmul.f32 %v1252, %v1400
        %v1425 = vmul.f32 %v1255, %v1401
        %v1426 = vmul.f32 %v1260, %v1402
        %v1427 = vmul.f32 %v1263, %v1403
        %v1428 = vmul.f32 %v1268, %v1404
        %v1429 = vmul.f32 %v1271, %v1405
        %v1430 = vmul.f32 %v1276, %v1406
        %v1431 = vmul.f32 %v1279, %v1407
        %v1432 = vmul.f32 %v1284, %v1408
        %v1433 = vmul.f32 %v1287, %v1409
        %v1434 = vpack.c.bf16 %v1411, %v1410
        %v1435 = vpack.c.bf16 %v1413, %v1412
        %v1436 = vpack.c.bf16 %v1415, %v1414
        %v1437 = vpack.c.bf16 %v1417, %v1416
        %v1438 = vpack.c.bf16 %v1419, %v1418
        %v1439 = vpack.c.bf16 %v1421, %v1420
        %v1440 = vpack.c.bf16 %v1423, %v1422
        %v1441 = vpack.c.bf16 %v1425, %v1424
        %v1442 = vpack.c.bf16 %v1427, %v1426
        %v1443 = vpack.c.bf16 %v1429, %v1428
        %v1444 = vpack.c.bf16 %v1431, %v1430
        %v1445 = vpack.c.bf16 %v1433, %v1432
        %1446 = vst [vmem:[#allocation3 + $0x10] sm:$0xff] %v1434
        %1447 = vst [vmem:[#allocation3 + $0x18] sm:$0xff] %v1435
        %1448 = vst [vmem:[#allocation3 + $0x20] sm:$0xff] %v1436
        %1449 = vst [vmem:[#allocation3 + $0x28] sm:$0xff] %v1437
        %1450 = vst [vmem:[#allocation3 + $0x30] sm:$0xff] %v1438
        %1451 = vst [vmem:[#allocation3 + $0x38] sm:$0xff] %v1439
        %1452 = vst [vmem:[#allocation3 + $0x40] sm:$0xff] %v1440
        %1453 = vst [vmem:[#allocation3 + $0x48] sm:$0xff] %v1441
        %1454 = vst [vmem:[#allocation3 + $0x50] sm:$0xff] %v1442
        %1455 = vst [vmem:[#allocation3 + $0x58] sm:$0xff] %v1443
        %1456 = vst [vmem:[#allocation3 + $0x60] sm:$0xff] %v1444
        %1457 = vst [vmem:[#allocation3 + $0x68] sm:$0xff] %v1445
        %p1458 = scmp.eq.s32.totalorder %s37, 0
        // Predicated region
        $region97: #{tpu_custom_call.1} parent=67 // pred_check
          %p1459 = pneg %p1458
        $region98: #{tpu_custom_call.1} parent=67 // pred_check_branch
          %1461 = sbr.rel (%p1459) target = $region100
        $region99: #{tpu_custom_call.1} parent=67 // pred_region
          %1462 = vst [vmem:[#allocation3 + $0x10] sm:$0xff] 0
          %1463 = vst [vmem:[#allocation3 + $0x18] sm:$0xff] 0
        $region100: #{tpu_custom_call.1} parent=67 // pred_fallthru
          _
        %p1464 = scmp.eq.s32.totalorder %s37, 1
        // Predicated region
        $region101: #{tpu_custom_call.1} parent=67 // pred_check
          %p1465 = pneg %p1464
        $region102: #{tpu_custom_call.1} parent=67 // pred_check_branch
          %1467 = sbr.rel (%p1465) target = $region104
        $region103: #{tpu_custom_call.1} parent=67 // pred_region
          %1468 = vst [vmem:[#allocation3 + $0x60] sm:$0xff] 0
          %1469 = vst [vmem:[#allocation3 + $0x68] sm:$0xff] 0
        $region104: #{tpu_custom_call.1} parent=67 // pred_fallthru
          _
        %v1470 = vld [vmem:[%s602] sm:$0x1]
        %v1472 = vlaneseq
        %v1473 = vshrl.u32 %v1472, 7
        %v1474 = vsub.s32 0, %v1473
        %v1475 = vrot.slane %v1470, %v1474
        %v1477 = vld [vmem:[#allocation3] sm:$0x80]
        %v1478 = vld [vmem:[#allocation3 + $0x8] sm:$0xff]
        %v1479 = vld [vmem:[#allocation3 + $0x10] sm:$0xff]
        %v1480 = vld [vmem:[#allocation3 + $0x18] sm:$0xff]
        %v1481 = vld [vmem:[#allocation3 + $0x20] sm:$0xff]
        %v1482 = vld [vmem:[#allocation3 + $0x28] sm:$0xff]
        %v1483 = vld [vmem:[#allocation3 + $0x30] sm:$0xff]
        %v1484 = vld [vmem:[#allocation3 + $0x38] sm:$0xff]
        %v1485 = vld [vmem:[#allocation3 + $0x40] sm:$0xff]
        %v1486 = vld [vmem:[#allocation3 + $0x48] sm:$0xff]
        %v1487 = vld [vmem:[#allocation3 + $0x50] sm:$0xff]
        %v1488 = vld [vmem:[#allocation3 + $0x58] sm:$0xff]
        %v1489 = vld [vmem:[#allocation3 + $0x60] sm:$0xff]
        %v1490 = vsel %vm609, 1, 0
        %v1491 = vsel %vm610, 1, 0
        %vm1492 = vcmp.eq.s32.totalorder %v1490, 1
        %vm1493 = vcmp.eq.s32.totalorder %v1491, 1
        %vm1494 = vmpackc.low %vm1492, %vm1492
        %vm1495 = vmpackc.low %vm1493, %vm1493
        %v1496 = vsel %vm1494, 65537, 0
        %v1497 = vsel %vm1495, 65537, 0
        %v1498 = vunpack.c.l.b16 %v1496
        %v1499 = vunpack.c.l.b16 %v1497
        %v1500 = vpack.c.b16 %v1499, %v1498
        %vm1501 = vsmask.f32 7424
        %v1503 = vshll.u32 %v1500, 16
        %v1505 = vrot.slane %v1503, 1
        %v1506 = vshrl.u32 %v1500, 16
        %v1508 = vor.u32 %v1506, %v1505
        %v1509 = vsel %vm1501, %v1508, %v1505
        %vm1510 = vcmp.ne.s16.totalorder %v1505, 0
        %vm1511 = vcmp.ne.s16.totalorder %v1509, 0
        %vm1512 = vcmp.ne.s16.totalorder %v1508, 0
        %v1513 = vsel %vm1510, 0, %v1477
        %v1514 = vsel %vm1511, 0, %v1478
        %v1515 = vsel %vm1511, 0, %v1479
        %v1516 = vsel %vm1511, 0, %v1480
        %v1517 = vsel %vm1511, 0, %v1481
        %v1518 = vsel %vm1511, 0, %v1482
        %v1519 = vsel %vm1511, 0, %v1483
        %v1520 = vsel %vm1511, 0, %v1484
        %v1521 = vsel %vm1511, 0, %v1485
        %v1522 = vsel %vm1511, 0, %v1486
        %v1523 = vsel %vm1511, 0, %v1487
        %v1524 = vsel %vm1511, 0, %v1488
        %v1525 = vsel %vm1512, 0, %v1489
        %v1526 = vld [vmem:[%s532] sm:$0xf]
        %v1527 = vld [vmem:[%s532 + $0x4] sm:$0xf]
        %v1528 = vld [vmem:[%s532 + $0x8] sm:$0xf]
        %v1529 = vld [vmem:[%s532 + $0xc] sm:$0xf]
        %v1530 = vld [vmem:[%s532 + $0x10] sm:$0xf]
        %v1531 = vld [vmem:[%s532 + $0x14] sm:$0xf]
        %v1532 = vld [vmem:[%s532 + $0x18] sm:$0xf]
        %v1533 = vld [vmem:[%s532 + $0x1c] sm:$0xf]
        %v1534 = vld [vmem:[%s532 + $0x20] sm:$0xf]
        %v1535 = vld [vmem:[%s532 + $0x24] sm:$0xf]
        %v1536 = vld [vmem:[%s532 + $0x28] sm:$0xf]
        %v1537 = vld [vmem:[%s532 + $0x2c] sm:$0xf]
        %v1538 = vld [vmem:[%s532 + $0x30] sm:$0xf]
        %v1539 = vld [vmem:[%s532 + $0x34] sm:$0xf]
        %v1540 = vld [vmem:[%s532 + $0x38] sm:$0xf]
        %v1541 = vld [vmem:[%s532 + $0x3c] sm:$0xf]
        %vm1542 = vsmask.f32 256
        %v1544 = vshrl.u32 %v1513, 16
        %v1546 = vrot.slane %v1544, 7
        %v1548 = vshrl.u32 %v1514, 16
        %v1550 = vrot.slane %v1548, 7
        %v1551 = vshll.u32 %v1514, 16
        %v1553 = vor.u32 %v1550, %v1551
        %v1554 = vsel %vm1542, %v1546, %v1553
        %v1556 = vshrl.u32 %v1515, 16
        %v1558 = vrot.slane %v1556, 7
        %v1559 = vshll.u32 %v1515, 16
        %v1561 = vor.u32 %v1558, %v1559
        %v1562 = vsel %vm1542, %v1550, %v1561
        %v1564 = vshrl.u32 %v1516, 16
        %v1566 = vrot.slane %v1564, 7
        %v1567 = vshll.u32 %v1516, 16
        %v1569 = vor.u32 %v1566, %v1567
        %v1570 = vsel %vm1542, %v1558, %v1569
        %v1572 = vshrl.u32 %v1517, 16
        %v1574 = vrot.slane %v1572, 7
        %v1575 = vshll.u32 %v1517, 16
        %v1577 = vor.u32 %v1574, %v1575
        %v1578 = vsel %vm1542, %v1566, %v1577
        %v1580 = vshrl.u32 %v1518, 16
        %v1582 = vrot.slane %v1580, 7
        %v1583 = vshll.u32 %v1518, 16
        %v1585 = vor.u32 %v1582, %v1583
        %v1586 = vsel %vm1542, %v1574, %v1585
        %v1588 = vshrl.u32 %v1519, 16
        %v1590 = vrot.slane %v1588, 7
        %v1591 = vshll.u32 %v1519, 16
        %v1593 = vor.u32 %v1590, %v1591
        %v1594 = vsel %vm1542, %v1582, %v1593
        %v1596 = vshrl.u32 %v1520, 16
        %v1598 = vrot.slane %v1596, 7
        %v1599 = vshll.u32 %v1520, 16
        %v1601 = vor.u32 %v1598, %v1599
        %v1602 = vsel %vm1542, %v1590, %v1601
        %v1604 = vshrl.u32 %v1521, 16
        %v1606 = vrot.slane %v1604, 7
        %v1607 = vshll.u32 %v1521, 16
        %v1609 = vor.u32 %v1606, %v1607
        %v1610 = vsel %vm1542, %v1598, %v1609
        %v1612 = vshrl.u32 %v1522, 16
        %v1614 = vrot.slane %v1612, 7
        %v1615 = vshll.u32 %v1522, 16
        %v1617 = vor.u32 %v1614, %v1615
        %v1618 = vsel %vm1542, %v1606, %v1617
        %v1620 = vshrl.u32 %v1523, 16
        %v1622 = vrot.slane %v1620, 7
        %v1623 = vshll.u32 %v1523, 16
        %v1625 = vor.u32 %v1622, %v1623
        %v1626 = vsel %vm1542, %v1614, %v1625
        %v1628 = vshrl.u32 %v1524, 16
        %v1630 = vrot.slane %v1628, 7
        %v1631 = vshll.u32 %v1524, 16
        %v1633 = vor.u32 %v1630, %v1631
        %v1634 = vsel %vm1542, %v1622, %v1633
        %v1636 = vshrl.u32 %v1525, 16
        %v1638 = vrot.slane %v1636, 7
        %v1639 = vshll.u32 %v1525, 16
        %v1641 = vor.u32 %v1638, %v1639
        %v1642 = vsel %vm1542, %v1630, %v1641
        %v1671 = vunpack.c.l.b16 %v1526
        %v1672 = vunpack.c.l.b16 %v1527
        %v1673 = vunpack.c.l.b16 %v1528
        %v1674 = vunpack.c.l.b16 %v1529
        %v1675 = vunpack.c.l.b16 %v1530
        %v1676 = vunpack.c.l.b16 %v1531
        %v1677 = vunpack.c.l.b16 %v1532
        %v1678 = vunpack.c.l.b16 %v1533
        %v1679 = vunpack.c.l.b16 %v1534
        %v1680 = vunpack.c.l.b16 %v1535
        %v1681 = vunpack.c.l.b16 %v1536
        %v1682 = vunpack.c.l.b16 %v1537
        %v1683 = vunpack.c.l.b16 %v1538
        %v1684 = vunpack.c.l.b16 %v1539
        %v1685 = vunpack.c.l.b16 %v1540
        %v1686 = vunpack.c.l.b16 %v1541
        %v1687 = vpack.c.b16 %v1672, %v1671
        %v1688 = vpack.c.b16 %v1674, %v1673
        %v1689 = vpack.c.b16 %v1676, %v1675
        %v1690 = vpack.c.b16 %v1678, %v1677
        %v1691 = vpack.c.b16 %v1680, %v1679
        %v1692 = vpack.c.b16 %v1682, %v1681
        %v1693 = vpack.c.b16 %v1684, %v1683
        %v1694 = vpack.c.b16 %v1686, %v1685
        %1703 = vmatprep.subr.bf16.mxu0 0
        %1704 = vmatpush1.bf16.msra.mxu0 %v1687
        %1705 = vmatprep.subr.bf16.mxu0 0
        %1706 = vmatpush1.bf16.msra.mxu0 %v1688
        %1707 = vmatprep.subr.bf16.mxu0 0
        %1708 = vmatpush1.bf16.msra.mxu0 %v1689
        %1709 = vmatprep.subr.bf16.mxu0 0
        %1710 = vmatpush1.bf16.msra.mxu0 %v1690
        %1711 = vmatprep.subr.bf16.mxu0 0
        %1712 = vmatpush1.bf16.msra.mxu0 %v1691
        %1713 = vmatprep.subr.bf16.mxu0 0
        %1714 = vmatpush1.bf16.msra.mxu0 %v1692
        %1715 = vmatprep.subr.bf16.mxu0 0
        %1716 = vmatpush1.bf16.msra.mxu0 %v1693
        %1717 = vmatprep.subr.bf16.mxu0 0
        %1718 = vmatpush1.bf16.msra.mxu0 %v1694
        %1719 = vmatprep.subr.bf16.mxu0 0
        %1720 = vmatpush1.bf16.msra.mxu0 0
        %1721 = vmatprep.subr.bf16.mxu0 0
        %1722 = vmatpush1.bf16.msra.mxu0 0
        %1723 = vmatprep.subr.bf16.mxu0 0
        %1724 = vmatpush1.bf16.msra.mxu0 0
        %1725 = vmatprep.subr.bf16.mxu0 0
        %1726 = vmatpush1.bf16.msra.mxu0 0
        %1727 = vmatprep.subr.bf16.mxu0 0
        %1728 = vmatpush1.bf16.msra.mxu0 0
        %1729 = vmatprep.subr.bf16.mxu0 0
        %1730 = vmatpush1.bf16.msra.mxu0 0
        %1731 = vmatprep.subr.bf16.mxu0 0
        %1732 = vmatpush1.bf16.msra.mxu0 0
        %1733 = vmatprep.subr.bf16.mxu0 0
        %1734 = vmatpush1.bf16.msra.mxu0 0
        %1735 = vmatprep.mubr.bf16.mxu0 0
        %1736 = vmatmul.mubr.bf16.gmra.mrb[0].mxu0 %v1554
        %v1737 = vpop.f32.mrb[0].mxu0
        %v1738 = vadd.f32 0.0, %v1737
        %v1739 = vpop.f32.mrb[0].mxu0
        %v1740 = vpop.f32.mrb[0].mxu0
        %v1741 = vadd.f32 0.0, %v1740
        %v1742 = vpop.f32.mrb[0].mxu0
        %1743 = vmatprep.mubr.bf16.mxu0 0
        %1744 = vmatmul.mubr.bf16.gmra.mrb[0].mxu0 %v1562
        %v1745 = vpop.f32.mrb[0].mxu0
        %v1746 = vadd.f32 0.0, %v1745
        %v1747 = vpop.f32.mrb[0].mxu0
        %v1748 = vpop.f32.mrb[0].mxu0
        %v1749 = vadd.f32 0.0, %v1748
        %v1750 = vpop.f32.mrb[0].mxu0
        %1751 = vmatprep.mubr.bf16.mxu0 0
        %1752 = vmatmul.mubr.bf16.gmra.mrb[0].mxu0 %v1570
        %v1753 = vpop.f32.mrb[0].mxu0
        %v1754 = vadd.f32 0.0, %v1753
        %v1755 = vpop.f32.mrb[0].mxu0
        %v1756 = vpop.f32.mrb[0].mxu0
        %v1757 = vadd.f32 0.0, %v1756
        %v1758 = vpop.f32.mrb[0].mxu0
        %1759 = vmatprep.mubr.bf16.mxu0 0
        %1760 = vmatmul.mubr.bf16.gmra.mrb[0].mxu0 %v1578
        %v1761 = vpop.f32.mrb[0].mxu0
        %v1762 = vadd.f32 0.0, %v1761
        %v1763 = vpop.f32.mrb[0].mxu0
        %v1764 = vpop.f32.mrb[0].mxu0
        %v1765 = vadd.f32 0.0, %v1764
        %v1766 = vpop.f32.mrb[0].mxu0
        %1767 = vmatprep.mubr.bf16.mxu0 0
        %1768 = vmatmul.mubr.bf16.gmra.mrb[0].mxu0 %v1586
        %v1769 = vpop.f32.mrb[0].mxu0
        %v1770 = vadd.f32 0.0, %v1769
        %v1771 = vpop.f32.mrb[0].mxu0
        %v1772 = vpop.f32.mrb[0].mxu0
        %v1773 = vadd.f32 0.0, %v1772
        %v1774 = vpop.f32.mrb[0].mxu0
        %1775 = vmatprep.mubr.bf16.mxu0 0
        %1776 = vmatmul.mubr.bf16.gmra.mrb[0].mxu0 %v1594
        %v1777 = vpop.f32.mrb[0].mxu0
        %v1778 = vadd.f32 0.0, %v1777
        %v1779 = vpop.f32.mrb[0].mxu0
        %v1780 = vpop.f32.mrb[0].mxu0
        %v1781 = vadd.f32 0.0, %v1780
        %v1782 = vpop.f32.mrb[0].mxu0
        %1783 = vmatprep.mubr.bf16.mxu0 0
        %1784 = vmatmul.mubr.bf16.gmra.mrb[0].mxu0 %v1602
        %v1785 = vpop.f32.mrb[0].mxu0
        %v1786 = vadd.f32 0.0, %v1785
        %v1787 = vpop.f32.mrb[0].mxu0
        %v1788 = vpop.f32.mrb[0].mxu0
        %v1789 = vadd.f32 0.0, %v1788
        %v1790 = vpop.f32.mrb[0].mxu0
        %1791 = vmatprep.mubr.bf16.mxu0 0
        %1792 = vmatmul.mubr.bf16.gmra.mrb[0].mxu0 %v1610
        %v1793 = vpop.f32.mrb[0].mxu0
        %v1794 = vadd.f32 0.0, %v1793
        %v1795 = vpop.f32.mrb[0].mxu0
        %v1796 = vpop.f32.mrb[0].mxu0
        %v1797 = vadd.f32 0.0, %v1796
        %v1798 = vpop.f32.mrb[0].mxu0
        %1799 = vmatprep.mubr.bf16.mxu0 0
        %1800 = vmatmul.mubr.bf16.gmra.mrb[0].mxu0 %v1618
        %v1801 = vpop.f32.mrb[0].mxu0
        %v1802 = vadd.f32 0.0, %v1801
        %v1803 = vpop.f32.mrb[0].mxu0
        %v1804 = vpop.f32.mrb[0].mxu0
        %v1805 = vadd.f32 0.0, %v1804
        %v1806 = vpop.f32.mrb[0].mxu0
        %1807 = vmatprep.mubr.bf16.mxu0 0
        %1808 = vmatmul.mubr.bf16.gmra.mrb[0].mxu0 %v1626
        %v1809 = vpop.f32.mrb[0].mxu0
        %v1810 = vadd.f32 0.0, %v1809
        %v1811 = vpop.f32.mrb[0].mxu0
        %v1812 = vpop.f32.mrb[0].mxu0
        %v1813 = vadd.f32 0.0, %v1812
        %v1814 = vpop.f32.mrb[0].mxu0
        %1815 = vmatprep.mubr.bf16.mxu0 0
        %1816 = vmatmul.mubr.bf16.gmra.mrb[0].mxu0 %v1634
        %v1817 = vpop.f32.mrb[0].mxu0
        %v1818 = vadd.f32 0.0, %v1817
        %v1819 = vpop.f32.mrb[0].mxu0
        %v1820 = vpop.f32.mrb[0].mxu0
        %v1821 = vadd.f32 0.0, %v1820
        %v1822 = vpop.f32.mrb[0].mxu0
        %1823 = vmatprep.mubr.bf16.mxu0 0
        %1824 = vmatmul.mubr.bf16.gmra.mrb[0].mxu0 %v1642
        %v1825 = vpop.f32.mrb[0].mxu0
        %v1826 = vadd.f32 0.0, %v1825
        %v1827 = vpop.f32.mrb[0].mxu0
        %v1828 = vpop.f32.mrb[0].mxu0
        %v1829 = vadd.f32 0.0, %v1828
        %v1830 = vpop.f32.mrb[0].mxu0
        %1831 = vdwg.mxu0
        %v1832 = vadd.f32 %v1475, %v1738
        %v1833 = vadd.f32 %v1475, %v1741
        %v1834 = vadd.f32 %v1475, %v1746
        %v1835 = vadd.f32 %v1475, %v1749
        %v1836 = vadd.f32 %v1475, %v1754
        %v1837 = vadd.f32 %v1475, %v1757
        %v1838 = vadd.f32 %v1475, %v1762
        %v1839 = vadd.f32 %v1475, %v1765
        %v1840 = vadd.f32 %v1475, %v1770
        %v1841 = vadd.f32 %v1475, %v1773
        %v1842 = vadd.f32 %v1475, %v1778
        %v1843 = vadd.f32 %v1475, %v1781
        %v1844 = vadd.f32 %v1475, %v1786
        %v1845 = vadd.f32 %v1475, %v1789
        %v1846 = vadd.f32 %v1475, %v1794
        %v1847 = vadd.f32 %v1475, %v1797
        %v1848 = vadd.f32 %v1475, %v1802
        %v1849 = vadd.f32 %v1475, %v1805
        %v1850 = vadd.f32 %v1475, %v1810
        %v1851 = vadd.f32 %v1475, %v1813
        %v1852 = vadd.f32 %v1475, %v1818
        %v1853 = vadd.f32 %v1475, %v1821
        %v1854 = vadd.f32 %v1475, %v1826
        %v1855 = vadd.f32 %v1475, %v1829
        %s1856 = scalar_lea.vmem %s532, 64 [#allocation10]
        %v1857 = vld [vmem:[%s1856] sm:$0xf]
        %v1858 = vld [vmem:[%s1856 + $0x4] sm:$0xf]
        %v1859 = vld [vmem:[%s1856 + $0x8] sm:$0xf]
        %v1860 = vld [vmem:[%s1856 + $0xc] sm:$0xf]
        %v1861 = vld [vmem:[%s1856 + $0x10] sm:$0xf]
        %v1862 = vld [vmem:[%s1856 + $0x14] sm:$0xf]
        %v1863 = vld [vmem:[%s1856 + $0x18] sm:$0xf]
        %v1864 = vld [vmem:[%s1856 + $0x1c] sm:$0xf]
        %v1865 = vld [vmem:[%s1856 + $0x20] sm:$0xf]
        %v1866 = vld [vmem:[%s1856 + $0x24] sm:$0xf]
        %v1867 = vld [vmem:[%s1856 + $0x28] sm:$0xf]
        %v1868 = vld [vmem:[%s1856 + $0x2c] sm:$0xf]
        %v1869 = vld [vmem:[%s1856 + $0x30] sm:$0xf]
        %v1870 = vld [vmem:[%s1856 + $0x34] sm:$0xf]
        %v1871 = vld [vmem:[%s1856 + $0x38] sm:$0xf]
        %v1872 = vld [vmem:[%s1856 + $0x3c] sm:$0xf]
        %v1889 = vunpack.c.l.b16 %v1857
        %v1890 = vunpack.c.l.b16 %v1858
        %v1891 = vunpack.c.l.b16 %v1859
        %v1892 = vunpack.c.l.b16 %v1860
        %v1893 = vunpack.c.l.b16 %v1861
        %v1894 = vunpack.c.l.b16 %v1862
        %v1895 = vunpack.c.l.b16 %v1863
        %v1896 = vunpack.c.l.b16 %v1864
        %v1897 = vunpack.c.l.b16 %v1865
        %v1898 = vunpack.c.l.b16 %v1866
        %v1899 = vunpack.c.l.b16 %v1867
        %v1900 = vunpack.c.l.b16 %v1868
        %v1901 = vunpack.c.l.b16 %v1869
        %v1902 = vunpack.c.l.b16 %v1870
        %v1903 = vunpack.c.l.b16 %v1871
        %v1904 = vunpack.c.l.b16 %v1872
        %v1905 = vpack.c.b16 %v1890, %v1889
        %v1906 = vpack.c.b16 %v1892, %v1891
        %v1907 = vpack.c.b16 %v1894, %v1893
        %v1908 = vpack.c.b16 %v1896, %v1895
        %v1909 = vpack.c.b16 %v1898, %v1897
        %v1910 = vpack.c.b16 %v1900, %v1899
        %v1911 = vpack.c.b16 %v1902, %v1901
        %v1912 = vpack.c.b16 %v1904, %v1903
        %1921 = vmatprep.subr.bf16.mxu0 0
        %1922 = vmatpush1.bf16.msra.mxu0 %v1905
        %1923 = vmatprep.subr.bf16.mxu0 0
        %1924 = vmatpush1.bf16.msra.mxu0 %v1906
        %1925 = vmatprep.subr.bf16.mxu0 0
        %1926 = vmatpush1.bf16.msra.mxu0 %v1907
        %1927 = vmatprep.subr.bf16.mxu0 0
        %1928 = vmatpush1.bf16.msra.mxu0 %v1908
        %1929 = vmatprep.subr.bf16.mxu0 0
        %1930 = vmatpush1.bf16.msra.mxu0 %v1909
        %1931 = vmatprep.subr.bf16.mxu0 0
        %1932 = vmatpush1.bf16.msra.mxu0 %v1910
        %1933 = vmatprep.subr.bf16.mxu0 0
        %1934 = vmatpush1.bf16.msra.mxu0 %v1911
        %1935 = vmatprep.subr.bf16.mxu0 0
        %1936 = vmatpush1.bf16.msra.mxu0 %v1912
        %1937 = vmatprep.subr.bf16.mxu0 0
        %1938 = vmatpush1.bf16.msra.mxu0 0
        %1939 = vmatprep.subr.bf16.mxu0 0
        %1940 = vmatpush1.bf16.msra.mxu0 0
        %1941 = vmatprep.subr.bf16.mxu0 0
        %1942 = vmatpush1.bf16.msra.mxu0 0
        %1943 = vmatprep.subr.bf16.mxu0 0
        %1944 = vmatpush1.bf16.msra.mxu0 0
        %1945 = vmatprep.subr.bf16.mxu0 0
        %1946 = vmatpush1.bf16.msra.mxu0 0
        %1947 = vmatprep.subr.bf16.mxu0 0
        %1948 = vmatpush1.bf16.msra.mxu0 0
        %1949 = vmatprep.subr.bf16.mxu0 0
        %1950 = vmatpush1.bf16.msra.mxu0 0
        %1951 = vmatprep.subr.bf16.mxu0 0
        %1952 = vmatpush1.bf16.msra.mxu0 0
        %1953 = vmatprep.mubr.bf16.mxu0 0
        %1954 = vmatmul.mubr.bf16.gmra.mrb[0].mxu0 %v1478
        %v1955 = vpop.f32.mrb[0].mxu0
        %v1956 = vadd.f32 0.0, %v1955
        %v1957 = vpop.f32.mrb[0].mxu0
        %v1958 = vpop.f32.mrb[0].mxu0
        %v1959 = vadd.f32 0.0, %v1958
        %v1960 = vpop.f32.mrb[0].mxu0
        %1961 = vmatprep.mubr.bf16.mxu0 0
        %1962 = vmatmul.mubr.bf16.gmra.mrb[0].mxu0 %v1479
        %v1963 = vpop.f32.mrb[0].mxu0
        %v1964 = vadd.f32 0.0, %v1963
        %v1965 = vpop.f32.mrb[0].mxu0
        %v1966 = vpop.f32.mrb[0].mxu0
        %v1967 = vadd.f32 0.0, %v1966
        %v1968 = vpop.f32.mrb[0].mxu0
        %1969 = vmatprep.mubr.bf16.mxu0 0
        %1970 = vmatmul.mubr.bf16.gmra.mrb[0].mxu0 %v1480
        %v1971 = vpop.f32.mrb[0].mxu0
        %v1972 = vadd.f32 0.0, %v1971
        %v1973 = vpop.f32.mrb[0].mxu0
        %v1974 = vpop.f32.mrb[0].mxu0
        %v1975 = vadd.f32 0.0, %v1974
        %v1976 = vpop.f32.mrb[0].mxu0
        %1977 = vmatprep.mubr.bf16.mxu0 0
        %1978 = vmatmul.mubr.bf16.gmra.mrb[0].mxu0 %v1481
        %v1979 = vpop.f32.mrb[0].mxu0
        %v1980 = vadd.f32 0.0, %v1979
        %v1981 = vpop.f32.mrb[0].mxu0
        %v1982 = vpop.f32.mrb[0].mxu0
        %v1983 = vadd.f32 0.0, %v1982
        %v1984 = vpop.f32.mrb[0].mxu0
        %1985 = vmatprep.mubr.bf16.mxu0 0
        %1986 = vmatmul.mubr.bf16.gmra.mrb[0].mxu0 %v1482
        %v1987 = vpop.f32.mrb[0].mxu0
        %v1988 = vadd.f32 0.0, %v1987
        %v1989 = vpop.f32.mrb[0].mxu0
        %v1990 = vpop.f32.mrb[0].mxu0
        %v1991 = vadd.f32 0.0, %v1990
        %v1992 = vpop.f32.mrb[0].mxu0
        %1993 = vmatprep.mubr.bf16.mxu0 0
        %1994 = vmatmul.mubr.bf16.gmra.mrb[0].mxu0 %v1483
        %v1995 = vpop.f32.mrb[0].mxu0
        %v1996 = vadd.f32 0.0, %v1995
        %v1997 = vpop.f32.mrb[0].mxu0
        %v1998 = vpop.f32.mrb[0].mxu0
        %v1999 = vadd.f32 0.0, %v1998
        %v2000 = vpop.f32.mrb[0].mxu0
        %2001 = vmatprep.mubr.bf16.mxu0 0
        %2002 = vmatmul.mubr.bf16.gmra.mrb[0].mxu0 %v1484
        %v2003 = vpop.f32.mrb[0].mxu0
        %v2004 = vadd.f32 0.0, %v2003
        %v2005 = vpop.f32.mrb[0].mxu0
        %v2006 = vpop.f32.mrb[0].mxu0
        %v2007 = vadd.f32 0.0, %v2006
        %v2008 = vpop.f32.mrb[0].mxu0
        %2009 = vmatprep.mubr.bf16.mxu0 0
        %2010 = vmatmul.mubr.bf16.gmra.mrb[0].mxu0 %v1485
        %v2011 = vpop.f32.mrb[0].mxu0
        %v2012 = vadd.f32 0.0, %v2011
        %v2013 = vpop.f32.mrb[0].mxu0
        %v2014 = vpop.f32.mrb[0].mxu0
        %v2015 = vadd.f32 0.0, %v2014
        %v2016 = vpop.f32.mrb[0].mxu0
        %2017 = vmatprep.mubr.bf16.mxu0 0
        %2018 = vmatmul.mubr.bf16.gmra.mrb[0].mxu0 %v1486
        %v2019 = vpop.f32.mrb[0].mxu0
        %v2020 = vadd.f32 0.0, %v2019
        %v2021 = vpop.f32.mrb[0].mxu0
        %v2022 = vpop.f32.mrb[0].mxu0
        %v2023 = vadd.f32 0.0, %v2022
        %v2024 = vpop.f32.mrb[0].mxu0
        %2025 = vmatprep.mubr.bf16.mxu0 0
        %2026 = vmatmul.mubr.bf16.gmra.mrb[0].mxu0 %v1487
        %v2027 = vpop.f32.mrb[0].mxu0
        %v2028 = vadd.f32 0.0, %v2027
        %v2029 = vpop.f32.mrb[0].mxu0
        %v2030 = vpop.f32.mrb[0].mxu0
        %v2031 = vadd.f32 0.0, %v2030
        %v2032 = vpop.f32.mrb[0].mxu0
        %2033 = vmatprep.mubr.bf16.mxu0 0
        %2034 = vmatmul.mubr.bf16.gmra.mrb[0].mxu0 %v1488
        %v2035 = vpop.f32.mrb[0].mxu0
        %v2036 = vadd.f32 0.0, %v2035
        %v2037 = vpop.f32.mrb[0].mxu0
        %v2038 = vpop.f32.mrb[0].mxu0
        %v2039 = vadd.f32 0.0, %v2038
        %v2040 = vpop.f32.mrb[0].mxu0
        %2041 = vmatprep.mubr.bf16.mxu0 0
        %2042 = vmatmul.mubr.bf16.gmra.mrb[0].mxu0 %v1489
        %v2043 = vpop.f32.mrb[0].mxu0
        %v2044 = vadd.f32 0.0, %v2043
        %v2045 = vpop.f32.mrb[0].mxu0
        %v2046 = vpop.f32.mrb[0].mxu0
        %v2047 = vadd.f32 0.0, %v2046
        %v2048 = vpop.f32.mrb[0].mxu0
        %2049 = vdwg.mxu0
        %v2050 = vadd.f32 %v1832, %v1956
        %v2051 = vadd.f32 %v1833, %v1959
        %v2052 = vadd.f32 %v1834, %v1964
        %v2053 = vadd.f32 %v1835, %v1967
        %v2054 = vadd.f32 %v1836, %v1972
        %v2055 = vadd.f32 %v1837, %v1975
        %v2056 = vadd.f32 %v1838, %v1980
        %v2057 = vadd.f32 %v1839, %v1983
        %v2058 = vadd.f32 %v1840, %v1988
        %v2059 = vadd.f32 %v1841, %v1991
        %v2060 = vadd.f32 %v1842, %v1996
        %v2061 = vadd.f32 %v1843, %v1999
        %v2062 = vadd.f32 %v1844, %v2004
        %v2063 = vadd.f32 %v1845, %v2007
        %v2064 = vadd.f32 %v1846, %v2012
        %v2065 = vadd.f32 %v1847, %v2015
        %v2066 = vadd.f32 %v1848, %v2020
        %v2067 = vadd.f32 %v1849, %v2023
        %v2068 = vadd.f32 %v1850, %v2028
        %v2069 = vadd.f32 %v1851, %v2031
        %v2070 = vadd.f32 %v1852, %v2036
        %v2071 = vadd.f32 %v1853, %v2039
        %v2072 = vadd.f32 %v1854, %v2044
        %v2073 = vadd.f32 %v1855, %v2047
        %v2074 = vld [vmem:[#allocation3 + $0x8] sm:$0xff]
        %v2075 = vld [vmem:[#allocation3 + $0x10] sm:$0xff]
        %v2076 = vld [vmem:[#allocation3 + $0x18] sm:$0xff]
        %v2077 = vld [vmem:[#allocation3 + $0x20] sm:$0xff]
        %v2078 = vld [vmem:[#allocation3 + $0x28] sm:$0xff]
        %v2079 = vld [vmem:[#allocation3 + $0x30] sm:$0xff]
        %v2080 = vld [vmem:[#allocation3 + $0x38] sm:$0xff]
        %v2081 = vld [vmem:[#allocation3 + $0x40] sm:$0xff]
        %v2082 = vld [vmem:[#allocation3 + $0x48] sm:$0xff]
        %v2083 = vld [vmem:[#allocation3 + $0x50] sm:$0xff]
        %v2084 = vld [vmem:[#allocation3 + $0x58] sm:$0xff]
        %v2085 = vld [vmem:[#allocation3 + $0x60] sm:$0xff]
        %v2086 = vld [vmem:[#allocation3 + $0x68] sm:$0x1]
        %v2087 = vsel %vm611, 1, 0
        %v2088 = vsel %vm612, 1, 0
        %vm2089 = vcmp.eq.s32.totalorder %v2087, 1
        %vm2090 = vcmp.eq.s32.totalorder %v2088, 1
        %vm2091 = vmpackc.low %vm2089, %vm2089
        %vm2092 = vmpackc.low %vm2090, %vm2090
        %v2093 = vsel %vm2091, 65537, 0
        %v2094 = vsel %vm2092, 65537, 0
        %v2095 = vunpack.c.l.b16 %v2093
        %v2096 = vunpack.c.l.b16 %v2094
        %v2097 = vpack.c.b16 %v2096, %v2095
        %v2099 = vshrl.u32 %v2097, 16
        %v2101 = vrot.slane %v2099, 7
        %v2102 = vshll.u32 %v2097, 16
        %v2104 = vor.u32 %v2101, %v2102
        %v2105 = vsel %vm1542, %v2101, %v2104
        %vm2106 = vcmp.ne.s16.totalorder %v2104, 0
        %vm2107 = vcmp.ne.s16.totalorder %v2105, 0
        %vm2108 = vcmp.ne.s16.totalorder %v2101, 0
        %v2109 = vsel %vm2106, 0, %v2074
        %v2110 = vsel %vm2107, 0, %v2075
        %v2111 = vsel %vm2107, 0, %v2076
        %v2112 = vsel %vm2107, 0, %v2077
        %v2113 = vsel %vm2107, 0, %v2078
        %v2114 = vsel %vm2107, 0, %v2079
        %v2115 = vsel %vm2107, 0, %v2080
        %v2116 = vsel %vm2107, 0, %v2081
        %v2117 = vsel %vm2107, 0, %v2082
        %v2118 = vsel %vm2107, 0, %v2083
        %v2119 = vsel %vm2107, 0, %v2084
        %v2120 = vsel %vm2107, 0, %v2085
        %v2121 = vsel %vm2108, 0, %v2086
        %s2122 = scalar_lea.vmem %s532, 128 [#allocation10]
        %v2123 = vld [vmem:[%s2122] sm:$0xf]
        %v2124 = vld [vmem:[%s2122 + $0x4] sm:$0xf]
        %v2125 = vld [vmem:[%s2122 + $0x8] sm:$0xf]
        %v2126 = vld [vmem:[%s2122 + $0xc] sm:$0xf]
        %v2127 = vld [vmem:[%s2122 + $0x10] sm:$0xf]
        %v2128 = vld [vmem:[%s2122 + $0x14] sm:$0xf]
        %v2129 = vld [vmem:[%s2122 + $0x18] sm:$0xf]
        %v2130 = vld [vmem:[%s2122 + $0x1c] sm:$0xf]
        %v2131 = vld [vmem:[%s2122 + $0x20] sm:$0xf]
        %v2132 = vld [vmem:[%s2122 + $0x24] sm:$0xf]
        %v2133 = vld [vmem:[%s2122 + $0x28] sm:$0xf]
        %v2134 = vld [vmem:[%s2122 + $0x2c] sm:$0xf]
        %v2135 = vld [vmem:[%s2122 + $0x30] sm:$0xf]
        %v2136 = vld [vmem:[%s2122 + $0x34] sm:$0xf]
        %v2137 = vld [vmem:[%s2122 + $0x38] sm:$0xf]
        %v2138 = vld [vmem:[%s2122 + $0x3c] sm:$0xf]
        %v2140 = vshrl.u32 %v2109, 16
        %v2142 = vshll.u32 %v2109, 16
        %v2144 = vrot.slane %v2142, 1
        %v2145 = vor.u32 %v2140, %v2144
        %v2147 = vshll.u32 %v2110, 16
        %v2149 = vrot.slane %v2147, 1
        %v2150 = vsel %vm1501, %v2145, %v2149
        %v2151 = vshrl.u32 %v2110, 16
        %v2153 = vor.u32 %v2151, %v2149
        %v2155 = vshll.u32 %v2111, 16
        %v2157 = vrot.slane %v2155, 1
        %v2158 = vsel %vm1501, %v2153, %v2157
        %v2159 = vshrl.u32 %v2111, 16
        %v2161 = vor.u32 %v2159, %v2157
        %v2163 = vshll.u32 %v2112, 16
        %v2165 = vrot.slane %v2163, 1
        %v2166 = vsel %vm1501, %v2161, %v2165
        %v2167 = vshrl.u32 %v2112, 16
        %v2169 = vor.u32 %v2167, %v2165
        %v2171 = vshll.u32 %v2113, 16
        %v2173 = vrot.slane %v2171, 1
        %v2174 = vsel %vm1501, %v2169, %v2173
        %v2175 = vshrl.u32 %v2113, 16
        %v2177 = vor.u32 %v2175, %v2173
        %v2179 = vshll.u32 %v2114, 16
        %v2181 = vrot.slane %v2179, 1
        %v2182 = vsel %vm1501, %v2177, %v2181
        %v2183 = vshrl.u32 %v2114, 16
        %v2185 = vor.u32 %v2183, %v2181
        %v2187 = vshll.u32 %v2115, 16
        %v2189 = vrot.slane %v2187, 1
        %v2190 = vsel %vm1501, %v2185, %v2189
        %v2191 = vshrl.u32 %v2115, 16
        %v2193 = vor.u32 %v2191, %v2189
        %v2195 = vshll.u32 %v2116, 16
        %v2197 = vrot.slane %v2195, 1
        %v2198 = vsel %vm1501, %v2193, %v2197
        %v2199 = vshrl.u32 %v2116, 16
        %v2201 = vor.u32 %v2199, %v2197
        %v2203 = vshll.u32 %v2117, 16
        %v2205 = vrot.slane %v2203, 1
        %v2206 = vsel %vm1501, %v2201, %v2205
        %v2207 = vshrl.u32 %v2117, 16
        %v2209 = vor.u32 %v2207, %v2205
        %v2211 = vshll.u32 %v2118, 16
        %v2213 = vrot.slane %v2211, 1
        %v2214 = vsel %vm1501, %v2209, %v2213
        %v2215 = vshrl.u32 %v2118, 16
        %v2217 = vor.u32 %v2215, %v2213
        %v2219 = vshll.u32 %v2119, 16
        %v2221 = vrot.slane %v2219, 1
        %v2222 = vsel %vm1501, %v2217, %v2221
        %v2223 = vshrl.u32 %v2119, 16
        %v2225 = vor.u32 %v2223, %v2221
        %v2227 = vshll.u32 %v2120, 16
        %v2229 = vrot.slane %v2227, 1
        %v2230 = vsel %vm1501, %v2225, %v2229
        %v2231 = vshrl.u32 %v2120, 16
        %v2233 = vor.u32 %v2231, %v2229
        %v2235 = vshll.u32 %v2121, 16
        %v2237 = vrot.slane %v2235, 1
        %v2238 = vsel %vm1501, %v2233, %v2237
        %v2267 = vunpack.c.l.b16 %v2123
        %v2268 = vunpack.c.l.b16 %v2124
        %v2269 = vunpack.c.l.b16 %v2125
        %v2270 = vunpack.c.l.b16 %v2126
        %v2271 = vunpack.c.l.b16 %v2127
        %v2272 = vunpack.c.l.b16 %v2128
        %v2273 = vunpack.c.l.b16 %v2129
        %v2274 = vunpack.c.l.b16 %v2130
        %v2275 = vunpack.c.l.b16 %v2131
        %v2276 = vunpack.c.l.b16 %v2132
        %v2277 = vunpack.c.l.b16 %v2133
        %v2278 = vunpack.c.l.b16 %v2134
        %v2279 = vunpack.c.l.b16 %v2135
        %v2280 = vunpack.c.l.b16 %v2136
        %v2281 = vunpack.c.l.b16 %v2137
        %v2282 = vunpack.c.l.b16 %v2138
        %v2283 = vpack.c.b16 %v2268, %v2267
        %v2284 = vpack.c.b16 %v2270, %v2269
        %v2285 = vpack.c.b16 %v2272, %v2271
        %v2286 = vpack.c.b16 %v2274, %v2273
        %v2287 = vpack.c.b16 %v2276, %v2275
        %v2288 = vpack.c.b16 %v2278, %v2277
        %v2289 = vpack.c.b16 %v2280, %v2279
        %v2290 = vpack.c.b16 %v2282, %v2281
        %2299 = vmatprep.subr.bf16.mxu0 0
        %2300 = vmatpush1.bf16.msra.mxu0 %v2283
        %2301 = vmatprep.subr.bf16.mxu0 0
        %2302 = vmatpush1.bf16.msra.mxu0 %v2284
        %2303 = vmatprep.subr.bf16.mxu0 0
        %2304 = vmatpush1.bf16.msra.mxu0 %v2285
        %2305 = vmatprep.subr.bf16.mxu0 0
        %2306 = vmatpush1.bf16.msra.mxu0 %v2286
        %2307 = vmatprep.subr.bf16.mxu0 0
        %2308 = vmatpush1.bf16.msra.mxu0 %v2287
        %2309 = vmatprep.subr.bf16.mxu0 0
        %2310 = vmatpush1.bf16.msra.mxu0 %v2288
        %2311 = vmatprep.subr.bf16.mxu0 0
        %2312 = vmatpush1.bf16.msra.mxu0 %v2289
        %2313 = vmatprep.subr.bf16.mxu0 0
        %2314 = vmatpush1.bf16.msra.mxu0 %v2290
        %2315 = vmatprep.subr.bf16.mxu0 0
        %2316 = vmatpush1.bf16.msra.mxu0 0
        %2317 = vmatprep.subr.bf16.mxu0 0
        %2318 = vmatpush1.bf16.msra.mxu0 0
        %2319 = vmatprep.subr.bf16.mxu0 0
        %2320 = vmatpush1.bf16.msra.mxu0 0
        %2321 = vmatprep.subr.bf16.mxu0 0
        %2322 = vmatpush1.bf16.msra.mxu0 0
        %2323 = vmatprep.subr.bf16.mxu0 0
        %2324 = vmatpush1.bf16.msra.mxu0 0
        %2325 = vmatprep.subr.bf16.mxu0 0
        %2326 = vmatpush1.bf16.msra.mxu0 0
        %2327 = vmatprep.subr.bf16.mxu0 0
        %2328 = vmatpush1.bf16.msra.mxu0 0
        %2329 = vmatprep.subr.bf16.mxu0 0
        %2330 = vmatpush1.bf16.msra.mxu0 0
        %2331 = vmatprep.mubr.bf16.mxu0 0
        %2332 = vmatmul.mubr.bf16.gmra.mrb[0].mxu0 %v2150
        %v2333 = vpop.f32.mrb[0].mxu0
        %v2334 = vadd.f32 0.0, %v2333
        %v2335 = vpop.f32.mrb[0].mxu0
        %v2336 = vpop.f32.mrb[0].mxu0
        %v2337 = vadd.f32 0.0, %v2336
        %v2338 = vpop.f32.mrb[0].mxu0
        %2339 = vmatprep.mubr.bf16.mxu0 0
        %2340 = vmatmul.mubr.bf16.gmra.mrb[0].mxu0 %v2158
        %v2341 = vpop.f32.mrb[0].mxu0
        %v2342 = vadd.f32 0.0, %v2341
        %v2343 = vpop.f32.mrb[0].mxu0
        %v2344 = vpop.f32.mrb[0].mxu0
        %v2345 = vadd.f32 0.0, %v2344
        %v2346 = vpop.f32.mrb[0].mxu0
        %2347 = vmatprep.mubr.bf16.mxu0 0
        %2348 = vmatmul.mubr.bf16.gmra.mrb[0].mxu0 %v2166
        %v2349 = vpop.f32.mrb[0].mxu0
        %v2350 = vadd.f32 0.0, %v2349
        %v2351 = vpop.f32.mrb[0].mxu0
        %v2352 = vpop.f32.mrb[0].mxu0
        %v2353 = vadd.f32 0.0, %v2352
        %v2354 = vpop.f32.mrb[0].mxu0
        %2355 = vmatprep.mubr.bf16.mxu0 0
        %2356 = vmatmul.mubr.bf16.gmra.mrb[0].mxu0 %v2174
        %v2357 = vpop.f32.mrb[0].mxu0
        %v2358 = vadd.f32 0.0, %v2357
        %v2359 = vpop.f32.mrb[0].mxu0
        %v2360 = vpop.f32.mrb[0].mxu0
        %v2361 = vadd.f32 0.0, %v2360
        %v2362 = vpop.f32.mrb[0].mxu0
        %2363 = vmatprep.mubr.bf16.mxu0 0
        %2364 = vmatmul.mubr.bf16.gmra.mrb[0].mxu0 %v2182
        %v2365 = vpop.f32.mrb[0].mxu0
        %v2366 = vadd.f32 0.0, %v2365
        %v2367 = vpop.f32.mrb[0].mxu0
        %v2368 = vpop.f32.mrb[0].mxu0
        %v2369 = vadd.f32 0.0, %v2368
        %v2370 = vpop.f32.mrb[0].mxu0
        %2371 = vmatprep.mubr.bf16.mxu0 0
        %2372 = vmatmul.mubr.bf16.gmra.mrb[0].mxu0 %v2190
        %v2373 = vpop.f32.mrb[0].mxu0
        %v2374 = vadd.f32 0.0, %v2373
        %v2375 = vpop.f32.mrb[0].mxu0
        %v2376 = vpop.f32.mrb[0].mxu0
        %v2377 = vadd.f32 0.0, %v2376
        %v2378 = vpop.f32.mrb[0].mxu0
        %2379 = vmatprep.mubr.bf16.mxu0 0
        %2380 = vmatmul.mubr.bf16.gmra.mrb[0].mxu0 %v2198
        %v2381 = vpop.f32.mrb[0].mxu0
        %v2382 = vadd.f32 0.0, %v2381
        %v2383 = vpop.f32.mrb[0].mxu0
        %v2384 = vpop.f32.mrb[0].mxu0
        %v2385 = vadd.f32 0.0, %v2384
        %v2386 = vpop.f32.mrb[0].mxu0
        %2387 = vmatprep.mubr.bf16.mxu0 0
        %2388 = vmatmul.mubr.bf16.gmra.mrb[0].mxu0 %v2206
        %v2389 = vpop.f32.mrb[0].mxu0
        %v2390 = vadd.f32 0.0, %v2389
        %v2391 = vpop.f32.mrb[0].mxu0
        %v2392 = vpop.f32.mrb[0].mxu0
        %v2393 = vadd.f32 0.0, %v2392
        %v2394 = vpop.f32.mrb[0].mxu0
        %2395 = vmatprep.mubr.bf16.mxu0 0
        %2396 = vmatmul.mubr.bf16.gmra.mrb[0].mxu0 %v2214
        %v2397 = vpop.f32.mrb[0].mxu0
        %v2398 = vadd.f32 0.0, %v2397
        %v2399 = vpop.f32.mrb[0].mxu0
        %v2400 = vpop.f32.mrb[0].mxu0
        %v2401 = vadd.f32 0.0, %v2400
        %v2402 = vpop.f32.mrb[0].mxu0
        %2403 = vmatprep.mubr.bf16.mxu0 0
        %2404 = vmatmul.mubr.bf16.gmra.mrb[0].mxu0 %v2222
        %v2405 = vpop.f32.mrb[0].mxu0
        %v2406 = vadd.f32 0.0, %v2405
        %v2407 = vpop.f32.mrb[0].mxu0
        %v2408 = vpop.f32.mrb[0].mxu0
        %v2409 = vadd.f32 0.0, %v2408
        %v2410 = vpop.f32.mrb[0].mxu0
        %2411 = vmatprep.mubr.bf16.mxu0 0
        %2412 = vmatmul.mubr.bf16.gmra.mrb[0].mxu0 %v2230
        %v2413 = vpop.f32.mrb[0].mxu0
        %v2414 = vadd.f32 0.0, %v2413
        %v2415 = vpop.f32.mrb[0].mxu0
        %v2416 = vpop.f32.mrb[0].mxu0
        %v2417 = vadd.f32 0.0, %v2416
        %v2418 = vpop.f32.mrb[0].mxu0
        %2419 = vmatprep.mubr.bf16.mxu0 0
        %2420 = vmatmul.mubr.bf16.gmra.mrb[0].mxu0 %v2238
        %v2421 = vpop.f32.mrb[0].mxu0
        %v2422 = vadd.f32 0.0, %v2421
        %v2423 = vpop.f32.mrb[0].mxu0
        %v2424 = vpop.f32.mrb[0].mxu0
        %v2425 = vadd.f32 0.0, %v2424
        %v2426 = vpop.f32.mrb[0].mxu0
        %2427 = vdwg.mxu0
        %v2428 = vadd.f32 %v2050, %v2334
        %v2429 = vadd.f32 %v2051, %v2337
        %v2430 = vadd.f32 %v2052, %v2342
        %v2431 = vadd.f32 %v2053, %v2345
        %v2432 = vadd.f32 %v2054, %v2350
        %v2433 = vadd.f32 %v2055, %v2353
        %v2434 = vadd.f32 %v2056, %v2358
        %v2435 = vadd.f32 %v2057, %v2361
        %v2436 = vadd.f32 %v2058, %v2366
        %v2437 = vadd.f32 %v2059, %v2369
        %v2438 = vadd.f32 %v2060, %v2374
        %v2439 = vadd.f32 %v2061, %v2377
        %v2440 = vadd.f32 %v2062, %v2382
        %v2441 = vadd.f32 %v2063, %v2385
        %v2442 = vadd.f32 %v2064, %v2390
        %v2443 = vadd.f32 %v2065, %v2393
        %v2444 = vadd.f32 %v2066, %v2398
        %v2445 = vadd.f32 %v2067, %v2401
        %v2446 = vadd.f32 %v2068, %v2406
        %v2447 = vadd.f32 %v2069, %v2409
        %v2448 = vadd.f32 %v2070, %v2414
        %v2449 = vadd.f32 %v2071, %v2417
        %v2450 = vadd.f32 %v2072, %v2422
        %v2451 = vadd.f32 %v2073, %v2425
        %v2452 = vld [vmem:[#allocation3 + $0x8] sm:$0x80]
        %v2453 = vld [vmem:[#allocation3 + $0x68] sm:$0xff]
        %v2454 = vsel %vm1510, 0, %v2452
        %v2455 = vsel %vm1511, 0, %v2075
        %v2456 = vsel %vm1511, 0, %v2076
        %v2457 = vsel %vm1511, 0, %v2077
        %v2458 = vsel %vm1511, 0, %v2078
        %v2459 = vsel %vm1511, 0, %v2079
        %v2460 = vsel %vm1511, 0, %v2080
        %v2461 = vsel %vm1511, 0, %v2081
        %v2462 = vsel %vm1511, 0, %v2082
        %v2463 = vsel %vm1511, 0, %v2083
        %v2464 = vsel %vm1511, 0, %v2084
        %v2465 = vsel %vm1511, 0, %v2085
        %v2466 = vsel %vm1512, 0, %v2453
        %s2467 = scalar_lea.vmem %s532, 192 [#allocation10]
        %v2468 = vld [vmem:[%s2467] sm:$0xf]
        %v2469 = vld [vmem:[%s2467 + $0x4] sm:$0xf]
        %v2470 = vld [vmem:[%s2467 + $0x8] sm:$0xf]
        %v2471 = vld [vmem:[%s2467 + $0xc] sm:$0xf]
        %v2472 = vld [vmem:[%s2467 + $0x10] sm:$0xf]
        %v2473 = vld [vmem:[%s2467 + $0x14] sm:$0xf]
        %v2474 = vld [vmem:[%s2467 + $0x18] sm:$0xf]
        %v2475 = vld [vmem:[%s2467 + $0x1c] sm:$0xf]
        %v2476 = vld [vmem:[%s2467 + $0x20] sm:$0xf]
        %v2477 = vld [vmem:[%s2467 + $0x24] sm:$0xf]
        %v2478 = vld [vmem:[%s2467 + $0x28] sm:$0xf]
        %v2479 = vld [vmem:[%s2467 + $0x2c] sm:$0xf]
        %v2480 = vld [vmem:[%s2467 + $0x30] sm:$0xf]
        %v2481 = vld [vmem:[%s2467 + $0x34] sm:$0xf]
        %v2482 = vld [vmem:[%s2467 + $0x38] sm:$0xf]
        %v2483 = vld [vmem:[%s2467 + $0x3c] sm:$0xf]
        %v2485 = vshrl.u32 %v2454, 16
        %v2487 = vrot.slane %v2485, 7
        %v2489 = vshrl.u32 %v2455, 16
        %v2491 = vrot.slane %v2489, 7
        %v2492 = vshll.u32 %v2455, 16
        %v2494 = vor.u32 %v2491, %v2492
        %v2495 = vsel %vm1542, %v2487, %v2494
        %v2497 = vshrl.u32 %v2456, 16
        %v2499 = vrot.slane %v2497, 7
        %v2500 = vshll.u32 %v2456, 16
        %v2502 = vor.u32 %v2499, %v2500
        %v2503 = vsel %vm1542, %v2491, %v2502
        %v2505 = vshrl.u32 %v2457, 16
        %v2507 = vrot.slane %v2505, 7
        %v2508 = vshll.u32 %v2457, 16
        %v2510 = vor.u32 %v2507, %v2508
        %v2511 = vsel %vm1542, %v2499, %v2510
        %v2513 = vshrl.u32 %v2458, 16
        %v2515 = vrot.slane %v2513, 7
        %v2516 = vshll.u32 %v2458, 16
        %v2518 = vor.u32 %v2515, %v2516
        %v2519 = vsel %vm1542, %v2507, %v2518
        %v2521 = vshrl.u32 %v2459, 16
        %v2523 = vrot.slane %v2521, 7
        %v2524 = vshll.u32 %v2459, 16
        %v2526 = vor.u32 %v2523, %v2524
        %v2527 = vsel %vm1542, %v2515, %v2526
        %v2529 = vshrl.u32 %v2460, 16
        %v2531 = vrot.slane %v2529, 7
        %v2532 = vshll.u32 %v2460, 16
        %v2534 = vor.u32 %v2531, %v2532
        %v2535 = vsel %vm1542, %v2523, %v2534
        %v2537 = vshrl.u32 %v2461, 16
        %v2539 = vrot.slane %v2537, 7
        %v2540 = vshll.u32 %v2461, 16
        %v2542 = vor.u32 %v2539, %v2540
        %v2543 = vsel %vm1542, %v2531, %v2542
        %v2545 = vshrl.u32 %v2462, 16
        %v2547 = vrot.slane %v2545, 7
        %v2548 = vshll.u32 %v2462, 16
        %v2550 = vor.u32 %v2547, %v2548
        %v2551 = vsel %vm1542, %v2539, %v2550
        %v2553 = vshrl.u32 %v2463, 16
        %v2555 = vrot.slane %v2553, 7
        %v2556 = vshll.u32 %v2463, 16
        %v2558 = vor.u32 %v2555, %v2556
        %v2559 = vsel %vm1542, %v2547, %v2558
        %v2561 = vshrl.u32 %v2464, 16
        %v2563 = vrot.slane %v2561, 7
        %v2564 = vshll.u32 %v2464, 16
        %v2566 = vor.u32 %v2563, %v2564
        %v2567 = vsel %vm1542, %v2555, %v2566
        %v2569 = vshrl.u32 %v2465, 16
        %v2571 = vrot.slane %v2569, 7
        %v2572 = vshll.u32 %v2465, 16
        %v2574 = vor.u32 %v2571, %v2572
        %v2575 = vsel %vm1542, %v2563, %v2574
        %v2577 = vshrl.u32 %v2466, 16
        %v2579 = vrot.slane %v2577, 7
        %v2580 = vshll.u32 %v2466, 16
        %v2582 = vor.u32 %v2579, %v2580
        %v2583 = vsel %vm1542, %v2571, %v2582
        %v2612 = vunpack.c.l.b16 %v2468
        %v2613 = vunpack.c.l.b16 %v2469
        %v2614 = vunpack.c.l.b16 %v2470
        %v2615 = vunpack.c.l.b16 %v2471
        %v2616 = vunpack.c.l.b16 %v2472
        %v2617 = vunpack.c.l.b16 %v2473
        %v2618 = vunpack.c.l.b16 %v2474
        %v2619 = vunpack.c.l.b16 %v2475
        %v2620 = vunpack.c.l.b16 %v2476
        %v2621 = vunpack.c.l.b16 %v2477
        %v2622 = vunpack.c.l.b16 %v2478
        %v2623 = vunpack.c.l.b16 %v2479
        %v2624 = vunpack.c.l.b16 %v2480
        %v2625 = vunpack.c.l.b16 %v2481
        %v2626 = vunpack.c.l.b16 %v2482
        %v2627 = vunpack.c.l.b16 %v2483
        %v2628 = vpack.c.b16 %v2613, %v2612
        %v2629 = vpack.c.b16 %v2615, %v2614
        %v2630 = vpack.c.b16 %v2617, %v2616
        %v2631 = vpack.c.b16 %v2619, %v2618
        %v2632 = vpack.c.b16 %v2621, %v2620
        %v2633 = vpack.c.b16 %v2623, %v2622
        %v2634 = vpack.c.b16 %v2625, %v2624
        %v2635 = vpack.c.b16 %v2627, %v2626
        %2644 = vmatprep.subr.bf16.mxu0 0
        %2645 = vmatpush1.bf16.msra.mxu0 %v2628
        %2646 = vmatprep.subr.bf16.mxu0 0
        %2647 = vmatpush1.bf16.msra.mxu0 %v2629
        %2648 = vmatprep.subr.bf16.mxu0 0
        %2649 = vmatpush1.bf16.msra.mxu0 %v2630
        %2650 = vmatprep.subr.bf16.mxu0 0
        %2651 = vmatpush1.bf16.msra.mxu0 %v2631
        %2652 = vmatprep.subr.bf16.mxu0 0
        %2653 = vmatpush1.bf16.msra.mxu0 %v2632
        %2654 = vmatprep.subr.bf16.mxu0 0
        %2655 = vmatpush1.bf16.msra.mxu0 %v2633
        %2656 = vmatprep.subr.bf16.mxu0 0
        %2657 = vmatpush1.bf16.msra.mxu0 %v2634
        %2658 = vmatprep.subr.bf16.mxu0 0
        %2659 = vmatpush1.bf16.msra.mxu0 %v2635
        %2660 = vmatprep.subr.bf16.mxu0 0
        %2661 = vmatpush1.bf16.msra.mxu0 0
        %2662 = vmatprep.subr.bf16.mxu0 0
        %2663 = vmatpush1.bf16.msra.mxu0 0
        %2664 = vmatprep.subr.bf16.mxu0 0
        %2665 = vmatpush1.bf16.msra.mxu0 0
        %2666 = vmatprep.subr.bf16.mxu0 0
        %2667 = vmatpush1.bf16.msra.mxu0 0
        %2668 = vmatprep.subr.bf16.mxu0 0
        %2669 = vmatpush1.bf16.msra.mxu0 0
        %2670 = vmatprep.subr.bf16.mxu0 0
        %2671 = vmatpush1.bf16.msra.mxu0 0
        %2672 = vmatprep.subr.bf16.mxu0 0
        %2673 = vmatpush1.bf16.msra.mxu0 0
        %2674 = vmatprep.subr.bf16.mxu0 0
        %2675 = vmatpush1.bf16.msra.mxu0 0
        %2676 = vmatprep.mubr.bf16.mxu0 0
        %2677 = vmatmul.mubr.bf16.gmra.mrb[0].mxu0 %v2495
        %v2678 = vpop.f32.mrb[0].mxu0
        %v2679 = vadd.f32 0.0, %v2678
        %v2680 = vpop.f32.mrb[0].mxu0
        %v2681 = vpop.f32.mrb[0].mxu0
        %v2682 = vadd.f32 0.0, %v2681
        %v2683 = vpop.f32.mrb[0].mxu0
        %2684 = vmatprep.mubr.bf16.mxu0 0
        %2685 = vmatmul.mubr.bf16.gmra.mrb[0].mxu0 %v2503
        %v2686 = vpop.f32.mrb[0].mxu0
        %v2687 = vadd.f32 0.0, %v2686
        %v2688 = vpop.f32.mrb[0].mxu0
        %v2689 = vpop.f32.mrb[0].mxu0
        %v2690 = vadd.f32 0.0, %v2689
        %v2691 = vpop.f32.mrb[0].mxu0
        %2692 = vmatprep.mubr.bf16.mxu0 0
        %2693 = vmatmul.mubr.bf16.gmra.mrb[0].mxu0 %v2511
        %v2694 = vpop.f32.mrb[0].mxu0
        %v2695 = vadd.f32 0.0, %v2694
        %v2696 = vpop.f32.mrb[0].mxu0
        %v2697 = vpop.f32.mrb[0].mxu0
        %v2698 = vadd.f32 0.0, %v2697
        %v2699 = vpop.f32.mrb[0].mxu0
        %2700 = vmatprep.mubr.bf16.mxu0 0
        %2701 = vmatmul.mubr.bf16.gmra.mrb[0].mxu0 %v2519
        %v2702 = vpop.f32.mrb[0].mxu0
        %v2703 = vadd.f32 0.0, %v2702
        %v2704 = vpop.f32.mrb[0].mxu0
        %v2705 = vpop.f32.mrb[0].mxu0
        %v2706 = vadd.f32 0.0, %v2705
        %v2707 = vpop.f32.mrb[0].mxu0
        %2708 = vmatprep.mubr.bf16.mxu0 0
        %2709 = vmatmul.mubr.bf16.gmra.mrb[0].mxu0 %v2527
        %v2710 = vpop.f32.mrb[0].mxu0
        %v2711 = vadd.f32 0.0, %v2710
        %v2712 = vpop.f32.mrb[0].mxu0
        %v2713 = vpop.f32.mrb[0].mxu0
        %v2714 = vadd.f32 0.0, %v2713
        %v2715 = vpop.f32.mrb[0].mxu0
        %2716 = vmatprep.mubr.bf16.mxu0 0
        %2717 = vmatmul.mubr.bf16.gmra.mrb[0].mxu0 %v2535
        %v2718 = vpop.f32.mrb[0].mxu0
        %v2719 = vadd.f32 0.0, %v2718
        %v2720 = vpop.f32.mrb[0].mxu0
        %v2721 = vpop.f32.mrb[0].mxu0
        %v2722 = vadd.f32 0.0, %v2721
        %v2723 = vpop.f32.mrb[0].mxu0
        %2724 = vmatprep.mubr.bf16.mxu0 0
        %2725 = vmatmul.mubr.bf16.gmra.mrb[0].mxu0 %v2543
        %v2726 = vpop.f32.mrb[0].mxu0
        %v2727 = vadd.f32 0.0, %v2726
        %v2728 = vpop.f32.mrb[0].mxu0
        %v2729 = vpop.f32.mrb[0].mxu0
        %v2730 = vadd.f32 0.0, %v2729
        %v2731 = vpop.f32.mrb[0].mxu0
        %2732 = vmatprep.mubr.bf16.mxu0 0
        %2733 = vmatmul.mubr.bf16.gmra.mrb[0].mxu0 %v2551
        %v2734 = vpop.f32.mrb[0].mxu0
        %v2735 = vadd.f32 0.0, %v2734
        %v2736 = vpop.f32.mrb[0].mxu0
        %v2737 = vpop.f32.mrb[0].mxu0
        %v2738 = vadd.f32 0.0, %v2737
        %v2739 = vpop.f32.mrb[0].mxu0
        %2740 = vmatprep.mubr.bf16.mxu0 0
        %2741 = vmatmul.mubr.bf16.gmra.mrb[0].mxu0 %v2559
        %v2742 = vpop.f32.mrb[0].mxu0
        %v2743 = vadd.f32 0.0, %v2742
        %v2744 = vpop.f32.mrb[0].mxu0
        %v2745 = vpop.f32.mrb[0].mxu0
        %v2746 = vadd.f32 0.0, %v2745
        %v2747 = vpop.f32.mrb[0].mxu0
        %2748 = vmatprep.mubr.bf16.mxu0 0
        %2749 = vmatmul.mubr.bf16.gmra.mrb[0].mxu0 %v2567
        %v2750 = vpop.f32.mrb[0].mxu0
        %v2751 = vadd.f32 0.0, %v2750
        %v2752 = vpop.f32.mrb[0].mxu0
        %v2753 = vpop.f32.mrb[0].mxu0
        %v2754 = vadd.f32 0.0, %v2753
        %v2755 = vpop.f32.mrb[0].mxu0
        %2756 = vmatprep.mubr.bf16.mxu0 0
        %2757 = vmatmul.mubr.bf16.gmra.mrb[0].mxu0 %v2575
        %v2758 = vpop.f32.mrb[0].mxu0
        %v2759 = vadd.f32 0.0, %v2758
        %v2760 = vpop.f32.mrb[0].mxu0
        %v2761 = vpop.f32.mrb[0].mxu0
        %v2762 = vadd.f32 0.0, %v2761
        %v2763 = vpop.f32.mrb[0].mxu0
        %2764 = vmatprep.mubr.bf16.mxu0 0
        %2765 = vmatmul.mubr.bf16.gmra.mrb[0].mxu0 %v2583
        %v2766 = vpop.f32.mrb[0].mxu0
        %v2767 = vadd.f32 0.0, %v2766
        %v2768 = vpop.f32.mrb[0].mxu0
        %v2769 = vpop.f32.mrb[0].mxu0
        %v2770 = vadd.f32 0.0, %v2769
        %v2771 = vpop.f32.mrb[0].mxu0
        %2772 = vdwg.mxu0
        %v2773 = vadd.f32 %v2428, %v2679
        %v2774 = vadd.f32 %v2429, %v2682
        %v2775 = vadd.f32 %v2430, %v2687
        %v2776 = vadd.f32 %v2431, %v2690
        %v2777 = vadd.f32 %v2432, %v2695
        %v2778 = vadd.f32 %v2433, %v2698
        %v2779 = vadd.f32 %v2434, %v2703
        %v2780 = vadd.f32 %v2435, %v2706
        %v2781 = vadd.f32 %v2436, %v2711
        %v2782 = vadd.f32 %v2437, %v2714
        %v2783 = vadd.f32 %v2438, %v2719
        %v2784 = vadd.f32 %v2439, %v2722
        %v2785 = vadd.f32 %v2440, %v2727
        %v2786 = vadd.f32 %v2441, %v2730
        %v2787 = vadd.f32 %v2442, %v2735
        %v2788 = vadd.f32 %v2443, %v2738
        %v2789 = vadd.f32 %v2444, %v2743
        %v2790 = vadd.f32 %v2445, %v2746
        %v2791 = vadd.f32 %v2446, %v2751
        %v2792 = vadd.f32 %v2447, %v2754
        %v2793 = vadd.f32 %v2448, %v2759
        %v2794 = vadd.f32 %v2449, %v2762
        %v2795 = vadd.f32 %v2450, %v2767
        %v2796 = vadd.f32 %v2451, %v2770
        %s2797 = scalar_lea.vmem %s532, 256 [#allocation10]
        %v2798 = vld [vmem:[%s2797] sm:$0xf]
        %v2799 = vld [vmem:[%s2797 + $0x4] sm:$0xf]
        %v2800 = vld [vmem:[%s2797 + $0x8] sm:$0xf]
        %v2801 = vld [vmem:[%s2797 + $0xc] sm:$0xf]
        %v2802 = vld [vmem:[%s2797 + $0x10] sm:$0xf]
        %v2803 = vld [vmem:[%s2797 + $0x14] sm:$0xf]
        %v2804 = vld [vmem:[%s2797 + $0x18] sm:$0xf]
        %v2805 = vld [vmem:[%s2797 + $0x1c] sm:$0xf]
        %v2806 = vld [vmem:[%s2797 + $0x20] sm:$0xf]
        %v2807 = vld [vmem:[%s2797 + $0x24] sm:$0xf]
        %v2808 = vld [vmem:[%s2797 + $0x28] sm:$0xf]
        %v2809 = vld [vmem:[%s2797 + $0x2c] sm:$0xf]
        %v2810 = vld [vmem:[%s2797 + $0x30] sm:$0xf]
        %v2811 = vld [vmem:[%s2797 + $0x34] sm:$0xf]
        %v2812 = vld [vmem:[%s2797 + $0x38] sm:$0xf]
        %v2813 = vld [vmem:[%s2797 + $0x3c] sm:$0xf]
        %v2830 = vunpack.c.l.b16 %v2798
        %v2831 = vunpack.c.l.b16 %v2799
        %v2832 = vunpack.c.l.b16 %v2800
        %v2833 = vunpack.c.l.b16 %v2801
        %v2834 = vunpack.c.l.b16 %v2802
        %v2835 = vunpack.c.l.b16 %v2803
        %v2836 = vunpack.c.l.b16 %v2804
        %v2837 = vunpack.c.l.b16 %v2805
        %v2838 = vunpack.c.l.b16 %v2806
        %v2839 = vunpack.c.l.b16 %v2807
        %v2840 = vunpack.c.l.b16 %v2808
        %v2841 = vunpack.c.l.b16 %v2809
        %v2842 = vunpack.c.l.b16 %v2810
        %v2843 = vunpack.c.l.b16 %v2811
        %v2844 = vunpack.c.l.b16 %v2812
        %v2845 = vunpack.c.l.b16 %v2813
        %v2846 = vpack.c.b16 %v2831, %v2830
        %v2847 = vpack.c.b16 %v2833, %v2832
        %v2848 = vpack.c.b16 %v2835, %v2834
        %v2849 = vpack.c.b16 %v2837, %v2836
        %v2850 = vpack.c.b16 %v2839, %v2838
        %v2851 = vpack.c.b16 %v2841, %v2840
        %v2852 = vpack.c.b16 %v2843, %v2842
        %v2853 = vpack.c.b16 %v2845, %v2844
        %2862 = vmatprep.subr.bf16.mxu0 0
        %2863 = vmatpush1.bf16.msra.mxu0 %v2846
        %2864 = vmatprep.subr.bf16.mxu0 0
        %2865 = vmatpush1.bf16.msra.mxu0 %v2847
        %2866 = vmatprep.subr.bf16.mxu0 0
        %2867 = vmatpush1.bf16.msra.mxu0 %v2848
        %2868 = vmatprep.subr.bf16.mxu0 0
        %2869 = vmatpush1.bf16.msra.mxu0 %v2849
        %2870 = vmatprep.subr.bf16.mxu0 0
        %2871 = vmatpush1.bf16.msra.mxu0 %v2850
        %2872 = vmatprep.subr.bf16.mxu0 0
        %2873 = vmatpush1.bf16.msra.mxu0 %v2851
        %2874 = vmatprep.subr.bf16.mxu0 0
        %2875 = vmatpush1.bf16.msra.mxu0 %v2852
        %2876 = vmatprep.subr.bf16.mxu0 0
        %2877 = vmatpush1.bf16.msra.mxu0 %v2853
        %2878 = vmatprep.subr.bf16.mxu0 0
        %2879 = vmatpush1.bf16.msra.mxu0 0
        %2880 = vmatprep.subr.bf16.mxu0 0
        %2881 = vmatpush1.bf16.msra.mxu0 0
        %2882 = vmatprep.subr.bf16.mxu0 0
        %2883 = vmatpush1.bf16.msra.mxu0 0
        %2884 = vmatprep.subr.bf16.mxu0 0
        %2885 = vmatpush1.bf16.msra.mxu0 0
        %2886 = vmatprep.subr.bf16.mxu0 0
        %2887 = vmatpush1.bf16.msra.mxu0 0
        %2888 = vmatprep.subr.bf16.mxu0 0
        %2889 = vmatpush1.bf16.msra.mxu0 0
        %2890 = vmatprep.subr.bf16.mxu0 0
        %2891 = vmatpush1.bf16.msra.mxu0 0
        %2892 = vmatprep.subr.bf16.mxu0 0
        %2893 = vmatpush1.bf16.msra.mxu0 0
        %2894 = vmatprep.mubr.bf16.mxu0 0
        %2895 = vmatmul.mubr.bf16.gmra.mrb[0].mxu0 %v2075
        %v2896 = vpop.f32.mrb[0].mxu0
        %v2897 = vadd.f32 0.0, %v2896
        %v2898 = vpop.f32.mrb[0].mxu0
        %v2899 = vpop.f32.mrb[0].mxu0
        %v2900 = vadd.f32 0.0, %v2899
        %v2901 = vpop.f32.mrb[0].mxu0
        %2902 = vmatprep.mubr.bf16.mxu0 0
        %2903 = vmatmul.mubr.bf16.gmra.mrb[0].mxu0 %v2076
        %v2904 = vpop.f32.mrb[0].mxu0
        %v2905 = vadd.f32 0.0, %v2904
        %v2906 = vpop.f32.mrb[0].mxu0
        %v2907 = vpop.f32.mrb[0].mxu0
        %v2908 = vadd.f32 0.0, %v2907
        %v2909 = vpop.f32.mrb[0].mxu0
        %2910 = vmatprep.mubr.bf16.mxu0 0
        %2911 = vmatmul.mubr.bf16.gmra.mrb[0].mxu0 %v2077
        %v2912 = vpop.f32.mrb[0].mxu0
        %v2913 = vadd.f32 0.0, %v2912
        %v2914 = vpop.f32.mrb[0].mxu0
        %v2915 = vpop.f32.mrb[0].mxu0
        %v2916 = vadd.f32 0.0, %v2915
        %v2917 = vpop.f32.mrb[0].mxu0
        %2918 = vmatprep.mubr.bf16.mxu0 0
        %2919 = vmatmul.mubr.bf16.gmra.mrb[0].mxu0 %v2078
        %v2920 = vpop.f32.mrb[0].mxu0
        %v2921 = vadd.f32 0.0, %v2920
        %v2922 = vpop.f32.mrb[0].mxu0
        %v2923 = vpop.f32.mrb[0].mxu0
        %v2924 = vadd.f32 0.0, %v2923
        %v2925 = vpop.f32.mrb[0].mxu0
        %2926 = vmatprep.mubr.bf16.mxu0 0
        %2927 = vmatmul.mubr.bf16.gmra.mrb[0].mxu0 %v2079
        %v2928 = vpop.f32.mrb[0].mxu0
        %v2929 = vadd.f32 0.0, %v2928
        %v2930 = vpop.f32.mrb[0].mxu0
        %v2931 = vpop.f32.mrb[0].mxu0
        %v2932 = vadd.f32 0.0, %v2931
        %v2933 = vpop.f32.mrb[0].mxu0
        %2934 = vmatprep.mubr.bf16.mxu0 0
        %2935 = vmatmul.mubr.bf16.gmra.mrb[0].mxu0 %v2080
        %v2936 = vpop.f32.mrb[0].mxu0
        %v2937 = vadd.f32 0.0, %v2936
        %v2938 = vpop.f32.mrb[0].mxu0
        %v2939 = vpop.f32.mrb[0].mxu0
        %v2940 = vadd.f32 0.0, %v2939
        %v2941 = vpop.f32.mrb[0].mxu0
        %2942 = vmatprep.mubr.bf16.mxu0 0
        %2943 = vmatmul.mubr.bf16.gmra.mrb[0].mxu0 %v2081
        %v2944 = vpop.f32.mrb[0].mxu0
        %v2945 = vadd.f32 0.0, %v2944
        %v2946 = vpop.f32.mrb[0].mxu0
        %v2947 = vpop.f32.mrb[0].mxu0
        %v2948 = vadd.f32 0.0, %v2947
        %v2949 = vpop.f32.mrb[0].mxu0
        %2950 = vmatprep.mubr.bf16.mxu0 0
        %2951 = vmatmul.mubr.bf16.gmra.mrb[0].mxu0 %v2082
        %v2952 = vpop.f32.mrb[0].mxu0
        %v2953 = vadd.f32 0.0, %v2952
        %v2954 = vpop.f32.mrb[0].mxu0
        %v2955 = vpop.f32.mrb[0].mxu0
        %v2956 = vadd.f32 0.0, %v2955
        %v2957 = vpop.f32.mrb[0].mxu0
        %2958 = vmatprep.mubr.bf16.mxu0 0
        %2959 = vmatmul.mubr.bf16.gmra.mrb[0].mxu0 %v2083
        %v2960 = vpop.f32.mrb[0].mxu0
        %v2961 = vadd.f32 0.0, %v2960
        %v2962 = vpop.f32.mrb[0].mxu0
        %v2963 = vpop.f32.mrb[0].mxu0
        %v2964 = vadd.f32 0.0, %v2963
        %v2965 = vpop.f32.mrb[0].mxu0
        %2966 = vmatprep.mubr.bf16.mxu0 0
        %2967 = vmatmul.mubr.bf16.gmra.mrb[0].mxu0 %v2084
        %v2968 = vpop.f32.mrb[0].mxu0
        %v2969 = vadd.f32 0.0, %v2968
        %v2970 = vpop.f32.mrb[0].mxu0
        %v2971 = vpop.f32.mrb[0].mxu0
        %v2972 = vadd.f32 0.0, %v2971
        %v2973 = vpop.f32.mrb[0].mxu0
        %2974 = vmatprep.mubr.bf16.mxu0 0
        %2975 = vmatmul.mubr.bf16.gmra.mrb[0].mxu0 %v2085
        %v2976 = vpop.f32.mrb[0].mxu0
        %v2977 = vadd.f32 0.0, %v2976
        %v2978 = vpop.f32.mrb[0].mxu0
        %v2979 = vpop.f32.mrb[0].mxu0
        %v2980 = vadd.f32 0.0, %v2979
        %v2981 = vpop.f32.mrb[0].mxu0
        %2982 = vmatprep.mubr.bf16.mxu0 0
        %2983 = vmatmul.mubr.bf16.gmra.mrb[0].mxu0 %v2453
        %v2984 = vpop.f32.mrb[0].mxu0
        %v2985 = vadd.f32 0.0, %v2984
        %v2986 = vpop.f32.mrb[0].mxu0
        %v2987 = vpop.f32.mrb[0].mxu0
        %v2988 = vadd.f32 0.0, %v2987
        %v2989 = vpop.f32.mrb[0].mxu0
        %2990 = vdwg.mxu0
        %v2991 = vadd.f32 %v2773, %v2897
        %v2992 = vadd.f32 %v2774, %v2900
        %v2993 = vadd.f32 %v2775, %v2905
        %v2994 = vadd.f32 %v2776, %v2908
        %v2995 = vadd.f32 %v2777, %v2913
        %v2996 = vadd.f32 %v2778, %v2916
        %v2997 = vadd.f32 %v2779, %v2921
        %v2998 = vadd.f32 %v2780, %v2924
        %v2999 = vadd.f32 %v2781, %v2929
        %v3000 = vadd.f32 %v2782, %v2932
        %v3001 = vadd.f32 %v2783, %v2937
        %v3002 = vadd.f32 %v2784, %v2940
        %v3003 = vadd.f32 %v2785, %v2945
        %v3004 = vadd.f32 %v2786, %v2948
        %v3005 = vadd.f32 %v2787, %v2953
        %v3006 = vadd.f32 %v2788, %v2956
        %v3007 = vadd.f32 %v2789, %v2961
        %v3008 = vadd.f32 %v2790, %v2964
        %v3009 = vadd.f32 %v2791, %v2969
        %v3010 = vadd.f32 %v2792, %v2972
        %v3011 = vadd.f32 %v2793, %v2977
        %v3012 = vadd.f32 %v2794, %v2980
        %v3013 = vadd.f32 %v2795, %v2985
        %v3014 = vadd.f32 %v2796, %v2988
        %v3015 = vld [vmem:[#allocation3 + $0x10] sm:$0xff]
        %v3016 = vld [vmem:[#allocation3 + $0x18] sm:$0xff]
        %v3017 = vld [vmem:[#allocation3 + $0x20] sm:$0xff]
        %v3018 = vld [vmem:[#allocation3 + $0x28] sm:$0xff]
        %v3019 = vld [vmem:[#allocation3 + $0x30] sm:$0xff]
        %v3020 = vld [vmem:[#allocation3 + $0x38] sm:$0xff]
        %v3021 = vld [vmem:[#allocation3 + $0x40] sm:$0xff]
        %v3022 = vld [vmem:[#allocation3 + $0x48] sm:$0xff]
        %v3023 = vld [vmem:[#allocation3 + $0x50] sm:$0xff]
        %v3024 = vld [vmem:[#allocation3 + $0x58] sm:$0xff]
        %v3025 = vld [vmem:[#allocation3 + $0x60] sm:$0xff]
        %v3026 = vld [vmem:[#allocation3 + $0x68] sm:$0xff]
        %v3027 = vld [vmem:[#allocation3 + $0x70] sm:$0x1]
        %v3028 = vsel %vm2106, 0, %v3015
        %v3029 = vsel %vm2107, 0, %v3016
        %v3030 = vsel %vm2107, 0, %v3017
        %v3031 = vsel %vm2107, 0, %v3018
        %v3032 = vsel %vm2107, 0, %v3019
        %v3033 = vsel %vm2107, 0, %v3020
        %v3034 = vsel %vm2107, 0, %v3021
        %v3035 = vsel %vm2107, 0, %v3022
        %v3036 = vsel %vm2107, 0, %v3023
        %v3037 = vsel %vm2107, 0, %v3024
        %v3038 = vsel %vm2107, 0, %v3025
        %v3039 = vsel %vm2107, 0, %v3026
        %v3040 = vsel %vm2108, 0, %v3027
        %s3041 = scalar_lea.vmem %s532, 320 [#allocation10]
        %v3042 = vld [vmem:[%s3041] sm:$0xf]
        %v3043 = vld [vmem:[%s3041 + $0x4] sm:$0xf]
        %v3044 = vld [vmem:[%s3041 + $0x8] sm:$0xf]
        %v3045 = vld [vmem:[%s3041 + $0xc] sm:$0xf]
        %v3046 = vld [vmem:[%s3041 + $0x10] sm:$0xf]
        %v3047 = vld [vmem:[%s3041 + $0x14] sm:$0xf]
        %v3048 = vld [vmem:[%s3041 + $0x18] sm:$0xf]
        %v3049 = vld [vmem:[%s3041 + $0x1c] sm:$0xf]
        %v3050 = vld [vmem:[%s3041 + $0x20] sm:$0xf]
        %v3051 = vld [vmem:[%s3041 + $0x24] sm:$0xf]
        %v3052 = vld [vmem:[%s3041 + $0x28] sm:$0xf]
        %v3053 = vld [vmem:[%s3041 + $0x2c] sm:$0xf]
        %v3054 = vld [vmem:[%s3041 + $0x30] sm:$0xf]
        %v3055 = vld [vmem:[%s3041 + $0x34] sm:$0xf]
        %v3056 = vld [vmem:[%s3041 + $0x38] sm:$0xf]
        %v3057 = vld [vmem:[%s3041 + $0x3c] sm:$0xf]
        %v3059 = vshrl.u32 %v3028, 16
        %v3061 = vshll.u32 %v3028, 16
        %v3063 = vrot.slane %v3061, 1
        %v3064 = vor.u32 %v3059, %v3063
        %v3066 = vshll.u32 %v3029, 16
        %v3068 = vrot.slane %v3066, 1
        %v3069 = vsel %vm1501, %v3064, %v3068
        %v3070 = vshrl.u32 %v3029, 16
        %v3072 = vor.u32 %v3070, %v3068
        %v3074 = vshll.u32 %v3030, 16
        %v3076 = vrot.slane %v3074, 1
        %v3077 = vsel %vm1501, %v3072, %v3076
        %v3078 = vshrl.u32 %v3030, 16
        %v3080 = vor.u32 %v3078, %v3076
        %v3082 = vshll.u32 %v3031, 16
        %v3084 = vrot.slane %v3082, 1
        %v3085 = vsel %vm1501, %v3080, %v3084
        %v3086 = vshrl.u32 %v3031, 16
        %v3088 = vor.u32 %v3086, %v3084
        %v3090 = vshll.u32 %v3032, 16
        %v3092 = vrot.slane %v3090, 1
        %v3093 = vsel %vm1501, %v3088, %v3092
        %v3094 = vshrl.u32 %v3032, 16
        %v3096 = vor.u32 %v3094, %v3092
        %v3098 = vshll.u32 %v3033, 16
        %v3100 = vrot.slane %v3098, 1
        %v3101 = vsel %vm1501, %v3096, %v3100
        %v3102 = vshrl.u32 %v3033, 16
        %v3104 = vor.u32 %v3102, %v3100
        %v3106 = vshll.u32 %v3034, 16
        %v3108 = vrot.slane %v3106, 1
        %v3109 = vsel %vm1501, %v3104, %v3108
        %v3110 = vshrl.u32 %v3034, 16
        %v3112 = vor.u32 %v3110, %v3108
        %v3114 = vshll.u32 %v3035, 16
        %v3116 = vrot.slane %v3114, 1
        %v3117 = vsel %vm1501, %v3112, %v3116
        %v3118 = vshrl.u32 %v3035, 16
        %v3120 = vor.u32 %v3118, %v3116
        %v3122 = vshll.u32 %v3036, 16
        %v3124 = vrot.slane %v3122, 1
        %v3125 = vsel %vm1501, %v3120, %v3124
        %v3126 = vshrl.u32 %v3036, 16
        %v3128 = vor.u32 %v3126, %v3124
        %v3130 = vshll.u32 %v3037, 16
        %v3132 = vrot.slane %v3130, 1
        %v3133 = vsel %vm1501, %v3128, %v3132
        %v3134 = vshrl.u32 %v3037, 16
        %v3136 = vor.u32 %v3134, %v3132
        %v3138 = vshll.u32 %v3038, 16
        %v3140 = vrot.slane %v3138, 1
        %v3141 = vsel %vm1501, %v3136, %v3140
        %v3142 = vshrl.u32 %v3038, 16
        %v3144 = vor.u32 %v3142, %v3140
        %v3146 = vshll.u32 %v3039, 16
        %v3148 = vrot.slane %v3146, 1
        %v3149 = vsel %vm1501, %v3144, %v3148
        %v3150 = vshrl.u32 %v3039, 16
        %v3152 = vor.u32 %v3150, %v3148
        %v3154 = vshll.u32 %v3040, 16
        %v3156 = vrot.slane %v3154, 1
        %v3157 = vsel %vm1501, %v3152, %v3156
        %v3186 = vunpack.c.l.b16 %v3042
        %v3187 = vunpack.c.l.b16 %v3043
        %v3188 = vunpack.c.l.b16 %v3044
        %v3189 = vunpack.c.l.b16 %v3045
        %v3190 = vunpack.c.l.b16 %v3046
        %v3191 = vunpack.c.l.b16 %v3047
        %v3192 = vunpack.c.l.b16 %v3048
        %v3193 = vunpack.c.l.b16 %v3049
        %v3194 = vunpack.c.l.b16 %v3050
        %v3195 = vunpack.c.l.b16 %v3051
        %v3196 = vunpack.c.l.b16 %v3052
        %v3197 = vunpack.c.l.b16 %v3053
        %v3198 = vunpack.c.l.b16 %v3054
        %v3199 = vunpack.c.l.b16 %v3055
        %v3200 = vunpack.c.l.b16 %v3056
        %v3201 = vunpack.c.l.b16 %v3057
        %v3202 = vpack.c.b16 %v3187, %v3186
        %v3203 = vpack.c.b16 %v3189, %v3188
        %v3204 = vpack.c.b16 %v3191, %v3190
        %v3205 = vpack.c.b16 %v3193, %v3192
        %v3206 = vpack.c.b16 %v3195, %v3194
        %v3207 = vpack.c.b16 %v3197, %v3196
        %v3208 = vpack.c.b16 %v3199, %v3198
        %v3209 = vpack.c.b16 %v3201, %v3200
        %3218 = vmatprep.subr.bf16.mxu0 0
        %3219 = vmatpush1.bf16.msra.mxu0 %v3202
        %3220 = vmatprep.subr.bf16.mxu0 0
        %3221 = vmatpush1.bf16.msra.mxu0 %v3203
        %3222 = vmatprep.subr.bf16.mxu0 0
        %3223 = vmatpush1.bf16.msra.mxu0 %v3204
        %3224 = vmatprep.subr.bf16.mxu0 0
        %3225 = vmatpush1.bf16.msra.mxu0 %v3205
        %3226 = vmatprep.subr.bf16.mxu0 0
        %3227 = vmatpush1.bf16.msra.mxu0 %v3206
        %3228 = vmatprep.subr.bf16.mxu0 0
        %3229 = vmatpush1.bf16.msra.mxu0 %v3207
        %3230 = vmatprep.subr.bf16.mxu0 0
        %3231 = vmatpush1.bf16.msra.mxu0 %v3208
        %3232 = vmatprep.subr.bf16.mxu0 0
        %3233 = vmatpush1.bf16.msra.mxu0 %v3209
        %3234 = vmatprep.subr.bf16.mxu0 0
        %3235 = vmatpush1.bf16.msra.mxu0 0
        %3236 = vmatprep.subr.bf16.mxu0 0
        %3237 = vmatpush1.bf16.msra.mxu0 0
        %3238 = vmatprep.subr.bf16.mxu0 0
        %3239 = vmatpush1.bf16.msra.mxu0 0
        %3240 = vmatprep.subr.bf16.mxu0 0
        %3241 = vmatpush1.bf16.msra.mxu0 0
        %3242 = vmatprep.subr.bf16.mxu0 0
        %3243 = vmatpush1.bf16.msra.mxu0 0
        %3244 = vmatprep.subr.bf16.mxu0 0
        %3245 = vmatpush1.bf16.msra.mxu0 0
        %3246 = vmatprep.subr.bf16.mxu0 0
        %3247 = vmatpush1.bf16.msra.mxu0 0
        %3248 = vmatprep.subr.bf16.mxu0 0
        %3249 = vmatpush1.bf16.msra.mxu0 0
        %3250 = vmatprep.mubr.bf16.mxu0 0
        %3251 = vmatmul.mubr.bf16.gmra.mrb[0].mxu0 %v3069
        %v3252 = vpop.f32.mrb[0].mxu0
        %v3253 = vadd.f32 0.0, %v3252
        %v3254 = vpop.f32.mrb[0].mxu0
        %v3255 = vpop.f32.mrb[0].mxu0
        %v3256 = vadd.f32 0.0, %v3255
        %v3257 = vpop.f32.mrb[0].mxu0
        %3258 = vmatprep.mubr.bf16.mxu0 0
        %3259 = vmatmul.mubr.bf16.gmra.mrb[0].mxu0 %v3077
        %v3260 = vpop.f32.mrb[0].mxu0
        %v3261 = vadd.f32 0.0, %v3260
        %v3262 = vpop.f32.mrb[0].mxu0
        %v3263 = vpop.f32.mrb[0].mxu0
        %v3264 = vadd.f32 0.0, %v3263
        %v3265 = vpop.f32.mrb[0].mxu0
        %3266 = vmatprep.mubr.bf16.mxu0 0
        %3267 = vmatmul.mubr.bf16.gmra.mrb[0].mxu0 %v3085
        %v3268 = vpop.f32.mrb[0].mxu0
        %v3269 = vadd.f32 0.0, %v3268
        %v3270 = vpop.f32.mrb[0].mxu0
        %v3271 = vpop.f32.mrb[0].mxu0
        %v3272 = vadd.f32 0.0, %v3271
        %v3273 = vpop.f32.mrb[0].mxu0
        %3274 = vmatprep.mubr.bf16.mxu0 0
        %3275 = vmatmul.mubr.bf16.gmra.mrb[0].mxu0 %v3093
        %v3276 = vpop.f32.mrb[0].mxu0
        %v3277 = vadd.f32 0.0, %v3276
        %v3278 = vpop.f32.mrb[0].mxu0
        %v3279 = vpop.f32.mrb[0].mxu0
        %v3280 = vadd.f32 0.0, %v3279
        %v3281 = vpop.f32.mrb[0].mxu0
        %3282 = vmatprep.mubr.bf16.mxu0 0
        %3283 = vmatmul.mubr.bf16.gmra.mrb[0].mxu0 %v3101
        %v3284 = vpop.f32.mrb[0].mxu0
        %v3285 = vadd.f32 0.0, %v3284
        %v3286 = vpop.f32.mrb[0].mxu0
        %v3287 = vpop.f32.mrb[0].mxu0
        %v3288 = vadd.f32 0.0, %v3287
        %v3289 = vpop.f32.mrb[0].mxu0
        %3290 = vmatprep.mubr.bf16.mxu0 0
        %3291 = vmatmul.mubr.bf16.gmra.mrb[0].mxu0 %v3109
        %v3292 = vpop.f32.mrb[0].mxu0
        %v3293 = vadd.f32 0.0, %v3292
        %v3294 = vpop.f32.mrb[0].mxu0
        %v3295 = vpop.f32.mrb[0].mxu0
        %v3296 = vadd.f32 0.0, %v3295
        %v3297 = vpop.f32.mrb[0].mxu0
        %3298 = vmatprep.mubr.bf16.mxu0 0
        %3299 = vmatmul.mubr.bf16.gmra.mrb[0].mxu0 %v3117
        %v3300 = vpop.f32.mrb[0].mxu0
        %v3301 = vadd.f32 0.0, %v3300
        %v3302 = vpop.f32.mrb[0].mxu0
        %v3303 = vpop.f32.mrb[0].mxu0
        %v3304 = vadd.f32 0.0, %v3303
        %v3305 = vpop.f32.mrb[0].mxu0
        %3306 = vmatprep.mubr.bf16.mxu0 0
        %3307 = vmatmul.mubr.bf16.gmra.mrb[0].mxu0 %v3125
        %v3308 = vpop.f32.mrb[0].mxu0
        %v3309 = vadd.f32 0.0, %v3308
        %v3310 = vpop.f32.mrb[0].mxu0
        %v3311 = vpop.f32.mrb[0].mxu0
        %v3312 = vadd.f32 0.0, %v3311
        %v3313 = vpop.f32.mrb[0].mxu0
        %3314 = vmatprep.mubr.bf16.mxu0 0
        %3315 = vmatmul.mubr.bf16.gmra.mrb[0].mxu0 %v3133
        %v3316 = vpop.f32.mrb[0].mxu0
        %v3317 = vadd.f32 0.0, %v3316
        %v3318 = vpop.f32.mrb[0].mxu0
        %v3319 = vpop.f32.mrb[0].mxu0
        %v3320 = vadd.f32 0.0, %v3319
        %v3321 = vpop.f32.mrb[0].mxu0
        %3322 = vmatprep.mubr.bf16.mxu0 0
        %3323 = vmatmul.mubr.bf16.gmra.mrb[0].mxu0 %v3141
        %v3324 = vpop.f32.mrb[0].mxu0
        %v3325 = vadd.f32 0.0, %v3324
        %v3326 = vpop.f32.mrb[0].mxu0
        %v3327 = vpop.f32.mrb[0].mxu0
        %v3328 = vadd.f32 0.0, %v3327
        %v3329 = vpop.f32.mrb[0].mxu0
        %3330 = vmatprep.mubr.bf16.mxu0 0
        %3331 = vmatmul.mubr.bf16.gmra.mrb[0].mxu0 %v3149
        %v3332 = vpop.f32.mrb[0].mxu0
        %v3333 = vadd.f32 0.0, %v3332
        %v3334 = vpop.f32.mrb[0].mxu0
        %v3335 = vpop.f32.mrb[0].mxu0
        %v3336 = vadd.f32 0.0, %v3335
        %v3337 = vpop.f32.mrb[0].mxu0
        %3338 = vmatprep.mubr.bf16.mxu0 0
        %3339 = vmatmul.mubr.bf16.gmra.mrb[0].mxu0 %v3157
        %v3340 = vpop.f32.mrb[0].mxu0
        %v3341 = vadd.f32 0.0, %v3340
        %v3342 = vpop.f32.mrb[0].mxu0
        %v3343 = vpop.f32.mrb[0].mxu0
        %v3344 = vadd.f32 0.0, %v3343
        %v3345 = vpop.f32.mrb[0].mxu0
        %3346 = vdwg.mxu0
        %v3347 = vadd.f32 %v2991, %v3253
        %v3348 = vadd.f32 %v2992, %v3256
        %v3349 = vadd.f32 %v2993, %v3261
        %v3350 = vadd.f32 %v2994, %v3264
        %v3351 = vadd.f32 %v2995, %v3269
        %v3352 = vadd.f32 %v2996, %v3272
        %v3353 = vadd.f32 %v2997, %v3277
        %v3354 = vadd.f32 %v2998, %v3280
        %v3355 = vadd.f32 %v2999, %v3285
        %v3356 = vadd.f32 %v3000, %v3288
        %v3357 = vadd.f32 %v3001, %v3293
        %v3358 = vadd.f32 %v3002, %v3296
        %v3359 = vadd.f32 %v3003, %v3301
        %v3360 = vadd.f32 %v3004, %v3304
        %v3361 = vadd.f32 %v3005, %v3309
        %v3362 = vadd.f32 %v3006, %v3312
        %v3363 = vadd.f32 %v3007, %v3317
        %v3364 = vadd.f32 %v3008, %v3320
        %v3365 = vadd.f32 %v3009, %v3325
        %v3366 = vadd.f32 %v3010, %v3328
        %v3367 = vadd.f32 %v3011, %v3333
        %v3368 = vadd.f32 %v3012, %v3336
        %v3369 = vadd.f32 %v3013, %v3341
        %v3370 = vadd.f32 %v3014, %v3344
        %v3371 = vld [vmem:[#allocation3 + $0x10] sm:$0x80]
        %v3372 = vld [vmem:[#allocation3 + $0x70] sm:$0xff]
        %v3373 = vsel %vm1510, 0, %v3371
        %v3374 = vsel %vm1511, 0, %v3016
        %v3375 = vsel %vm1511, 0, %v3017
        %v3376 = vsel %vm1511, 0, %v3018
        %v3377 = vsel %vm1511, 0, %v3019
        %v3378 = vsel %vm1511, 0, %v3020
        %v3379 = vsel %vm1511, 0, %v3021
        %v3380 = vsel %vm1511, 0, %v3022
        %v3381 = vsel %vm1511, 0, %v3023
        %v3382 = vsel %vm1511, 0, %v3024
        %v3383 = vsel %vm1511, 0, %v3025
        %v3384 = vsel %vm1511, 0, %v3026
        %v3385 = vsel %vm1512, 0, %v3372
        %s3386 = scalar_lea.vmem %s532, 384 [#allocation10]
        %v3387 = vld [vmem:[%s3386] sm:$0xf]
        %v3388 = vld [vmem:[%s3386 + $0x4] sm:$0xf]
        %v3389 = vld [vmem:[%s3386 + $0x8] sm:$0xf]
        %v3390 = vld [vmem:[%s3386 + $0xc] sm:$0xf]
        %v3391 = vld [vmem:[%s3386 + $0x10] sm:$0xf]
        %v3392 = vld [vmem:[%s3386 + $0x14] sm:$0xf]
        %v3393 = vld [vmem:[%s3386 + $0x18] sm:$0xf]
        %v3394 = vld [vmem:[%s3386 + $0x1c] sm:$0xf]
        %v3395 = vld [vmem:[%s3386 + $0x20] sm:$0xf]
        %v3396 = vld [vmem:[%s3386 + $0x24] sm:$0xf]
        %v3397 = vld [vmem:[%s3386 + $0x28] sm:$0xf]
        %v3398 = vld [vmem:[%s3386 + $0x2c] sm:$0xf]
        %v3399 = vld [vmem:[%s3386 + $0x30] sm:$0xf]
        %v3400 = vld [vmem:[%s3386 + $0x34] sm:$0xf]
        %v3401 = vld [vmem:[%s3386 + $0x38] sm:$0xf]
        %v3402 = vld [vmem:[%s3386 + $0x3c] sm:$0xf]
        %v3404 = vshrl.u32 %v3373, 16
        %v3406 = vrot.slane %v3404, 7
        %v3408 = vshrl.u32 %v3374, 16
        %v3410 = vrot.slane %v3408, 7
        %v3411 = vshll.u32 %v3374, 16
        %v3413 = vor.u32 %v3410, %v3411
        %v3414 = vsel %vm1542, %v3406, %v3413
        %v3416 = vshrl.u32 %v3375, 16
        %v3418 = vrot.slane %v3416, 7
        %v3419 = vshll.u32 %v3375, 16
        %v3421 = vor.u32 %v3418, %v3419
        %v3422 = vsel %vm1542, %v3410, %v3421
        %v3424 = vshrl.u32 %v3376, 16
        %v3426 = vrot.slane %v3424, 7
        %v3427 = vshll.u32 %v3376, 16
        %v3429 = vor.u32 %v3426, %v3427
        %v3430 = vsel %vm1542, %v3418, %v3429
        %v3432 = vshrl.u32 %v3377, 16
        %v3434 = vrot.slane %v3432, 7
        %v3435 = vshll.u32 %v3377, 16
        %v3437 = vor.u32 %v3434, %v3435
        %v3438 = vsel %vm1542, %v3426, %v3437
        %v3440 = vshrl.u32 %v3378, 16
        %v3442 = vrot.slane %v3440, 7
        %v3443 = vshll.u32 %v3378, 16
        %v3445 = vor.u32 %v3442, %v3443
        %v3446 = vsel %vm1542, %v3434, %v3445
        %v3448 = vshrl.u32 %v3379, 16
        %v3450 = vrot.slane %v3448, 7
        %v3451 = vshll.u32 %v3379, 16
        %v3453 = vor.u32 %v3450, %v3451
        %v3454 = vsel %vm1542, %v3442, %v3453
        %v3456 = vshrl.u32 %v3380, 16
        %v3458 = vrot.slane %v3456, 7
        %v3459 = vshll.u32 %v3380, 16
        %v3461 = vor.u32 %v3458, %v3459
        %v3462 = vsel %vm1542, %v3450, %v3461
        %v3464 = vshrl.u32 %v3381, 16
        %v3466 = vrot.slane %v3464, 7
        %v3467 = vshll.u32 %v3381, 16
        %v3469 = vor.u32 %v3466, %v3467
        %v3470 = vsel %vm1542, %v3458, %v3469
        %v3472 = vshrl.u32 %v3382, 16
        %v3474 = vrot.slane %v3472, 7
        %v3475 = vshll.u32 %v3382, 16
        %v3477 = vor.u32 %v3474, %v3475
        %v3478 = vsel %vm1542, %v3466, %v3477
        %v3480 = vshrl.u32 %v3383, 16
        %v3482 = vrot.slane %v3480, 7
        %v3483 = vshll.u32 %v3383, 16
        %v3485 = vor.u32 %v3482, %v3483
        %v3486 = vsel %vm1542, %v3474, %v3485
        %v3488 = vshrl.u32 %v3384, 16
        %v3490 = vrot.slane %v3488, 7
        %v3491 = vshll.u32 %v3384, 16
        %v3493 = vor.u32 %v3490, %v3491
        %v3494 = vsel %vm1542, %v3482, %v3493
        %v3496 = vshrl.u32 %v3385, 16
        %v3498 = vrot.slane %v3496, 7
        %v3499 = vshll.u32 %v3385, 16
        %v3501 = vor.u32 %v3498, %v3499
        %v3502 = vsel %vm1542, %v3490, %v3501
        %v3531 = vunpack.c.l.b16 %v3387
        %v3532 = vunpack.c.l.b16 %v3388
        %v3533 = vunpack.c.l.b16 %v3389
        %v3534 = vunpack.c.l.b16 %v3390
        %v3535 = vunpack.c.l.b16 %v3391
        %v3536 = vunpack.c.l.b16 %v3392
        %v3537 = vunpack.c.l.b16 %v3393
        %v3538 = vunpack.c.l.b16 %v3394
        %v3539 = vunpack.c.l.b16 %v3395
        %v3540 = vunpack.c.l.b16 %v3396
        %v3541 = vunpack.c.l.b16 %v3397
        %v3542 = vunpack.c.l.b16 %v3398
        %v3543 = vunpack.c.l.b16 %v3399
        %v3544 = vunpack.c.l.b16 %v3400
        %v3545 = vunpack.c.l.b16 %v3401
        %v3546 = vunpack.c.l.b16 %v3402
        %v3547 = vpack.c.b16 %v3532, %v3531
        %v3548 = vpack.c.b16 %v3534, %v3533
        %v3549 = vpack.c.b16 %v3536, %v3535
        %v3550 = vpack.c.b16 %v3538, %v3537
        %v3551 = vpack.c.b16 %v3540, %v3539
        %v3552 = vpack.c.b16 %v3542, %v3541
        %v3553 = vpack.c.b16 %v3544, %v3543
        %v3554 = vpack.c.b16 %v3546, %v3545
        %3563 = vmatprep.subr.bf16.mxu0 0
        %3564 = vmatpush1.bf16.msra.mxu0 %v3547
        %3565 = vmatprep.subr.bf16.mxu0 0
        %3566 = vmatpush1.bf16.msra.mxu0 %v3548
        %3567 = vmatprep.subr.bf16.mxu0 0
        %3568 = vmatpush1.bf16.msra.mxu0 %v3549
        %3569 = vmatprep.subr.bf16.mxu0 0
        %3570 = vmatpush1.bf16.msra.mxu0 %v3550
        %3571 = vmatprep.subr.bf16.mxu0 0
        %3572 = vmatpush1.bf16.msra.mxu0 %v3551
        %3573 = vmatprep.subr.bf16.mxu0 0
        %3574 = vmatpush1.bf16.msra.mxu0 %v3552
        %3575 = vmatprep.subr.bf16.mxu0 0
        %3576 = vmatpush1.bf16.msra.mxu0 %v3553
        %3577 = vmatprep.subr.bf16.mxu0 0
        %3578 = vmatpush1.bf16.msra.mxu0 %v3554
        %3579 = vmatprep.subr.bf16.mxu0 0
        %3580 = vmatpush1.bf16.msra.mxu0 0
        %3581 = vmatprep.subr.bf16.mxu0 0
        %3582 = vmatpush1.bf16.msra.mxu0 0
        %3583 = vmatprep.subr.bf16.mxu0 0
        %3584 = vmatpush1.bf16.msra.mxu0 0
        %3585 = vmatprep.subr.bf16.mxu0 0
        %3586 = vmatpush1.bf16.msra.mxu0 0
        %3587 = vmatprep.subr.bf16.mxu0 0
        %3588 = vmatpush1.bf16.msra.mxu0 0
        %3589 = vmatprep.subr.bf16.mxu0 0
        %3590 = vmatpush1.bf16.msra.mxu0 0
        %3591 = vmatprep.subr.bf16.mxu0 0
        %3592 = vmatpush1.bf16.msra.mxu0 0
        %3593 = vmatprep.subr.bf16.mxu0 0
        %3594 = vmatpush1.bf16.msra.mxu0 0
        %3595 = vmatprep.mubr.bf16.mxu0 0
        %3596 = vmatmul.mubr.bf16.gmra.mrb[0].mxu0 %v3414
        %v3597 = vpop.f32.mrb[0].mxu0
        %v3598 = vadd.f32 0.0, %v3597
        %v3599 = vpop.f32.mrb[0].mxu0
        %v3600 = vpop.f32.mrb[0].mxu0
        %v3601 = vadd.f32 0.0, %v3600
        %v3602 = vpop.f32.mrb[0].mxu0
        %3603 = vmatprep.mubr.bf16.mxu0 0
        %3604 = vmatmul.mubr.bf16.gmra.mrb[0].mxu0 %v3422
        %v3605 = vpop.f32.mrb[0].mxu0
        %v3606 = vadd.f32 0.0, %v3605
        %v3607 = vpop.f32.mrb[0].mxu0
        %v3608 = vpop.f32.mrb[0].mxu0
        %v3609 = vadd.f32 0.0, %v3608
        %v3610 = vpop.f32.mrb[0].mxu0
        %3611 = vmatprep.mubr.bf16.mxu0 0
        %3612 = vmatmul.mubr.bf16.gmra.mrb[0].mxu0 %v3430
        %v3613 = vpop.f32.mrb[0].mxu0
        %v3614 = vadd.f32 0.0, %v3613
        %v3615 = vpop.f32.mrb[0].mxu0
        %v3616 = vpop.f32.mrb[0].mxu0
        %v3617 = vadd.f32 0.0, %v3616
        %v3618 = vpop.f32.mrb[0].mxu0
        %3619 = vmatprep.mubr.bf16.mxu0 0
        %3620 = vmatmul.mubr.bf16.gmra.mrb[0].mxu0 %v3438
        %v3621 = vpop.f32.mrb[0].mxu0
        %v3622 = vadd.f32 0.0, %v3621
        %v3623 = vpop.f32.mrb[0].mxu0
        %v3624 = vpop.f32.mrb[0].mxu0
        %v3625 = vadd.f32 0.0, %v3624
        %v3626 = vpop.f32.mrb[0].mxu0
        %3627 = vmatprep.mubr.bf16.mxu0 0
        %3628 = vmatmul.mubr.bf16.gmra.mrb[0].mxu0 %v3446
        %v3629 = vpop.f32.mrb[0].mxu0
        %v3630 = vadd.f32 0.0, %v3629
        %v3631 = vpop.f32.mrb[0].mxu0
        %v3632 = vpop.f32.mrb[0].mxu0
        %v3633 = vadd.f32 0.0, %v3632
        %v3634 = vpop.f32.mrb[0].mxu0
        %3635 = vmatprep.mubr.bf16.mxu0 0
        %3636 = vmatmul.mubr.bf16.gmra.mrb[0].mxu0 %v3454
        %v3637 = vpop.f32.mrb[0].mxu0
        %v3638 = vadd.f32 0.0, %v3637
        %v3639 = vpop.f32.mrb[0].mxu0
        %v3640 = vpop.f32.mrb[0].mxu0
        %v3641 = vadd.f32 0.0, %v3640
        %v3642 = vpop.f32.mrb[0].mxu0
        %3643 = vmatprep.mubr.bf16.mxu0 0
        %3644 = vmatmul.mubr.bf16.gmra.mrb[0].mxu0 %v3462
        %v3645 = vpop.f32.mrb[0].mxu0
        %v3646 = vadd.f32 0.0, %v3645
        %v3647 = vpop.f32.mrb[0].mxu0
        %v3648 = vpop.f32.mrb[0].mxu0
        %v3649 = vadd.f32 0.0, %v3648
        %v3650 = vpop.f32.mrb[0].mxu0
        %3651 = vmatprep.mubr.bf16.mxu0 0
        %3652 = vmatmul.mubr.bf16.gmra.mrb[0].mxu0 %v3470
        %v3653 = vpop.f32.mrb[0].mxu0
        %v3654 = vadd.f32 0.0, %v3653
        %v3655 = vpop.f32.mrb[0].mxu0
        %v3656 = vpop.f32.mrb[0].mxu0
        %v3657 = vadd.f32 0.0, %v3656
        %v3658 = vpop.f32.mrb[0].mxu0
        %3659 = vmatprep.mubr.bf16.mxu0 0
        %3660 = vmatmul.mubr.bf16.gmra.mrb[0].mxu0 %v3478
        %v3661 = vpop.f32.mrb[0].mxu0
        %v3662 = vadd.f32 0.0, %v3661
        %v3663 = vpop.f32.mrb[0].mxu0
        %v3664 = vpop.f32.mrb[0].mxu0
        %v3665 = vadd.f32 0.0, %v3664
        %v3666 = vpop.f32.mrb[0].mxu0
        %3667 = vmatprep.mubr.bf16.mxu0 0
        %3668 = vmatmul.mubr.bf16.gmra.mrb[0].mxu0 %v3486
        %v3669 = vpop.f32.mrb[0].mxu0
        %v3670 = vadd.f32 0.0, %v3669
        %v3671 = vpop.f32.mrb[0].mxu0
        %v3672 = vpop.f32.mrb[0].mxu0
        %v3673 = vadd.f32 0.0, %v3672
        %v3674 = vpop.f32.mrb[0].mxu0
        %3675 = vmatprep.mubr.bf16.mxu0 0
        %3676 = vmatmul.mubr.bf16.gmra.mrb[0].mxu0 %v3494
        %v3677 = vpop.f32.mrb[0].mxu0
        %v3678 = vadd.f32 0.0, %v3677
        %v3679 = vpop.f32.mrb[0].mxu0
        %v3680 = vpop.f32.mrb[0].mxu0
        %v3681 = vadd.f32 0.0, %v3680
        %v3682 = vpop.f32.mrb[0].mxu0
        %3683 = vmatprep.mubr.bf16.mxu0 0
        %3684 = vmatmul.mubr.bf16.gmra.mrb[0].mxu0 %v3502
        %v3685 = vpop.f32.mrb[0].mxu0
        %v3686 = vadd.f32 0.0, %v3685
        %v3687 = vpop.f32.mrb[0].mxu0
        %v3688 = vpop.f32.mrb[0].mxu0
        %v3689 = vadd.f32 0.0, %v3688
        %v3690 = vpop.f32.mrb[0].mxu0
        %3691 = vdwg.mxu0
        %v3692 = vadd.f32 %v3347, %v3598
        %v3693 = vadd.f32 %v3348, %v3601
        %v3694 = vadd.f32 %v3349, %v3606
        %v3695 = vadd.f32 %v3350, %v3609
        %v3696 = vadd.f32 %v3351, %v3614
        %v3697 = vadd.f32 %v3352, %v3617
        %v3698 = vadd.f32 %v3353, %v3622
        %v3699 = vadd.f32 %v3354, %v3625
        %v3700 = vadd.f32 %v3355, %v3630
        %v3701 = vadd.f32 %v3356, %v3633
        %v3702 = vadd.f32 %v3357, %v3638
        %v3703 = vadd.f32 %v3358, %v3641
        %v3704 = vadd.f32 %v3359, %v3646
        %v3705 = vadd.f32 %v3360, %v3649
        %v3706 = vadd.f32 %v3361, %v3654
        %v3707 = vadd.f32 %v3362, %v3657
        %v3708 = vadd.f32 %v3363, %v3662
        %v3709 = vadd.f32 %v3364, %v3665
        %v3710 = vadd.f32 %v3365, %v3670
        %v3711 = vadd.f32 %v3366, %v3673
        %v3712 = vadd.f32 %v3367, %v3678
        %v3713 = vadd.f32 %v3368, %v3681
        %v3714 = vadd.f32 %v3369, %v3686
        %v3715 = vadd.f32 %v3370, %v3689
        %s3716 = scalar_lea.vmem %s532, 448 [#allocation10]
        %v3717 = vld [vmem:[%s3716] sm:$0xf]
        %v3718 = vld [vmem:[%s3716 + $0x4] sm:$0xf]
        %v3719 = vld [vmem:[%s3716 + $0x8] sm:$0xf]
        %v3720 = vld [vmem:[%s3716 + $0xc] sm:$0xf]
        %v3721 = vld [vmem:[%s3716 + $0x10] sm:$0xf]
        %v3722 = vld [vmem:[%s3716 + $0x14] sm:$0xf]
        %v3723 = vld [vmem:[%s3716 + $0x18] sm:$0xf]
        %v3724 = vld [vmem:[%s3716 + $0x1c] sm:$0xf]
        %v3725 = vld [vmem:[%s3716 + $0x20] sm:$0xf]
        %v3726 = vld [vmem:[%s3716 + $0x24] sm:$0xf]
        %v3727 = vld [vmem:[%s3716 + $0x28] sm:$0xf]
        %v3728 = vld [vmem:[%s3716 + $0x2c] sm:$0xf]
        %v3729 = vld [vmem:[%s3716 + $0x30] sm:$0xf]
        %v3730 = vld [vmem:[%s3716 + $0x34] sm:$0xf]
        %v3731 = vld [vmem:[%s3716 + $0x38] sm:$0xf]
        %v3732 = vld [vmem:[%s3716 + $0x3c] sm:$0xf]
        %v3749 = vunpack.c.l.b16 %v3717
        %v3750 = vunpack.c.l.b16 %v3718
        %v3751 = vunpack.c.l.b16 %v3719
        %v3752 = vunpack.c.l.b16 %v3720
        %v3753 = vunpack.c.l.b16 %v3721
        %v3754 = vunpack.c.l.b16 %v3722
        %v3755 = vunpack.c.l.b16 %v3723
        %v3756 = vunpack.c.l.b16 %v3724
        %v3757 = vunpack.c.l.b16 %v3725
        %v3758 = vunpack.c.l.b16 %v3726
        %v3759 = vunpack.c.l.b16 %v3727
        %v3760 = vunpack.c.l.b16 %v3728
        %v3761 = vunpack.c.l.b16 %v3729
        %v3762 = vunpack.c.l.b16 %v3730
        %v3763 = vunpack.c.l.b16 %v3731
        %v3764 = vunpack.c.l.b16 %v3732
        %v3765 = vpack.c.b16 %v3750, %v3749
        %v3766 = vpack.c.b16 %v3752, %v3751
        %v3767 = vpack.c.b16 %v3754, %v3753
        %v3768 = vpack.c.b16 %v3756, %v3755
        %v3769 = vpack.c.b16 %v3758, %v3757
        %v3770 = vpack.c.b16 %v3760, %v3759
        %v3771 = vpack.c.b16 %v3762, %v3761
        %v3772 = vpack.c.b16 %v3764, %v3763
        %3781 = vmatprep.subr.bf16.mxu0 0
        %3782 = vmatpush1.bf16.msra.mxu0 %v3765
        %3783 = vmatprep.subr.bf16.mxu0 0
        %3784 = vmatpush1.bf16.msra.mxu0 %v3766
        %3785 = vmatprep.subr.bf16.mxu0 0
        %3786 = vmatpush1.bf16.msra.mxu0 %v3767
        %3787 = vmatprep.subr.bf16.mxu0 0
        %3788 = vmatpush1.bf16.msra.mxu0 %v3768
        %3789 = vmatprep.subr.bf16.mxu0 0
        %3790 = vmatpush1.bf16.msra.mxu0 %v3769
        %3791 = vmatprep.subr.bf16.mxu0 0
        %3792 = vmatpush1.bf16.msra.mxu0 %v3770
        %3793 = vmatprep.subr.bf16.mxu0 0
        %3794 = vmatpush1.bf16.msra.mxu0 %v3771
        %3795 = vmatprep.subr.bf16.mxu0 0
        %3796 = vmatpush1.bf16.msra.mxu0 %v3772
        %3797 = vmatprep.subr.bf16.mxu0 0
        %3798 = vmatpush1.bf16.msra.mxu0 0
        %3799 = vmatprep.subr.bf16.mxu0 0
        %3800 = vmatpush1.bf16.msra.mxu0 0
        %3801 = vmatprep.subr.bf16.mxu0 0
        %3802 = vmatpush1.bf16.msra.mxu0 0
        %3803 = vmatprep.subr.bf16.mxu0 0
        %3804 = vmatpush1.bf16.msra.mxu0 0
        %3805 = vmatprep.subr.bf16.mxu0 0
        %3806 = vmatpush1.bf16.msra.mxu0 0
        %3807 = vmatprep.subr.bf16.mxu0 0
        %3808 = vmatpush1.bf16.msra.mxu0 0
        %3809 = vmatprep.subr.bf16.mxu0 0
        %3810 = vmatpush1.bf16.msra.mxu0 0
        %3811 = vmatprep.subr.bf16.mxu0 0
        %3812 = vmatpush1.bf16.msra.mxu0 0
        %3813 = vmatprep.mubr.bf16.mxu0 0
        %3814 = vmatmul.mubr.bf16.gmra.mrb[0].mxu0 %v3016
        %v3815 = vpop.f32.mrb[0].mxu0
        %v3816 = vadd.f32 0.0, %v3815
        %v3817 = vpop.f32.mrb[0].mxu0
        %v3818 = vpop.f32.mrb[0].mxu0
        %v3819 = vadd.f32 0.0, %v3818
        %v3820 = vpop.f32.mrb[0].mxu0
        %3821 = vmatprep.mubr.bf16.mxu0 0
        %3822 = vmatmul.mubr.bf16.gmra.mrb[0].mxu0 %v3017
        %v3823 = vpop.f32.mrb[0].mxu0
        %v3824 = vadd.f32 0.0, %v3823
        %v3825 = vpop.f32.mrb[0].mxu0
        %v3826 = vpop.f32.mrb[0].mxu0
        %v3827 = vadd.f32 0.0, %v3826
        %v3828 = vpop.f32.mrb[0].mxu0
        %3829 = vmatprep.mubr.bf16.mxu0 0
        %3830 = vmatmul.mubr.bf16.gmra.mrb[0].mxu0 %v3018
        %v3831 = vpop.f32.mrb[0].mxu0
        %v3832 = vadd.f32 0.0, %v3831
        %v3833 = vpop.f32.mrb[0].mxu0
        %v3834 = vpop.f32.mrb[0].mxu0
        %v3835 = vadd.f32 0.0, %v3834
        %v3836 = vpop.f32.mrb[0].mxu0
        %3837 = vmatprep.mubr.bf16.mxu0 0
        %3838 = vmatmul.mubr.bf16.gmra.mrb[0].mxu0 %v3019
        %v3839 = vpop.f32.mrb[0].mxu0
        %v3840 = vadd.f32 0.0, %v3839
        %v3841 = vpop.f32.mrb[0].mxu0
        %v3842 = vpop.f32.mrb[0].mxu0
        %v3843 = vadd.f32 0.0, %v3842
        %v3844 = vpop.f32.mrb[0].mxu0
        %3845 = vmatprep.mubr.bf16.mxu0 0
        %3846 = vmatmul.mubr.bf16.gmra.mrb[0].mxu0 %v3020
        %v3847 = vpop.f32.mrb[0].mxu0
        %v3848 = vadd.f32 0.0, %v3847
        %v3849 = vpop.f32.mrb[0].mxu0
        %v3850 = vpop.f32.mrb[0].mxu0
        %v3851 = vadd.f32 0.0, %v3850
        %v3852 = vpop.f32.mrb[0].mxu0
        %3853 = vmatprep.mubr.bf16.mxu0 0
        %3854 = vmatmul.mubr.bf16.gmra.mrb[0].mxu0 %v3021
        %v3855 = vpop.f32.mrb[0].mxu0
        %v3856 = vadd.f32 0.0, %v3855
        %v3857 = vpop.f32.mrb[0].mxu0
        %v3858 = vpop.f32.mrb[0].mxu0
        %v3859 = vadd.f32 0.0, %v3858
        %v3860 = vpop.f32.mrb[0].mxu0
        %3861 = vmatprep.mubr.bf16.mxu0 0
        %3862 = vmatmul.mubr.bf16.gmra.mrb[0].mxu0 %v3022
        %v3863 = vpop.f32.mrb[0].mxu0
        %v3864 = vadd.f32 0.0, %v3863
        %v3865 = vpop.f32.mrb[0].mxu0
        %v3866 = vpop.f32.mrb[0].mxu0
        %v3867 = vadd.f32 0.0, %v3866
        %v3868 = vpop.f32.mrb[0].mxu0
        %3869 = vmatprep.mubr.bf16.mxu0 0
        %3870 = vmatmul.mubr.bf16.gmra.mrb[0].mxu0 %v3023
        %v3871 = vpop.f32.mrb[0].mxu0
        %v3872 = vadd.f32 0.0, %v3871
        %v3873 = vpop.f32.mrb[0].mxu0
        %v3874 = vpop.f32.mrb[0].mxu0
        %v3875 = vadd.f32 0.0, %v3874
        %v3876 = vpop.f32.mrb[0].mxu0
        %3877 = vmatprep.mubr.bf16.mxu0 0
        %3878 = vmatmul.mubr.bf16.gmra.mrb[0].mxu0 %v3024
        %v3879 = vpop.f32.mrb[0].mxu0
        %v3880 = vadd.f32 0.0, %v3879
        %v3881 = vpop.f32.mrb[0].mxu0
        %v3882 = vpop.f32.mrb[0].mxu0
        %v3883 = vadd.f32 0.0, %v3882
        %v3884 = vpop.f32.mrb[0].mxu0
        %3885 = vmatprep.mubr.bf16.mxu0 0
        %3886 = vmatmul.mubr.bf16.gmra.mrb[0].mxu0 %v3025
        %v3887 = vpop.f32.mrb[0].mxu0
        %v3888 = vadd.f32 0.0, %v3887
        %v3889 = vpop.f32.mrb[0].mxu0
        %v3890 = vpop.f32.mrb[0].mxu0
        %v3891 = vadd.f32 0.0, %v3890
        %v3892 = vpop.f32.mrb[0].mxu0
        %3893 = vmatprep.mubr.bf16.mxu0 0
        %3894 = vmatmul.mubr.bf16.gmra.mrb[0].mxu0 %v3026
        %v3895 = vpop.f32.mrb[0].mxu0
        %v3896 = vadd.f32 0.0, %v3895
        %v3897 = vpop.f32.mrb[0].mxu0
        %v3898 = vpop.f32.mrb[0].mxu0
        %v3899 = vadd.f32 0.0, %v3898
        %v3900 = vpop.f32.mrb[0].mxu0
        %3901 = vmatprep.mubr.bf16.mxu0 0
        %3902 = vmatmul.mubr.bf16.gmra.mrb[0].mxu0 %v3372
        %v3903 = vpop.f32.mrb[0].mxu0
        %v3904 = vadd.f32 0.0, %v3903
        %v3905 = vpop.f32.mrb[0].mxu0
        %v3906 = vpop.f32.mrb[0].mxu0
        %v3907 = vadd.f32 0.0, %v3906
        %v3908 = vpop.f32.mrb[0].mxu0
        %3909 = vdwg.mxu0
        %v3910 = vadd.f32 %v3692, %v3816
        %v3911 = vadd.f32 %v3693, %v3819
        %v3912 = vadd.f32 %v3694, %v3824
        %v3913 = vadd.f32 %v3695, %v3827
        %v3914 = vadd.f32 %v3696, %v3832
        %v3915 = vadd.f32 %v3697, %v3835
        %v3916 = vadd.f32 %v3698, %v3840
        %v3917 = vadd.f32 %v3699, %v3843
        %v3918 = vadd.f32 %v3700, %v3848
        %v3919 = vadd.f32 %v3701, %v3851
        %v3920 = vadd.f32 %v3702, %v3856
        %v3921 = vadd.f32 %v3703, %v3859
        %v3922 = vadd.f32 %v3704, %v3864
        %v3923 = vadd.f32 %v3705, %v3867
        %v3924 = vadd.f32 %v3706, %v3872
        %v3925 = vadd.f32 %v3707, %v3875
        %v3926 = vadd.f32 %v3708, %v3880
        %v3927 = vadd.f32 %v3709, %v3883
        %v3928 = vadd.f32 %v3710, %v3888
        %v3929 = vadd.f32 %v3711, %v3891
        %v3930 = vadd.f32 %v3712, %v3896
        %v3931 = vadd.f32 %v3713, %v3899
        %v3932 = vadd.f32 %v3714, %v3904
        %v3933 = vadd.f32 %v3715, %v3907
        %v3934 = vld [vmem:[#allocation3 + $0x18] sm:$0xff]
        %v3935 = vld [vmem:[#allocation3 + $0x20] sm:$0xff]
        %v3936 = vld [vmem:[#allocation3 + $0x28] sm:$0xff]
        %v3937 = vld [vmem:[#allocation3 + $0x30] sm:$0xff]
        %v3938 = vld [vmem:[#allocation3 + $0x38] sm:$0xff]
        %v3939 = vld [vmem:[#allocation3 + $0x40] sm:$0xff]
        %v3940 = vld [vmem:[#allocation3 + $0x48] sm:$0xff]
        %v3941 = vld [vmem:[#allocation3 + $0x50] sm:$0xff]
        %v3942 = vld [vmem:[#allocation3 + $0x58] sm:$0xff]
        %v3943 = vld [vmem:[#allocation3 + $0x60] sm:$0xff]
        %v3944 = vld [vmem:[#allocation3 + $0x68] sm:$0xff]
        %v3945 = vld [vmem:[#allocation3 + $0x70] sm:$0xff]
        %v3946 = vld [vmem:[#allocation3 + $0x78] sm:$0x1]
        %v3947 = vsel %vm2106, 0, %v3934
        %v3948 = vsel %vm2107, 0, %v3935
        %v3949 = vsel %vm2107, 0, %v3936
        %v3950 = vsel %vm2107, 0, %v3937
        %v3951 = vsel %vm2107, 0, %v3938
        %v3952 = vsel %vm2107, 0, %v3939
        %v3953 = vsel %vm2107, 0, %v3940
        %v3954 = vsel %vm2107, 0, %v3941
        %v3955 = vsel %vm2107, 0, %v3942
        %v3956 = vsel %vm2107, 0, %v3943
        %v3957 = vsel %vm2107, 0, %v3944
        %v3958 = vsel %vm2107, 0, %v3945
        %v3959 = vsel %vm2108, 0, %v3946
        %s3960 = scalar_lea.vmem %s532, 512 [#allocation10]
        %v3961 = vld [vmem:[%s3960] sm:$0xf]
        %v3962 = vld [vmem:[%s3960 + $0x4] sm:$0xf]
        %v3963 = vld [vmem:[%s3960 + $0x8] sm:$0xf]
        %v3964 = vld [vmem:[%s3960 + $0xc] sm:$0xf]
        %v3965 = vld [vmem:[%s3960 + $0x10] sm:$0xf]
        %v3966 = vld [vmem:[%s3960 + $0x14] sm:$0xf]
        %v3967 = vld [vmem:[%s3960 + $0x18] sm:$0xf]
        %v3968 = vld [vmem:[%s3960 + $0x1c] sm:$0xf]
        %v3969 = vld [vmem:[%s3960 + $0x20] sm:$0xf]
        %v3970 = vld [vmem:[%s3960 + $0x24] sm:$0xf]
        %v3971 = vld [vmem:[%s3960 + $0x28] sm:$0xf]
        %v3972 = vld [vmem:[%s3960 + $0x2c] sm:$0xf]
        %v3973 = vld [vmem:[%s3960 + $0x30] sm:$0xf]
        %v3974 = vld [vmem:[%s3960 + $0x34] sm:$0xf]
        %v3975 = vld [vmem:[%s3960 + $0x38] sm:$0xf]
        %v3976 = vld [vmem:[%s3960 + $0x3c] sm:$0xf]
        %v3978 = vshrl.u32 %v3947, 16
        %v3980 = vshll.u32 %v3947, 16
        %v3982 = vrot.slane %v3980, 1
        %v3983 = vor.u32 %v3978, %v3982
        %v3985 = vshll.u32 %v3948, 16
        %v3987 = vrot.slane %v3985, 1
        %v3988 = vsel %vm1501, %v3983, %v3987
        %v3989 = vshrl.u32 %v3948, 16
        %v3991 = vor.u32 %v3989, %v3987
        %v3993 = vshll.u32 %v3949, 16
        %v3995 = vrot.slane %v3993, 1
        %v3996 = vsel %vm1501, %v3991, %v3995
        %v3997 = vshrl.u32 %v3949, 16
        %v3999 = vor.u32 %v3997, %v3995
        %v4001 = vshll.u32 %v3950, 16
        %v4003 = vrot.slane %v4001, 1
        %v4004 = vsel %vm1501, %v3999, %v4003
        %v4005 = vshrl.u32 %v3950, 16
        %v4007 = vor.u32 %v4005, %v4003
        %v4009 = vshll.u32 %v3951, 16
        %v4011 = vrot.slane %v4009, 1
        %v4012 = vsel %vm1501, %v4007, %v4011
        %v4013 = vshrl.u32 %v3951, 16
        %v4015 = vor.u32 %v4013, %v4011
        %v4017 = vshll.u32 %v3952, 16
        %v4019 = vrot.slane %v4017, 1
        %v4020 = vsel %vm1501, %v4015, %v4019
        %v4021 = vshrl.u32 %v3952, 16
        %v4023 = vor.u32 %v4021, %v4019
        %v4025 = vshll.u32 %v3953, 16
        %v4027 = vrot.slane %v4025, 1
        %v4028 = vsel %vm1501, %v4023, %v4027
        %v4029 = vshrl.u32 %v3953, 16
        %v4031 = vor.u32 %v4029, %v4027
        %v4033 = vshll.u32 %v3954, 16
        %v4035 = vrot.slane %v4033, 1
        %v4036 = vsel %vm1501, %v4031, %v4035
        %v4037 = vshrl.u32 %v3954, 16
        %v4039 = vor.u32 %v4037, %v4035
        %v4041 = vshll.u32 %v3955, 16
        %v4043 = vrot.slane %v4041, 1
        %v4044 = vsel %vm1501, %v4039, %v4043
        %v4045 = vshrl.u32 %v3955, 16
        %v4047 = vor.u32 %v4045, %v4043
        %v4049 = vshll.u32 %v3956, 16
        %v4051 = vrot.slane %v4049, 1
        %v4052 = vsel %vm1501, %v4047, %v4051
        %v4053 = vshrl.u32 %v3956, 16
        %v4055 = vor.u32 %v4053, %v4051
        %v4057 = vshll.u32 %v3957, 16
        %v4059 = vrot.slane %v4057, 1
        %v4060 = vsel %vm1501, %v4055, %v4059
        %v4061 = vshrl.u32 %v3957, 16
        %v4063 = vor.u32 %v4061, %v4059
        %v4065 = vshll.u32 %v3958, 16
        %v4067 = vrot.slane %v4065, 1
        %v4068 = vsel %vm1501, %v4063, %v4067
        %v4069 = vshrl.u32 %v3958, 16
        %v4071 = vor.u32 %v4069, %v4067
        %v4073 = vshll.u32 %v3959, 16
        %v4075 = vrot.slane %v4073, 1
        %v4076 = vsel %vm1501, %v4071, %v4075
        %v4105 = vunpack.c.l.b16 %v3961
        %v4106 = vunpack.c.l.b16 %v3962
        %v4107 = vunpack.c.l.b16 %v3963
        %v4108 = vunpack.c.l.b16 %v3964
        %v4109 = vunpack.c.l.b16 %v3965
        %v4110 = vunpack.c.l.b16 %v3966
        %v4111 = vunpack.c.l.b16 %v3967
        %v4112 = vunpack.c.l.b16 %v3968
        %v4113 = vunpack.c.l.b16 %v3969
        %v4114 = vunpack.c.l.b16 %v3970
        %v4115 = vunpack.c.l.b16 %v3971
        %v4116 = vunpack.c.l.b16 %v3972
        %v4117 = vunpack.c.l.b16 %v3973
        %v4118 = vunpack.c.l.b16 %v3974
        %v4119 = vunpack.c.l.b16 %v3975
        %v4120 = vunpack.c.l.b16 %v3976
        %v4121 = vpack.c.b16 %v4106, %v4105
        %v4122 = vpack.c.b16 %v4108, %v4107
        %v4123 = vpack.c.b16 %v4110, %v4109
        %v4124 = vpack.c.b16 %v4112, %v4111
        %v4125 = vpack.c.b16 %v4114, %v4113
        %v4126 = vpack.c.b16 %v4116, %v4115
        %v4127 = vpack.c.b16 %v4118, %v4117
        %v4128 = vpack.c.b16 %v4120, %v4119
        %4137 = vmatprep.subr.bf16.mxu0 0
        %4138 = vmatpush1.bf16.msra.mxu0 %v4121
        %4139 = vmatprep.subr.bf16.mxu0 0
        %4140 = vmatpush1.bf16.msra.mxu0 %v4122
        %4141 = vmatprep.subr.bf16.mxu0 0
        %4142 = vmatpush1.bf16.msra.mxu0 %v4123
        %4143 = vmatprep.subr.bf16.mxu0 0
        %4144 = vmatpush1.bf16.msra.mxu0 %v4124
        %4145 = vmatprep.subr.bf16.mxu0 0
        %4146 = vmatpush1.bf16.msra.mxu0 %v4125
        %4147 = vmatprep.subr.bf16.mxu0 0
        %4148 = vmatpush1.bf16.msra.mxu0 %v4126
        %4149 = vmatprep.subr.bf16.mxu0 0
        %4150 = vmatpush1.bf16.msra.mxu0 %v4127
        %4151 = vmatprep.subr.bf16.mxu0 0
        %4152 = vmatpush1.bf16.msra.mxu0 %v4128
        %4153 = vmatprep.subr.bf16.mxu0 0
        %4154 = vmatpush1.bf16.msra.mxu0 0
        %4155 = vmatprep.subr.bf16.mxu0 0
        %4156 = vmatpush1.bf16.msra.mxu0 0
        %4157 = vmatprep.subr.bf16.mxu0 0
        %4158 = vmatpush1.bf16.msra.mxu0 0
        %4159 = vmatprep.subr.bf16.mxu0 0
        %4160 = vmatpush1.bf16.msra.mxu0 0
        %4161 = vmatprep.subr.bf16.mxu0 0
        %4162 = vmatpush1.bf16.msra.mxu0 0
        %4163 = vmatprep.subr.bf16.mxu0 0
        %4164 = vmatpush1.bf16.msra.mxu0 0
        %4165 = vmatprep.subr.bf16.mxu0 0
        %4166 = vmatpush1.bf16.msra.mxu0 0
        %4167 = vmatprep.subr.bf16.mxu0 0
        %4168 = vmatpush1.bf16.msra.mxu0 0
        %4169 = vmatprep.mubr.bf16.mxu0 0
        %4170 = vmatmul.mubr.bf16.gmra.mrb[0].mxu0 %v3988
        %v4171 = vpop.f32.mrb[0].mxu0
        %v4172 = vadd.f32 0.0, %v4171
        %v4173 = vpop.f32.mrb[0].mxu0
        %v4174 = vpop.f32.mrb[0].mxu0
        %v4175 = vadd.f32 0.0, %v4174
        %v4176 = vpop.f32.mrb[0].mxu0
        %4177 = vmatprep.mubr.bf16.mxu0 0
        %4178 = vmatmul.mubr.bf16.gmra.mrb[0].mxu0 %v3996
        %v4179 = vpop.f32.mrb[0].mxu0
        %v4180 = vadd.f32 0.0, %v4179
        %v4181 = vpop.f32.mrb[0].mxu0
        %v4182 = vpop.f32.mrb[0].mxu0
        %v4183 = vadd.f32 0.0, %v4182
        %v4184 = vpop.f32.mrb[0].mxu0
        %4185 = vmatprep.mubr.bf16.mxu0 0
        %4186 = vmatmul.mubr.bf16.gmra.mrb[0].mxu0 %v4004
        %v4187 = vpop.f32.mrb[0].mxu0
        %v4188 = vadd.f32 0.0, %v4187
        %v4189 = vpop.f32.mrb[0].mxu0
        %v4190 = vpop.f32.mrb[0].mxu0
        %v4191 = vadd.f32 0.0, %v4190
        %v4192 = vpop.f32.mrb[0].mxu0
        %4193 = vmatprep.mubr.bf16.mxu0 0
        %4194 = vmatmul.mubr.bf16.gmra.mrb[0].mxu0 %v4012
        %v4195 = vpop.f32.mrb[0].mxu0
        %v4196 = vadd.f32 0.0, %v4195
        %v4197 = vpop.f32.mrb[0].mxu0
        %v4198 = vpop.f32.mrb[0].mxu0
        %v4199 = vadd.f32 0.0, %v4198
        %v4200 = vpop.f32.mrb[0].mxu0
        %4201 = vmatprep.mubr.bf16.mxu0 0
        %4202 = vmatmul.mubr.bf16.gmra.mrb[0].mxu0 %v4020
        %v4203 = vpop.f32.mrb[0].mxu0
        %v4204 = vadd.f32 0.0, %v4203
        %v4205 = vpop.f32.mrb[0].mxu0
        %v4206 = vpop.f32.mrb[0].mxu0
        %v4207 = vadd.f32 0.0, %v4206
        %v4208 = vpop.f32.mrb[0].mxu0
        %4209 = vmatprep.mubr.bf16.mxu0 0
        %4210 = vmatmul.mubr.bf16.gmra.mrb[0].mxu0 %v4028
        %v4211 = vpop.f32.mrb[0].mxu0
        %v4212 = vadd.f32 0.0, %v4211
        %v4213 = vpop.f32.mrb[0].mxu0
        %v4214 = vpop.f32.mrb[0].mxu0
        %v4215 = vadd.f32 0.0, %v4214
        %v4216 = vpop.f32.mrb[0].mxu0
        %4217 = vmatprep.mubr.bf16.mxu0 0
        %4218 = vmatmul.mubr.bf16.gmra.mrb[0].mxu0 %v4036
        %v4219 = vpop.f32.mrb[0].mxu0
        %v4220 = vadd.f32 0.0, %v4219
        %v4221 = vpop.f32.mrb[0].mxu0
        %v4222 = vpop.f32.mrb[0].mxu0
        %v4223 = vadd.f32 0.0, %v4222
        %v4224 = vpop.f32.mrb[0].mxu0
        %4225 = vmatprep.mubr.bf16.mxu0 0
        %4226 = vmatmul.mubr.bf16.gmra.mrb[0].mxu0 %v4044
        %v4227 = vpop.f32.mrb[0].mxu0
        %v4228 = vadd.f32 0.0, %v4227
        %v4229 = vpop.f32.mrb[0].mxu0
        %v4230 = vpop.f32.mrb[0].mxu0
        %v4231 = vadd.f32 0.0, %v4230
        %v4232 = vpop.f32.mrb[0].mxu0
        %4233 = vmatprep.mubr.bf16.mxu0 0
        %4234 = vmatmul.mubr.bf16.gmra.mrb[0].mxu0 %v4052
        %v4235 = vpop.f32.mrb[0].mxu0
        %v4236 = vadd.f32 0.0, %v4235
        %v4237 = vpop.f32.mrb[0].mxu0
        %v4238 = vpop.f32.mrb[0].mxu0
        %v4239 = vadd.f32 0.0, %v4238
        %v4240 = vpop.f32.mrb[0].mxu0
        %4241 = vmatprep.mubr.bf16.mxu0 0
        %4242 = vmatmul.mubr.bf16.gmra.mrb[0].mxu0 %v4060
        %v4243 = vpop.f32.mrb[0].mxu0
        %v4244 = vadd.f32 0.0, %v4243
        %v4245 = vpop.f32.mrb[0].mxu0
        %v4246 = vpop.f32.mrb[0].mxu0
        %v4247 = vadd.f32 0.0, %v4246
        %v4248 = vpop.f32.mrb[0].mxu0
        %4249 = vmatprep.mubr.bf16.mxu0 0
        %4250 = vmatmul.mubr.bf16.gmra.mrb[0].mxu0 %v4068
        %v4251 = vpop.f32.mrb[0].mxu0
        %v4252 = vadd.f32 0.0, %v4251
        %v4253 = vpop.f32.mrb[0].mxu0
        %v4254 = vpop.f32.mrb[0].mxu0
        %v4255 = vadd.f32 0.0, %v4254
        %v4256 = vpop.f32.mrb[0].mxu0
        %4257 = vmatprep.mubr.bf16.mxu0 0
        %4258 = vmatmul.mubr.bf16.gmra.mrb[0].mxu0 %v4076
        %v4259 = vpop.f32.mrb[0].mxu0
        %v4260 = vadd.f32 0.0, %v4259
        %v4261 = vpop.f32.mrb[0].mxu0
        %v4262 = vpop.f32.mrb[0].mxu0
        %v4263 = vadd.f32 0.0, %v4262
        %v4264 = vpop.f32.mrb[0].mxu0
        %4265 = vdwg.mxu0
        %v4266 = vadd.f32 %v3910, %v4172
        %v4267 = vadd.f32 %v3911, %v4175
        %v4268 = vadd.f32 %v3912, %v4180
        %v4269 = vadd.f32 %v3913, %v4183
        %v4270 = vadd.f32 %v3914, %v4188
        %v4271 = vadd.f32 %v3915, %v4191
        %v4272 = vadd.f32 %v3916, %v4196
        %v4273 = vadd.f32 %v3917, %v4199
        %v4274 = vadd.f32 %v3918, %v4204
        %v4275 = vadd.f32 %v3919, %v4207
        %v4276 = vadd.f32 %v3920, %v4212
        %v4277 = vadd.f32 %v3921, %v4215
        %v4278 = vadd.f32 %v3922, %v4220
        %v4279 = vadd.f32 %v3923, %v4223
        %v4280 = vadd.f32 %v3924, %v4228
        %v4281 = vadd.f32 %v3925, %v4231
        %v4282 = vadd.f32 %v3926, %v4236
        %v4283 = vadd.f32 %v3927, %v4239
        %v4284 = vadd.f32 %v3928, %v4244
        %v4285 = vadd.f32 %v3929, %v4247
        %v4286 = vadd.f32 %v3930, %v4252
        %v4287 = vadd.f32 %v3931, %v4255
        %v4288 = vadd.f32 %v3932, %v4260
        %v4289 = vadd.f32 %v3933, %v4263
        %v4290 = vsub.f32 0.0, %v4266
        %v4291 = vsub.f32 0.0, %v4267
        %v4292 = vsub.f32 0.0, %v4268
        %v4293 = vsub.f32 0.0, %v4269
        %v4294 = vsub.f32 0.0, %v4270
        %v4295 = vsub.f32 0.0, %v4271
        %v4296 = vsub.f32 0.0, %v4272
        %v4297 = vsub.f32 0.0, %v4273
        %v4298 = vsub.f32 0.0, %v4274
        %v4299 = vsub.f32 0.0, %v4275
        %v4300 = vsub.f32 0.0, %v4276
        %v4301 = vsub.f32 0.0, %v4277
        %v4302 = vsub.f32 0.0, %v4278
        %v4303 = vsub.f32 0.0, %v4279
        %v4304 = vsub.f32 0.0, %v4280
        %v4305 = vsub.f32 0.0, %v4281
        %v4306 = vsub.f32 0.0, %v4282
        %v4307 = vsub.f32 0.0, %v4283
        %v4308 = vsub.f32 0.0, %v4284
        %v4309 = vsub.f32 0.0, %v4285
        %v4310 = vsub.f32 0.0, %v4286
        %v4311 = vsub.f32 0.0, %v4287
        %v4312 = vsub.f32 0.0, %v4288
        %v4313 = vsub.f32 0.0, %v4289
        %v4314 = vmul.f32 %v4290, 1.442695
        %v4315 = vpow.pop %v4314
        %v4316 = vmul.f32 %v4291, 1.442695
        %v4317 = vpow.pop %v4316
        %v4318 = vmul.f32 %v4292, 1.442695
        %v4319 = vpow.pop %v4318
        %v4320 = vmul.f32 %v4293, 1.442695
        %v4321 = vpow.pop %v4320
        %v4322 = vmul.f32 %v4294, 1.442695
        %v4323 = vpow.pop %v4322
        %v4324 = vmul.f32 %v4295, 1.442695
        %v4325 = vpow.pop %v4324
        %v4326 = vmul.f32 %v4296, 1.442695
        %v4327 = vpow.pop %v4326
        %v4328 = vmul.f32 %v4297, 1.442695
        %v4329 = vpow.pop %v4328
        %v4330 = vmul.f32 %v4298, 1.442695
        %v4331 = vpow.pop %v4330
        %v4332 = vmul.f32 %v4299, 1.442695
        %v4333 = vpow.pop %v4332
        %v4334 = vmul.f32 %v4300, 1.442695
        %v4335 = vpow.pop %v4334
        %v4336 = vmul.f32 %v4301, 1.442695
        %v4337 = vpow.pop %v4336
        %v4338 = vmul.f32 %v4302, 1.442695
        %v4339 = vpow.pop %v4338
        %v4340 = vmul.f32 %v4303, 1.442695
        %v4341 = vpow.pop %v4340
        %v4342 = vmul.f32 %v4304, 1.442695
        %v4343 = vpow.pop %v4342
        %v4344 = vmul.f32 %v4305, 1.442695
        %v4345 = vpow.pop %v4344
        %v4346 = vmul.f32 %v4306, 1.442695
        %v4347 = vpow.pop %v4346
        %v4348 = vmul.f32 %v4307, 1.442695
        %v4349 = vpow.pop %v4348
        %v4350 = vmul.f32 %v4308, 1.442695
        %v4351 = vpow.pop %v4350
        %v4352 = vmul.f32 %v4309, 1.442695
        %v4353 = vpow.pop %v4352
        %v4354 = vmul.f32 %v4310, 1.442695
        %v4355 = vpow.pop %v4354
        %v4356 = vmul.f32 %v4311, 1.442695
        %v4357 = vpow.pop %v4356
        %v4358 = vmul.f32 %v4312, 1.442695
        %v4359 = vpow.pop %v4358
        %v4360 = vmul.f32 %v4313, 1.442695
        %v4361 = vpow.pop %v4360
        %v4362 = vadd.f32 %v4315, 1.0
        %v4363 = vadd.f32 %v4317, 1.0
        %v4364 = vadd.f32 %v4319, 1.0
        %v4365 = vadd.f32 %v4321, 1.0
        %v4366 = vadd.f32 %v4323, 1.0
        %v4367 = vadd.f32 %v4325, 1.0
        %v4368 = vadd.f32 %v4327, 1.0
        %v4369 = vadd.f32 %v4329, 1.0
        %v4370 = vadd.f32 %v4331, 1.0
        %v4371 = vadd.f32 %v4333, 1.0
        %v4372 = vadd.f32 %v4335, 1.0
        %v4373 = vadd.f32 %v4337, 1.0
        %v4374 = vadd.f32 %v4339, 1.0
        %v4375 = vadd.f32 %v4341, 1.0
        %v4376 = vadd.f32 %v4343, 1.0
        %v4377 = vadd.f32 %v4345, 1.0
        %v4378 = vadd.f32 %v4347, 1.0
        %v4379 = vadd.f32 %v4349, 1.0
        %v4380 = vadd.f32 %v4351, 1.0
        %v4381 = vadd.f32 %v4353, 1.0
        %v4382 = vadd.f32 %v4355, 1.0
        %v4383 = vadd.f32 %v4357, 1.0
        %v4384 = vadd.f32 %v4359, 1.0
        %v4385 = vadd.f32 %v4361, 1.0
        %v4386 = vrcp.pop %v4362
        %v4387 = vrcp.pop %v4363
        %v4388 = vrcp.pop %v4364
        %v4389 = vrcp.pop %v4365
        %v4390 = vrcp.pop %v4366
        %v4391 = vrcp.pop %v4367
        %v4392 = vrcp.pop %v4368
        %v4393 = vrcp.pop %v4369
        %v4394 = vrcp.pop %v4370
        %v4395 = vrcp.pop %v4371
        %v4396 = vrcp.pop %v4372
        %v4397 = vrcp.pop %v4373
        %v4398 = vrcp.pop %v4374
        %v4399 = vrcp.pop %v4375
        %v4400 = vrcp.pop %v4376
        %v4401 = vrcp.pop %v4377
        %v4402 = vrcp.pop %v4378
        %v4403 = vrcp.pop %v4379
        %v4404 = vrcp.pop %v4380
        %v4405 = vrcp.pop %v4381
        %v4406 = vrcp.pop %v4382
        %v4407 = vrcp.pop %v4383
        %v4408 = vrcp.pop %v4384
        %v4409 = vrcp.pop %v4385
        %v4410 = vmul.f32 %v4266, %v4386
        %v4411 = vmul.f32 %v4267, %v4387
        %v4412 = vmul.f32 %v4268, %v4388
        %v4413 = vmul.f32 %v4269, %v4389
        %v4414 = vmul.f32 %v4270, %v4390
        %v4415 = vmul.f32 %v4271, %v4391
        %v4416 = vmul.f32 %v4272, %v4392
        %v4417 = vmul.f32 %v4273, %v4393
        %v4418 = vmul.f32 %v4274, %v4394
        %v4419 = vmul.f32 %v4275, %v4395
        %v4420 = vmul.f32 %v4276, %v4396
        %v4421 = vmul.f32 %v4277, %v4397
        %v4422 = vmul.f32 %v4278, %v4398
        %v4423 = vmul.f32 %v4279, %v4399
        %v4424 = vmul.f32 %v4280, %v4400
        %v4425 = vmul.f32 %v4281, %v4401
        %v4426 = vmul.f32 %v4282, %v4402
        %v4427 = vmul.f32 %v4283, %v4403
        %v4428 = vmul.f32 %v4284, %v4404
        %v4429 = vmul.f32 %v4285, %v4405
        %v4430 = vmul.f32 %v4286, %v4406
        %v4431 = vmul.f32 %v4287, %v4407
        %v4432 = vmul.f32 %v4288, %v4408
        %v4433 = vmul.f32 %v4289, %v4409
        %v4434 = vadd.f32 %v4410, %v1054
        %v4435 = vadd.f32 %v4411, %v1055
        %v4436 = vadd.f32 %v4412, %v1056
        %v4437 = vadd.f32 %v4413, %v1057
        %v4438 = vadd.f32 %v4414, %v1058
        %v4439 = vadd.f32 %v4415, %v1059
        %v4440 = vadd.f32 %v4416, %v1060
        %v4441 = vadd.f32 %v4417, %v1061
        %v4442 = vadd.f32 %v4418, %v1062
        %v4443 = vadd.f32 %v4419, %v1063
        %v4444 = vadd.f32 %v4420, %v1064
        %v4445 = vadd.f32 %v4421, %v1065
        %v4446 = vadd.f32 %v4422, %v1066
        %v4447 = vadd.f32 %v4423, %v1067
        %v4448 = vadd.f32 %v4424, %v1068
        %v4449 = vadd.f32 %v4425, %v1069
        %v4450 = vadd.f32 %v4426, %v1070
        %v4451 = vadd.f32 %v4427, %v1071
        %v4452 = vadd.f32 %v4428, %v1072
        %v4453 = vadd.f32 %v4429, %v1073
        %v4454 = vadd.f32 %v4430, %v1074
        %v4455 = vadd.f32 %v4431, %v1075
        %v4456 = vadd.f32 %v4432, %v1076
        %v4457 = vadd.f32 %v4433, %v1077
        %4458 = vst [vmem:[#allocation2] sm:$0xff] %v4434
        %4459 = vst [vmem:[#allocation2 + $0x8] sm:$0xff] %v4435
        %4460 = vst [vmem:[#allocation2 + $0x10] sm:$0xff] %v4436
        %4461 = vst [vmem:[#allocation2 + $0x18] sm:$0xff] %v4437
        %4462 = vst [vmem:[#allocation2 + $0x20] sm:$0xff] %v4438
        %4463 = vst [vmem:[#allocation2 + $0x28] sm:$0xff] %v4439
        %4464 = vst [vmem:[#allocation2 + $0x30] sm:$0xff] %v4440
        %4465 = vst [vmem:[#allocation2 + $0x38] sm:$0xff] %v4441
        %4466 = vst [vmem:[#allocation2 + $0x40] sm:$0xff] %v4442
        %4467 = vst [vmem:[#allocation2 + $0x48] sm:$0xff] %v4443
        %4468 = vst [vmem:[#allocation2 + $0x50] sm:$0xff] %v4444
        %4469 = vst [vmem:[#allocation2 + $0x58] sm:$0xff] %v4445
        %4470 = vst [vmem:[#allocation2 + $0x60] sm:$0xff] %v4446
        %4471 = vst [vmem:[#allocation2 + $0x68] sm:$0xff] %v4447
        %4472 = vst [vmem:[#allocation2 + $0x70] sm:$0xff] %v4448
        %4473 = vst [vmem:[#allocation2 + $0x78] sm:$0xff] %v4449
        %4474 = vst [vmem:[#allocation2 + $0x80] sm:$0xff] %v4450
        %4475 = vst [vmem:[#allocation2 + $0x88] sm:$0xff] %v4451
        %4476 = vst [vmem:[#allocation2 + $0x90] sm:$0xff] %v4452
        %4477 = vst [vmem:[#allocation2 + $0x98] sm:$0xff] %v4453
        %4478 = vst [vmem:[#allocation2 + $0xa0] sm:$0xff] %v4454
        %4479 = vst [vmem:[#allocation2 + $0xa8] sm:$0xff] %v4455
        %4480 = vst [vmem:[#allocation2 + $0xb0] sm:$0xff] %v4456
        %4481 = vst [vmem:[#allocation2 + $0xb8] sm:$0xff] %v4457
        %p4482 = scmp.eq.s32.totalorder %s38, 1
        // Predicated region
        $region105: #{tpu_custom_call.1} parent=67 // pred_check
          %p4483 = pneg %p4482
        $region106: #{tpu_custom_call.1} parent=67 // pred_check_branch
          %4485 = sbr.rel (%p4483) target = $region108
        $region107: #{tpu_custom_call.1} parent=67 // pred_region
          %v4486 = vld [vmem:[#allocation2 + $0x20] sm:$0xff]
          %v4487 = vld [vmem:[#allocation2 + $0x28] sm:$0xff]
          %v4488 = vld [vmem:[#allocation2 + $0x30] sm:$0xff]
          %v4489 = vld [vmem:[#allocation2 + $0x38] sm:$0xff]
          %v4490 = vld [vmem:[#allocation2 + $0x40] sm:$0xff]
          %v4491 = vld [vmem:[#allocation2 + $0x48] sm:$0xff]
          %v4492 = vld [vmem:[#allocation2 + $0x50] sm:$0xff]
          %v4493 = vld [vmem:[#allocation2 + $0x58] sm:$0xff]
          %v4494 = vld [vmem:[#allocation2 + $0x60] sm:$0xff]
          %v4495 = vld [vmem:[#allocation2 + $0x68] sm:$0xff]
          %v4496 = vld [vmem:[#allocation2 + $0x70] sm:$0xff]
          %v4497 = vld [vmem:[#allocation2 + $0x78] sm:$0xff]
          %v4498 = vld [vmem:[#allocation2 + $0x80] sm:$0xff]
          %v4499 = vld [vmem:[#allocation2 + $0x88] sm:$0xff]
          %v4500 = vld [vmem:[#allocation2 + $0x90] sm:$0xff]
          %v4501 = vld [vmem:[#allocation2 + $0x98] sm:$0xff]
          %v4502 = vpack.c.bf16 %v4487, %v4486
          %v4503 = vpack.c.bf16 %v4489, %v4488
          %v4504 = vpack.c.bf16 %v4491, %v4490
          %v4505 = vpack.c.bf16 %v4493, %v4492
          %v4506 = vpack.c.bf16 %v4495, %v4494
          %v4507 = vpack.c.bf16 %v4497, %v4496
          %v4508 = vpack.c.bf16 %v4499, %v4498
          %v4509 = vpack.c.bf16 %v4501, %v4500
          %s4510 = scalar_lea.vmem %s510, 16 [#allocation4]
          %v4511 = vld [vmem:[%s4510] sm:$0xf]
          %v4512 = vld [vmem:[%s4510 + $0x4] sm:$0xf]
          %v4513 = vld [vmem:[%s4510 + $0x8] sm:$0xf]
          %v4514 = vld [vmem:[%s4510 + $0xc] sm:$0xf]
          %v4515 = vld [vmem:[%s4510 + $0x10] sm:$0xf]
          %v4516 = vld [vmem:[%s4510 + $0x14] sm:$0xf]
          %v4517 = vld [vmem:[%s4510 + $0x18] sm:$0xf]
          %v4518 = vld [vmem:[%s4510 + $0x1c] sm:$0xf]
          %v4519 = vld [vmem:[%s4510 + $0x20] sm:$0xf]
          %v4520 = vld [vmem:[%s4510 + $0x24] sm:$0xf]
          %v4521 = vld [vmem:[%s4510 + $0x28] sm:$0xf]
          %v4522 = vld [vmem:[%s4510 + $0x2c] sm:$0xf]
          %v4523 = vld [vmem:[%s4510 + $0x30] sm:$0xf]
          %v4524 = vld [vmem:[%s4510 + $0x34] sm:$0xf]
          %v4525 = vld [vmem:[%s4510 + $0x38] sm:$0xf]
          %v4526 = vld [vmem:[%s4510 + $0x3c] sm:$0xf]
          %v4527 = vld [vmem:[%s3] sm:$0xf]
          %v4528 = vld [vmem:[%s3 + $0x4] sm:$0xf]
          %v4529 = vld [vmem:[%s4] sm:$0x1]
          %v4531 = vlaneseq
          %v4532 = vshrl.u32 %v4531, 7
          %v4533 = vsub.s32 0, %v4532
          %v4534 = vrot.slane %v4529, %v4533
          %v4552 = vunpack.c.l.b16 %v4511
          %v4553 = vunpack.c.l.b16 %v4512
          %v4554 = vunpack.c.l.b16 %v4513
          %v4555 = vunpack.c.l.b16 %v4514
          %v4556 = vunpack.c.l.b16 %v4515
          %v4557 = vunpack.c.l.b16 %v4516
          %v4558 = vunpack.c.l.b16 %v4517
          %v4559 = vunpack.c.l.b16 %v4518
          %v4560 = vunpack.c.l.b16 %v4519
          %v4561 = vunpack.c.l.b16 %v4520
          %v4562 = vunpack.c.l.b16 %v4521
          %v4563 = vunpack.c.l.b16 %v4522
          %v4564 = vunpack.c.l.b16 %v4523
          %v4565 = vunpack.c.l.b16 %v4524
          %v4566 = vunpack.c.l.b16 %v4525
          %v4567 = vunpack.c.l.b16 %v4526
          %v4568 = vpack.c.b16 %v4553, %v4552
          %v4569 = vpack.c.b16 %v4555, %v4554
          %v4570 = vpack.c.b16 %v4557, %v4556
          %v4571 = vpack.c.b16 %v4559, %v4558
          %v4572 = vpack.c.b16 %v4561, %v4560
          %v4573 = vpack.c.b16 %v4563, %v4562
          %v4574 = vpack.c.b16 %v4565, %v4564
          %v4575 = vpack.c.b16 %v4567, %v4566
          %v4578 = vunpack.c.l.b16 %v4527
          %v4579 = vunpack.c.l.b16 %v4528
          %v4580 = vpack.c.b16 %v4579, %v4578
          %vm4582 = vcmask 130048
          %v4584 = vsel %vm4582, %v4568, 0
          %v4587 = vsel %vm4582, %v4569, 0
          %v4590 = vsel %vm4582, %v4570, 0
          %v4593 = vsel %vm4582, %v4571, 0
          %v4596 = vsel %vm4582, %v4572, 0
          %v4599 = vsel %vm4582, %v4573, 0
          %v4602 = vsel %vm4582, %v4574, 0
          %v4605 = vsel %vm4582, %v4575, 0
          %4607 = vmatprep.subr.bf16.mxu0 0
          %4608 = vmatpush1.bf16.msra.mxu0 %v4580
          %4609 = vmatprep.subr.bf16.mxu0 0
          %4610 = vmatpush1.bf16.msra.mxu0 0
          %4611 = vmatprep.subr.bf16.mxu0 0
          %4612 = vmatpush1.bf16.msra.mxu0 0
          %4613 = vmatprep.subr.bf16.mxu0 0
          %4614 = vmatpush1.bf16.msra.mxu0 0
          %4615 = vmatprep.subr.bf16.mxu0 0
          %4616 = vmatpush1.bf16.msra.mxu0 0
          %4617 = vmatprep.subr.bf16.mxu0 0
          %4618 = vmatpush1.bf16.msra.mxu0 0
          %4619 = vmatprep.subr.bf16.mxu0 0
          %4620 = vmatpush1.bf16.msra.mxu0 0
          %4621 = vmatprep.subr.bf16.mxu0 0
          %4622 = vmatpush1.bf16.msra.mxu0 0
          %4623 = vmatprep.subr.bf16.mxu0 0
          %4624 = vmatpush1.bf16.msra.mxu0 0
          %4625 = vmatprep.subr.bf16.mxu0 0
          %4626 = vmatpush1.bf16.msra.mxu0 0
          %4627 = vmatprep.subr.bf16.mxu0 0
          %4628 = vmatpush1.bf16.msra.mxu0 0
          %4629 = vmatprep.subr.bf16.mxu0 0
          %4630 = vmatpush1.bf16.msra.mxu0 0
          %4631 = vmatprep.subr.bf16.mxu0 0
          %4632 = vmatpush1.bf16.msra.mxu0 0
          %4633 = vmatprep.subr.bf16.mxu0 0
          %4634 = vmatpush1.bf16.msra.mxu0 0
          %4635 = vmatprep.subr.bf16.mxu0 0
          %4636 = vmatpush1.bf16.msra.mxu0 0
          %4637 = vmatprep.subr.bf16.mxu0 0
          %4638 = vmatpush1.bf16.msra.mxu0 0
          %4639 = vmatprep.mubr.bf16.mxu0 0
          %4640 = vmatmul.mubr.bf16.gmra.mrb[0].mxu0 %v4584
          %v4641 = vpop.f32.mrb[0].mxu0
          %v4642 = vadd.f32 %v4534, %v4641
          %v4643 = vpop.f32.mrb[0].mxu0
          %v4644 = vpop.f32.mrb[0].mxu0
          %v4645 = vadd.f32 %v4534, %v4644
          %v4646 = vpop.f32.mrb[0].mxu0
          %4647 = vmatprep.mubr.bf16.mxu0 0
          %4648 = vmatmul.mubr.bf16.gmra.mrb[0].mxu0 %v4587
          %v4649 = vpop.f32.mrb[0].mxu0
          %v4650 = vadd.f32 %v4534, %v4649
          %v4651 = vpop.f32.mrb[0].mxu0
          %v4652 = vpop.f32.mrb[0].mxu0
          %v4653 = vadd.f32 %v4534, %v4652
          %v4654 = vpop.f32.mrb[0].mxu0
          %4655 = vmatprep.mubr.bf16.mxu0 0
          %4656 = vmatmul.mubr.bf16.gmra.mrb[0].mxu0 %v4590
          %v4657 = vpop.f32.mrb[0].mxu0
          %v4658 = vadd.f32 %v4534, %v4657
          %v4659 = vpop.f32.mrb[0].mxu0
          %v4660 = vpop.f32.mrb[0].mxu0
          %v4661 = vadd.f32 %v4534, %v4660
          %v4662 = vpop.f32.mrb[0].mxu0
          %4663 = vmatprep.mubr.bf16.mxu0 0
          %4664 = vmatmul.mubr.bf16.gmra.mrb[0].mxu0 %v4593
          %v4665 = vpop.f32.mrb[0].mxu0
          %v4666 = vadd.f32 %v4534, %v4665
          %v4667 = vpop.f32.mrb[0].mxu0
          %v4668 = vpop.f32.mrb[0].mxu0
          %v4669 = vadd.f32 %v4534, %v4668
          %v4670 = vpop.f32.mrb[0].mxu0
          %4671 = vmatprep.mubr.bf16.mxu0 0
          %4672 = vmatmul.mubr.bf16.gmra.mrb[0].mxu0 %v4596
          %v4673 = vpop.f32.mrb[0].mxu0
          %v4674 = vadd.f32 %v4534, %v4673
          %v4675 = vpop.f32.mrb[0].mxu0
          %v4676 = vpop.f32.mrb[0].mxu0
          %v4677 = vadd.f32 %v4534, %v4676
          %v4678 = vpop.f32.mrb[0].mxu0
          %4679 = vmatprep.mubr.bf16.mxu0 0
          %4680 = vmatmul.mubr.bf16.gmra.mrb[0].mxu0 %v4599
          %v4681 = vpop.f32.mrb[0].mxu0
          %v4682 = vadd.f32 %v4534, %v4681
          %v4683 = vpop.f32.mrb[0].mxu0
          %v4684 = vpop.f32.mrb[0].mxu0
          %v4685 = vadd.f32 %v4534, %v4684
          %v4686 = vpop.f32.mrb[0].mxu0
          %4687 = vmatprep.mubr.bf16.mxu0 0
          %4688 = vmatmul.mubr.bf16.gmra.mrb[0].mxu0 %v4602
          %v4689 = vpop.f32.mrb[0].mxu0
          %v4690 = vadd.f32 %v4534, %v4689
          %v4691 = vpop.f32.mrb[0].mxu0
          %v4692 = vpop.f32.mrb[0].mxu0
          %v4693 = vadd.f32 %v4534, %v4692
          %v4694 = vpop.f32.mrb[0].mxu0
          %4695 = vmatprep.mubr.bf16.mxu0 0
          %4696 = vmatmul.mubr.bf16.gmra.mrb[0].mxu0 %v4605
          %v4697 = vpop.f32.mrb[0].mxu0
          %v4698 = vadd.f32 %v4534, %v4697
          %v4699 = vpop.f32.mrb[0].mxu0
          %v4700 = vpop.f32.mrb[0].mxu0
          %v4701 = vadd.f32 %v4534, %v4700
          %v4702 = vpop.f32.mrb[0].mxu0
          %4703 = vdwg.mxu0
          %v4704 = vsub.f32 0.0, %v4642
          %v4705 = vsub.f32 0.0, %v4645
          %v4706 = vsub.f32 0.0, %v4650
          %v4707 = vsub.f32 0.0, %v4653
          %v4708 = vsub.f32 0.0, %v4658
          %v4709 = vsub.f32 0.0, %v4661
          %v4710 = vsub.f32 0.0, %v4666
          %v4711 = vsub.f32 0.0, %v4669
          %v4712 = vsub.f32 0.0, %v4674
          %v4713 = vsub.f32 0.0, %v4677
          %v4714 = vsub.f32 0.0, %v4682
          %v4715 = vsub.f32 0.0, %v4685
          %v4716 = vsub.f32 0.0, %v4690
          %v4717 = vsub.f32 0.0, %v4693
          %v4718 = vsub.f32 0.0, %v4698
          %v4719 = vsub.f32 0.0, %v4701
          %v4720 = vmul.f32 %v4704, 1.442695
          %v4721 = vpow.pop %v4720
          %v4722 = vmul.f32 %v4705, 1.442695
          %v4723 = vpow.pop %v4722
          %v4724 = vmul.f32 %v4706, 1.442695
          %v4725 = vpow.pop %v4724
          %v4726 = vmul.f32 %v4707, 1.442695
          %v4727 = vpow.pop %v4726
          %v4728 = vmul.f32 %v4708, 1.442695
          %v4729 = vpow.pop %v4728
          %v4730 = vmul.f32 %v4709, 1.442695
          %v4731 = vpow.pop %v4730
          %v4732 = vmul.f32 %v4710, 1.442695
          %v4733 = vpow.pop %v4732
          %v4734 = vmul.f32 %v4711, 1.442695
          %v4735 = vpow.pop %v4734
          %v4736 = vmul.f32 %v4712, 1.442695
          %v4737 = vpow.pop %v4736
          %v4738 = vmul.f32 %v4713, 1.442695
          %v4739 = vpow.pop %v4738
          %v4740 = vmul.f32 %v4714, 1.442695
          %v4741 = vpow.pop %v4740
          %v4742 = vmul.f32 %v4715, 1.442695
          %v4743 = vpow.pop %v4742
          %v4744 = vmul.f32 %v4716, 1.442695
          %v4745 = vpow.pop %v4744
          %v4746 = vmul.f32 %v4717, 1.442695
          %v4747 = vpow.pop %v4746
          %v4748 = vmul.f32 %v4718, 1.442695
          %v4749 = vpow.pop %v4748
          %v4750 = vmul.f32 %v4719, 1.442695
          %v4751 = vpow.pop %v4750
          %v4752 = vadd.f32 %v4721, 1.0
          %v4753 = vadd.f32 %v4723, 1.0
          %v4754 = vadd.f32 %v4725, 1.0
          %v4755 = vadd.f32 %v4727, 1.0
          %v4756 = vadd.f32 %v4729, 1.0
          %v4757 = vadd.f32 %v4731, 1.0
          %v4758 = vadd.f32 %v4733, 1.0
          %v4759 = vadd.f32 %v4735, 1.0
          %v4760 = vadd.f32 %v4737, 1.0
          %v4761 = vadd.f32 %v4739, 1.0
          %v4762 = vadd.f32 %v4741, 1.0
          %v4763 = vadd.f32 %v4743, 1.0
          %v4764 = vadd.f32 %v4745, 1.0
          %v4765 = vadd.f32 %v4747, 1.0
          %v4766 = vadd.f32 %v4749, 1.0
          %v4767 = vadd.f32 %v4751, 1.0
          %v4768 = vrcp.pop %v4752
          %v4769 = vrcp.pop %v4753
          %v4770 = vrcp.pop %v4754
          %v4771 = vrcp.pop %v4755
          %v4772 = vrcp.pop %v4756
          %v4773 = vrcp.pop %v4757
          %v4774 = vrcp.pop %v4758
          %v4775 = vrcp.pop %v4759
          %v4776 = vrcp.pop %v4760
          %v4777 = vrcp.pop %v4761
          %v4778 = vrcp.pop %v4762
          %v4779 = vrcp.pop %v4763
          %v4780 = vrcp.pop %v4764
          %v4781 = vrcp.pop %v4765
          %v4782 = vrcp.pop %v4766
          %v4783 = vrcp.pop %v4767
          %v4784 = vmul.f32 %v4642, %v4768
          %v4785 = vmul.f32 %v4645, %v4769
          %v4786 = vmul.f32 %v4650, %v4770
          %v4787 = vmul.f32 %v4653, %v4771
          %v4788 = vmul.f32 %v4658, %v4772
          %v4789 = vmul.f32 %v4661, %v4773
          %v4790 = vmul.f32 %v4666, %v4774
          %v4791 = vmul.f32 %v4669, %v4775
          %v4792 = vmul.f32 %v4674, %v4776
          %v4793 = vmul.f32 %v4677, %v4777
          %v4794 = vmul.f32 %v4682, %v4778
          %v4795 = vmul.f32 %v4685, %v4779
          %v4796 = vmul.f32 %v4690, %v4780
          %v4797 = vmul.f32 %v4693, %v4781
          %v4798 = vmul.f32 %v4698, %v4782
          %v4799 = vmul.f32 %v4701, %v4783
          %v4800 = vpack.c.bf16 %v4785, %v4784
          %v4801 = vpack.c.bf16 %v4787, %v4786
          %v4802 = vpack.c.bf16 %v4789, %v4788
          %v4803 = vpack.c.bf16 %v4791, %v4790
          %v4804 = vpack.c.bf16 %v4793, %v4792
          %v4805 = vpack.c.bf16 %v4795, %v4794
          %v4806 = vpack.c.bf16 %v4797, %v4796
          %v4807 = vpack.c.bf16 %v4799, %v4798
          %v4808 = vld [vmem:[#allocation11] sm:$0xf]
          %v4809 = vld [vmem:[#allocation11 + $0x4] sm:$0xf]
          %v4810 = vld [vmem:[#allocation11 + $0x8] sm:$0xf]
          %v4811 = vld [vmem:[#allocation11 + $0xc] sm:$0xf]
          %v4812 = vld [vmem:[#allocation11 + $0x10] sm:$0xf]
          %v4813 = vld [vmem:[#allocation11 + $0x14] sm:$0xf]
          %v4814 = vld [vmem:[#allocation11 + $0x18] sm:$0xf]
          %v4815 = vld [vmem:[#allocation11 + $0x1c] sm:$0xf]
          %v4816 = vld [vmem:[#allocation11 + $0x20] sm:$0xf]
          %v4817 = vld [vmem:[#allocation11 + $0x24] sm:$0xf]
          %v4818 = vld [vmem:[#allocation11 + $0x28] sm:$0xf]
          %v4819 = vld [vmem:[#allocation11 + $0x2c] sm:$0xf]
          %v4820 = vld [vmem:[#allocation11 + $0x30] sm:$0xf]
          %v4821 = vld [vmem:[#allocation11 + $0x34] sm:$0xf]
          %v4822 = vld [vmem:[#allocation11 + $0x38] sm:$0xf]
          %v4823 = vld [vmem:[#allocation11 + $0x3c] sm:$0xf]
          %v4824 = vld [vmem:[#allocation12] sm:$0xf]
          %v4825 = vld [vmem:[#allocation12 + $0x4] sm:$0xf]
          %v4826 = vld [vmem:[#allocation12 + $0x8] sm:$0xf]
          %v4827 = vld [vmem:[#allocation12 + $0xc] sm:$0xf]
          %v4828 = vld [vmem:[#allocation12 + $0x10] sm:$0xf]
          %v4829 = vld [vmem:[#allocation12 + $0x14] sm:$0xf]
          %v4830 = vld [vmem:[#allocation12 + $0x18] sm:$0xf]
          %v4831 = vld [vmem:[#allocation12 + $0x1c] sm:$0xf]
          %v4832 = vld [vmem:[#allocation12 + $0x20] sm:$0xf]
          %v4833 = vld [vmem:[#allocation12 + $0x24] sm:$0xf]
          %v4834 = vld [vmem:[#allocation12 + $0x28] sm:$0xf]
          %v4835 = vld [vmem:[#allocation12 + $0x2c] sm:$0xf]
          %v4836 = vld [vmem:[#allocation12 + $0x30] sm:$0xf]
          %v4837 = vld [vmem:[#allocation12 + $0x34] sm:$0xf]
          %v4838 = vld [vmem:[#allocation12 + $0x38] sm:$0xf]
          %v4839 = vld [vmem:[#allocation12 + $0x3c] sm:$0xf]
          %v4856 = vunpack.c.l.b16 %v4824
          %v4857 = vunpack.c.l.b16 %v4825
          %v4858 = vunpack.c.l.b16 %v4826
          %v4859 = vunpack.c.l.b16 %v4827
          %v4860 = vunpack.c.l.b16 %v4828
          %v4861 = vunpack.c.l.b16 %v4829
          %v4862 = vunpack.c.l.b16 %v4830
          %v4863 = vunpack.c.l.b16 %v4831
          %v4864 = vunpack.c.l.b16 %v4832
          %v4865 = vunpack.c.l.b16 %v4833
          %v4866 = vunpack.c.l.b16 %v4834
          %v4867 = vunpack.c.l.b16 %v4835
          %v4868 = vunpack.c.l.b16 %v4836
          %v4869 = vunpack.c.l.b16 %v4837
          %v4870 = vunpack.c.l.b16 %v4838
          %v4871 = vunpack.c.l.b16 %v4839
          %v4872 = vpack.c.b16 %v4857, %v4856
          %v4873 = vpack.c.b16 %v4859, %v4858
          %v4874 = vpack.c.b16 %v4861, %v4860
          %v4875 = vpack.c.b16 %v4863, %v4862
          %v4876 = vpack.c.b16 %v4865, %v4864
          %v4877 = vpack.c.b16 %v4867, %v4866
          %v4878 = vpack.c.b16 %v4869, %v4868
          %v4879 = vpack.c.b16 %v4871, %v4870
          %4888 = vmatprep.subr.bf16.mxu0 0
          %4889 = vmatpush1.bf16.msra.mxu0 %v4872
          %4890 = vmatprep.subr.bf16.mxu0 0
          %4891 = vmatpush1.bf16.msra.mxu0 %v4873
          %4892 = vmatprep.subr.bf16.mxu0 0
          %4893 = vmatpush1.bf16.msra.mxu0 %v4874
          %4894 = vmatprep.subr.bf16.mxu0 0
          %4895 = vmatpush1.bf16.msra.mxu0 %v4875
          %4896 = vmatprep.subr.bf16.mxu0 0
          %4897 = vmatpush1.bf16.msra.mxu0 %v4876
          %4898 = vmatprep.subr.bf16.mxu0 0
          %4899 = vmatpush1.bf16.msra.mxu0 %v4877
          %4900 = vmatprep.subr.bf16.mxu0 0
          %4901 = vmatpush1.bf16.msra.mxu0 %v4878
          %4902 = vmatprep.subr.bf16.mxu0 0
          %4903 = vmatpush1.bf16.msra.mxu0 %v4879
          %4904 = vmatprep.subr.bf16.mxu0 0
          %4905 = vmatpush1.bf16.msra.mxu0 0
          %4906 = vmatprep.subr.bf16.mxu0 0
          %4907 = vmatpush1.bf16.msra.mxu0 0
          %4908 = vmatprep.subr.bf16.mxu0 0
          %4909 = vmatpush1.bf16.msra.mxu0 0
          %4910 = vmatprep.subr.bf16.mxu0 0
          %4911 = vmatpush1.bf16.msra.mxu0 0
          %4912 = vmatprep.subr.bf16.mxu0 0
          %4913 = vmatpush1.bf16.msra.mxu0 0
          %4914 = vmatprep.subr.bf16.mxu0 0
          %4915 = vmatpush1.bf16.msra.mxu0 0
          %4916 = vmatprep.subr.bf16.mxu0 0
          %4917 = vmatpush1.bf16.msra.mxu0 0
          %4918 = vmatprep.subr.bf16.mxu0 0
          %4919 = vmatpush1.bf16.msra.mxu0 0
          %4920 = vmatprep.mubr.bf16.mxu0 0
          %4921 = vmatmul.mubr.bf16.gmra.mrb[0].mxu0 %v4800
          %v4922 = vpop.f32.mrb[0].mxu0
          %v4923 = vadd.f32 0.0, %v4922
          %v4924 = vpop.f32.mrb[0].mxu0
          %v4925 = vpop.f32.mrb[0].mxu0
          %v4926 = vadd.f32 0.0, %v4925
          %v4927 = vpop.f32.mrb[0].mxu0
          %4928 = vmatprep.mubr.bf16.mxu0 0
          %4929 = vmatmul.mubr.bf16.gmra.mrb[0].mxu0 %v4801
          %v4930 = vpop.f32.mrb[0].mxu0
          %v4931 = vadd.f32 0.0, %v4930
          %v4932 = vpop.f32.mrb[0].mxu0
          %v4933 = vpop.f32.mrb[0].mxu0
          %v4934 = vadd.f32 0.0, %v4933
          %v4935 = vpop.f32.mrb[0].mxu0
          %4936 = vmatprep.mubr.bf16.mxu0 0
          %4937 = vmatmul.mubr.bf16.gmra.mrb[0].mxu0 %v4802
          %v4938 = vpop.f32.mrb[0].mxu0
          %v4939 = vadd.f32 0.0, %v4938
          %v4940 = vpop.f32.mrb[0].mxu0
          %v4941 = vpop.f32.mrb[0].mxu0
          %v4942 = vadd.f32 0.0, %v4941
          %v4943 = vpop.f32.mrb[0].mxu0
          %4944 = vmatprep.mubr.bf16.mxu0 0
          %4945 = vmatmul.mubr.bf16.gmra.mrb[0].mxu0 %v4803
          %v4946 = vpop.f32.mrb[0].mxu0
          %v4947 = vadd.f32 0.0, %v4946
          %v4948 = vpop.f32.mrb[0].mxu0
          %v4949 = vpop.f32.mrb[0].mxu0
          %v4950 = vadd.f32 0.0, %v4949
          %v4951 = vpop.f32.mrb[0].mxu0
          %4952 = vmatprep.mubr.bf16.mxu0 0
          %4953 = vmatmul.mubr.bf16.gmra.mrb[0].mxu0 %v4804
          %v4954 = vpop.f32.mrb[0].mxu0
          %v4955 = vadd.f32 0.0, %v4954
          %v4956 = vpop.f32.mrb[0].mxu0
          %v4957 = vpop.f32.mrb[0].mxu0
          %v4958 = vadd.f32 0.0, %v4957
          %v4959 = vpop.f32.mrb[0].mxu0
          %4960 = vmatprep.mubr.bf16.mxu0 0
          %4961 = vmatmul.mubr.bf16.gmra.mrb[0].mxu0 %v4805
          %v4962 = vpop.f32.mrb[0].mxu0
          %v4963 = vadd.f32 0.0, %v4962
          %v4964 = vpop.f32.mrb[0].mxu0
          %v4965 = vpop.f32.mrb[0].mxu0
          %v4966 = vadd.f32 0.0, %v4965
          %v4967 = vpop.f32.mrb[0].mxu0
          %4968 = vmatprep.mubr.bf16.mxu0 0
          %4969 = vmatmul.mubr.bf16.gmra.mrb[0].mxu0 %v4806
          %v4970 = vpop.f32.mrb[0].mxu0
          %v4971 = vadd.f32 0.0, %v4970
          %v4972 = vpop.f32.mrb[0].mxu0
          %v4973 = vpop.f32.mrb[0].mxu0
          %v4974 = vadd.f32 0.0, %v4973
          %v4975 = vpop.f32.mrb[0].mxu0
          %4976 = vmatprep.mubr.bf16.mxu0 0
          %4977 = vmatmul.mubr.bf16.gmra.mrb[0].mxu0 %v4807
          %v4978 = vpop.f32.mrb[0].mxu0
          %v4979 = vadd.f32 0.0, %v4978
          %v4980 = vpop.f32.mrb[0].mxu0
          %v4981 = vpop.f32.mrb[0].mxu0
          %v4982 = vadd.f32 0.0, %v4981
          %v4983 = vpop.f32.mrb[0].mxu0
          %4984 = vdwg.mxu0
          %v5001 = vunpack.c.l.b16 %v4808
          %v5002 = vunpack.c.l.b16 %v4809
          %v5003 = vunpack.c.l.b16 %v4810
          %v5004 = vunpack.c.l.b16 %v4811
          %v5005 = vunpack.c.l.b16 %v4812
          %v5006 = vunpack.c.l.b16 %v4813
          %v5007 = vunpack.c.l.b16 %v4814
          %v5008 = vunpack.c.l.b16 %v4815
          %v5009 = vunpack.c.l.b16 %v4816
          %v5010 = vunpack.c.l.b16 %v4817
          %v5011 = vunpack.c.l.b16 %v4818
          %v5012 = vunpack.c.l.b16 %v4819
          %v5013 = vunpack.c.l.b16 %v4820
          %v5014 = vunpack.c.l.b16 %v4821
          %v5015 = vunpack.c.l.b16 %v4822
          %v5016 = vunpack.c.l.b16 %v4823
          %v5017 = vpack.c.b16 %v5002, %v5001
          %v5018 = vpack.c.b16 %v5004, %v5003
          %v5019 = vpack.c.b16 %v5006, %v5005
          %v5020 = vpack.c.b16 %v5008, %v5007
          %v5021 = vpack.c.b16 %v5010, %v5009
          %v5022 = vpack.c.b16 %v5012, %v5011
          %v5023 = vpack.c.b16 %v5014, %v5013
          %v5024 = vpack.c.b16 %v5016, %v5015
          %5033 = vmatprep.subr.bf16.mxu0 0
          %5034 = vmatpush1.bf16.msra.mxu0 %v5017
          %5035 = vmatprep.subr.bf16.mxu0 0
          %5036 = vmatpush1.bf16.msra.mxu0 %v5018
          %5037 = vmatprep.subr.bf16.mxu0 0
          %5038 = vmatpush1.bf16.msra.mxu0 %v5019
          %5039 = vmatprep.subr.bf16.mxu0 0
          %5040 = vmatpush1.bf16.msra.mxu0 %v5020
          %5041 = vmatprep.subr.bf16.mxu0 0
          %5042 = vmatpush1.bf16.msra.mxu0 %v5021
          %5043 = vmatprep.subr.bf16.mxu0 0
          %5044 = vmatpush1.bf16.msra.mxu0 %v5022
          %5045 = vmatprep.subr.bf16.mxu0 0
          %5046 = vmatpush1.bf16.msra.mxu0 %v5023
          %5047 = vmatprep.subr.bf16.mxu0 0
          %5048 = vmatpush1.bf16.msra.mxu0 %v5024
          %5049 = vmatprep.subr.bf16.mxu0 0
          %5050 = vmatpush1.bf16.msra.mxu0 0
          %5051 = vmatprep.subr.bf16.mxu0 0
          %5052 = vmatpush1.bf16.msra.mxu0 0
          %5053 = vmatprep.subr.bf16.mxu0 0
          %5054 = vmatpush1.bf16.msra.mxu0 0
          %5055 = vmatprep.subr.bf16.mxu0 0
          %5056 = vmatpush1.bf16.msra.mxu0 0
          %5057 = vmatprep.subr.bf16.mxu0 0
          %5058 = vmatpush1.bf16.msra.mxu0 0
          %5059 = vmatprep.subr.bf16.mxu0 0
          %5060 = vmatpush1.bf16.msra.mxu0 0
          %5061 = vmatprep.subr.bf16.mxu0 0
          %5062 = vmatpush1.bf16.msra.mxu0 0
          %5063 = vmatprep.subr.bf16.mxu0 0
          %5064 = vmatpush1.bf16.msra.mxu0 0
          %5065 = vmatprep.mubr.bf16.mxu0 0
          %5066 = vmatmul.mubr.bf16.gmra.mrb[0].mxu0 %v4502
          %v5067 = vpop.f32.mrb[0].mxu0
          %v5068 = vadd.f32 %v4923, %v5067
          %v5069 = vpop.f32.mrb[0].mxu0
          %v5070 = vpop.f32.mrb[0].mxu0
          %v5071 = vadd.f32 %v4926, %v5070
          %v5072 = vpop.f32.mrb[0].mxu0
          %5073 = vmatprep.mubr.bf16.mxu0 0
          %5074 = vmatmul.mubr.bf16.gmra.mrb[0].mxu0 %v4503
          %v5075 = vpop.f32.mrb[0].mxu0
          %v5076 = vadd.f32 %v4931, %v5075
          %v5077 = vpop.f32.mrb[0].mxu0
          %v5078 = vpop.f32.mrb[0].mxu0
          %v5079 = vadd.f32 %v4934, %v5078
          %v5080 = vpop.f32.mrb[0].mxu0
          %5081 = vmatprep.mubr.bf16.mxu0 0
          %5082 = vmatmul.mubr.bf16.gmra.mrb[0].mxu0 %v4504
          %v5083 = vpop.f32.mrb[0].mxu0
          %v5084 = vadd.f32 %v4939, %v5083
          %v5085 = vpop.f32.mrb[0].mxu0
          %v5086 = vpop.f32.mrb[0].mxu0
          %v5087 = vadd.f32 %v4942, %v5086
          %v5088 = vpop.f32.mrb[0].mxu0
          %5089 = vmatprep.mubr.bf16.mxu0 0
          %5090 = vmatmul.mubr.bf16.gmra.mrb[0].mxu0 %v4505
          %v5091 = vpop.f32.mrb[0].mxu0
          %v5092 = vadd.f32 %v4947, %v5091
          %v5093 = vpop.f32.mrb[0].mxu0
          %v5094 = vpop.f32.mrb[0].mxu0
          %v5095 = vadd.f32 %v4950, %v5094
          %v5096 = vpop.f32.mrb[0].mxu0
          %5097 = vmatprep.mubr.bf16.mxu0 0
          %5098 = vmatmul.mubr.bf16.gmra.mrb[0].mxu0 %v4506
          %v5099 = vpop.f32.mrb[0].mxu0
          %v5100 = vadd.f32 %v4955, %v5099
          %v5101 = vpop.f32.mrb[0].mxu0
          %v5102 = vpop.f32.mrb[0].mxu0
          %v5103 = vadd.f32 %v4958, %v5102
          %v5104 = vpop.f32.mrb[0].mxu0
          %5105 = vmatprep.mubr.bf16.mxu0 0
          %5106 = vmatmul.mubr.bf16.gmra.mrb[0].mxu0 %v4507
          %v5107 = vpop.f32.mrb[0].mxu0
          %v5108 = vadd.f32 %v4963, %v5107
          %v5109 = vpop.f32.mrb[0].mxu0
          %v5110 = vpop.f32.mrb[0].mxu0
          %v5111 = vadd.f32 %v4966, %v5110
          %v5112 = vpop.f32.mrb[0].mxu0
          %5113 = vmatprep.mubr.bf16.mxu0 0
          %5114 = vmatmul.mubr.bf16.gmra.mrb[0].mxu0 %v4508
          %v5115 = vpop.f32.mrb[0].mxu0
          %v5116 = vadd.f32 %v4971, %v5115
          %v5117 = vpop.f32.mrb[0].mxu0
          %v5118 = vpop.f32.mrb[0].mxu0
          %v5119 = vadd.f32 %v4974, %v5118
          %v5120 = vpop.f32.mrb[0].mxu0
          %5121 = vmatprep.mubr.bf16.mxu0 0
          %5122 = vmatmul.mubr.bf16.gmra.mrb[0].mxu0 %v4509
          %v5123 = vpop.f32.mrb[0].mxu0
          %v5124 = vadd.f32 %v4979, %v5123
          %v5125 = vpop.f32.mrb[0].mxu0
          %v5126 = vpop.f32.mrb[0].mxu0
          %v5127 = vadd.f32 %v4982, %v5126
          %v5128 = vpop.f32.mrb[0].mxu0
          %5129 = vdwg.mxu0
          %v5130 = vld [vmem:[%s11] sm:$0x1]
          %v5132 = vlaneseq
          %v5133 = vshrl.u32 %v5132, 7
          %v5134 = vsub.s32 0, %v5133
          %v5135 = vrot.slane %v5130, %v5134
          %v5137 = vadd.f32 %v5068, %v5135
          %v5138 = vadd.f32 %v5071, %v5135
          %v5139 = vadd.f32 %v5076, %v5135
          %v5140 = vadd.f32 %v5079, %v5135
          %v5141 = vadd.f32 %v5084, %v5135
          %v5142 = vadd.f32 %v5087, %v5135
          %v5143 = vadd.f32 %v5092, %v5135
          %v5144 = vadd.f32 %v5095, %v5135
          %v5145 = vadd.f32 %v5100, %v5135
          %v5146 = vadd.f32 %v5103, %v5135
          %v5147 = vadd.f32 %v5108, %v5135
          %v5148 = vadd.f32 %v5111, %v5135
          %v5149 = vadd.f32 %v5116, %v5135
          %v5150 = vadd.f32 %v5119, %v5135
          %v5151 = vadd.f32 %v5124, %v5135
          %v5152 = vadd.f32 %v5127, %v5135
          %v5153 = vsub.f32 0.0, %v5137
          %v5154 = vsub.f32 0.0, %v5138
          %v5155 = vsub.f32 0.0, %v5139
          %v5156 = vsub.f32 0.0, %v5140
          %v5157 = vsub.f32 0.0, %v5141
          %v5158 = vsub.f32 0.0, %v5142
          %v5159 = vsub.f32 0.0, %v5143
          %v5160 = vsub.f32 0.0, %v5144
          %v5161 = vsub.f32 0.0, %v5145
          %v5162 = vsub.f32 0.0, %v5146
          %v5163 = vsub.f32 0.0, %v5147
          %v5164 = vsub.f32 0.0, %v5148
          %v5165 = vsub.f32 0.0, %v5149
          %v5166 = vsub.f32 0.0, %v5150
          %v5167 = vsub.f32 0.0, %v5151
          %v5168 = vsub.f32 0.0, %v5152
          %v5169 = vmul.f32 %v5153, 1.442695
          %v5170 = vpow.pop %v5169
          %v5171 = vmul.f32 %v5154, 1.442695
          %v5172 = vpow.pop %v5171
          %v5173 = vmul.f32 %v5155, 1.442695
          %v5174 = vpow.pop %v5173
          %v5175 = vmul.f32 %v5156, 1.442695
          %v5176 = vpow.pop %v5175
          %v5177 = vmul.f32 %v5157, 1.442695
          %v5178 = vpow.pop %v5177
          %v5179 = vmul.f32 %v5158, 1.442695
          %v5180 = vpow.pop %v5179
          %v5181 = vmul.f32 %v5159, 1.442695
          %v5182 = vpow.pop %v5181
          %v5183 = vmul.f32 %v5160, 1.442695
          %v5184 = vpow.pop %v5183
          %v5185 = vmul.f32 %v5161, 1.442695
          %v5186 = vpow.pop %v5185
          %v5187 = vmul.f32 %v5162, 1.442695
          %v5188 = vpow.pop %v5187
          %v5189 = vmul.f32 %v5163, 1.442695
          %v5190 = vpow.pop %v5189
          %v5191 = vmul.f32 %v5164, 1.442695
          %v5192 = vpow.pop %v5191
          %v5193 = vmul.f32 %v5165, 1.442695
          %v5194 = vpow.pop %v5193
          %v5195 = vmul.f32 %v5166, 1.442695
          %v5196 = vpow.pop %v5195
          %v5197 = vmul.f32 %v5167, 1.442695
          %v5198 = vpow.pop %v5197
          %v5199 = vmul.f32 %v5168, 1.442695
          %v5200 = vpow.pop %v5199
          %v5201 = vadd.f32 %v5170, 1.0
          %v5202 = vadd.f32 %v5172, 1.0
          %v5203 = vadd.f32 %v5174, 1.0
          %v5204 = vadd.f32 %v5176, 1.0
          %v5205 = vadd.f32 %v5178, 1.0
          %v5206 = vadd.f32 %v5180, 1.0
          %v5207 = vadd.f32 %v5182, 1.0
          %v5208 = vadd.f32 %v5184, 1.0
          %v5209 = vadd.f32 %v5186, 1.0
          %v5210 = vadd.f32 %v5188, 1.0
          %v5211 = vadd.f32 %v5190, 1.0
          %v5212 = vadd.f32 %v5192, 1.0
          %v5213 = vadd.f32 %v5194, 1.0
          %v5214 = vadd.f32 %v5196, 1.0
          %v5215 = vadd.f32 %v5198, 1.0
          %v5216 = vadd.f32 %v5200, 1.0
          %v5217 = vrcp.pop %v5201
          %v5218 = vrcp.pop %v5202
          %v5219 = vrcp.pop %v5203
          %v5220 = vrcp.pop %v5204
          %v5221 = vrcp.pop %v5205
          %v5222 = vrcp.pop %v5206
          %v5223 = vrcp.pop %v5207
          %v5224 = vrcp.pop %v5208
          %v5225 = vrcp.pop %v5209
          %v5226 = vrcp.pop %v5210
          %v5227 = vrcp.pop %v5211
          %v5228 = vrcp.pop %v5212
          %v5229 = vrcp.pop %v5213
          %v5230 = vrcp.pop %v5214
          %v5231 = vrcp.pop %v5215
          %v5232 = vrcp.pop %v5216
          %v5233 = vmul.f32 %v5137, %v5217
          %v5234 = vmul.f32 %v5138, %v5218
          %v5235 = vmul.f32 %v5139, %v5219
          %v5236 = vmul.f32 %v5140, %v5220
          %v5237 = vmul.f32 %v5141, %v5221
          %v5238 = vmul.f32 %v5142, %v5222
          %v5239 = vmul.f32 %v5143, %v5223
          %v5240 = vmul.f32 %v5144, %v5224
          %v5241 = vmul.f32 %v5145, %v5225
          %v5242 = vmul.f32 %v5146, %v5226
          %v5243 = vmul.f32 %v5147, %v5227
          %v5244 = vmul.f32 %v5148, %v5228
          %v5245 = vmul.f32 %v5149, %v5229
          %v5246 = vmul.f32 %v5150, %v5230
          %v5247 = vmul.f32 %v5151, %v5231
          %v5248 = vmul.f32 %v5152, %v5232
          %v5249 = vpack.c.bf16 %v5234, %v5233
          %v5250 = vpack.c.bf16 %v5236, %v5235
          %v5251 = vpack.c.bf16 %v5238, %v5237
          %v5252 = vpack.c.bf16 %v5240, %v5239
          %v5253 = vpack.c.bf16 %v5242, %v5241
          %v5254 = vpack.c.bf16 %v5244, %v5243
          %v5255 = vpack.c.bf16 %v5246, %v5245
          %v5256 = vpack.c.bf16 %v5248, %v5247
          %v5265 = vunpack.c.l.b16 %v5249
          %v5266 = vunpack.c.h.b16 %v5249
          %v5267 = vunpack.c.l.b16 %v5250
          %v5268 = vunpack.c.h.b16 %v5250
          %v5269 = vunpack.c.l.b16 %v5251
          %v5270 = vunpack.c.h.b16 %v5251
          %v5271 = vunpack.c.l.b16 %v5252
          %v5272 = vunpack.c.h.b16 %v5252
          %v5273 = vunpack.c.l.b16 %v5253
          %v5274 = vunpack.c.h.b16 %v5253
          %v5275 = vunpack.c.l.b16 %v5254
          %v5276 = vunpack.c.h.b16 %v5254
          %v5277 = vunpack.c.l.b16 %v5255
          %v5278 = vunpack.c.h.b16 %v5255
          %v5279 = vunpack.c.l.b16 %v5256
          %v5280 = vunpack.c.h.b16 %v5256
          %v5281 = vpack.c.b16 %v5265, %v5265
          %v5282 = vpack.c.b16 %v5266, %v5266
          %v5283 = vpack.c.b16 %v5267, %v5267
          %v5284 = vpack.c.b16 %v5268, %v5268
          %v5285 = vpack.c.b16 %v5269, %v5269
          %v5286 = vpack.c.b16 %v5270, %v5270
          %v5287 = vpack.c.b16 %v5271, %v5271
          %v5288 = vpack.c.b16 %v5272, %v5272
          %v5289 = vpack.c.b16 %v5273, %v5273
          %v5290 = vpack.c.b16 %v5274, %v5274
          %v5291 = vpack.c.b16 %v5275, %v5275
          %v5292 = vpack.c.b16 %v5276, %v5276
          %v5293 = vpack.c.b16 %v5277, %v5277
          %v5294 = vpack.c.b16 %v5278, %v5278
          %v5295 = vpack.c.b16 %v5279, %v5279
          %v5296 = vpack.c.b16 %v5280, %v5280
          %5313 = vst [vmem:[%s596] sm:$0xf] %v5281
          %5314 = vst [vmem:[%s596 + $0x4] sm:$0xf] %v5282
          %5315 = vst [vmem:[%s596 + $0x8] sm:$0xf] %v5283
          %5316 = vst [vmem:[%s596 + $0xc] sm:$0xf] %v5284
          %5317 = vst [vmem:[%s596 + $0x10] sm:$0xf] %v5285
          %5318 = vst [vmem:[%s596 + $0x14] sm:$0xf] %v5286
          %5319 = vst [vmem:[%s596 + $0x18] sm:$0xf] %v5287
          %5320 = vst [vmem:[%s596 + $0x1c] sm:$0xf] %v5288
          %5321 = vst [vmem:[%s596 + $0x20] sm:$0xf] %v5289
          %5322 = vst [vmem:[%s596 + $0x24] sm:$0xf] %v5290
          %5323 = vst [vmem:[%s596 + $0x28] sm:$0xf] %v5291
          %5324 = vst [vmem:[%s596 + $0x2c] sm:$0xf] %v5292
          %5325 = vst [vmem:[%s596 + $0x30] sm:$0xf] %v5293
          %5326 = vst [vmem:[%s596 + $0x34] sm:$0xf] %v5294
          %5327 = vst [vmem:[%s596 + $0x38] sm:$0xf] %v5295
          %5328 = vst [vmem:[%s596 + $0x3c] sm:$0xf] %v5296
        $region108: #{tpu_custom_call.1} parent=67 // pred_fallthru
          _
        %s5329 = sand.u32 %s339, 1
        %s5330 = scalar_lea.sflag [#allocation6], %s5329
        %s5331 = sand.u32 %s339, 1
        %s5332 = smul.addr %s5331, 64
        %s5333 = scalar_lea.vmem [#allocation14], %s5332
        // Predicated region
        $region109: #{tpu_custom_call.1} parent=67 // pred_check
          %p5334 = pneg %p349
        $region110: #{tpu_custom_call.1} parent=67 // pred_check_branch
          %5336 = sbr.rel (%p5334) target = $region112
        $region111: #{tpu_custom_call.1} parent=67 // pred_region
          %s5338 = ssub.s32 1024, 1024
          %5339 = vsyncadd %s5330, %s5338
          %s5340 = smul.addr %s37, 16
          %s5341 = smul.addr %s36, 32
          %s5342 = sadd.s32 %s5340, %s5341
          %s5343 = smul.addr %s5342, 64
          %s5344 = scalar_lea.hbm %s12, %s5343
          %s5345 = sshll.u32 %s5333, 4
          %s5346 = int_to_ptr.vmem [resolvable:$true] %s5345
          %5351 = dma.vmem_to_hbm [thread:$0]  %s5346, 1024, %s5344, %s5330, 64, 64, 4
        $region112: #{tpu_custom_call.1} parent=67 // pred_fallthru
          _
      $region68: #{tpu_custom_call.1} parent=5 // pred_fallthru
        _
      %p5352 = scmp.le.s32.totalorder 2, %s26
      // Predicated region
      $region113: #{tpu_custom_call.1} parent=5 // pred_check
        %p5353 = pneg %p5352
      $region114: #{tpu_custom_call.1} parent=5 // pred_check_branch
        %5355 = sbr.rel (%p5353) target = $region116
      $region115: #{tpu_custom_call.1} parent=5 // pred_region
        %s5356 = ssub.s32 %s26, 2
        // Predicated region
        $region117: #{tpu_custom_call.1} parent=115 // pred_check
          %p5357 = pneg %p355
        $region118: #{tpu_custom_call.1} parent=115 // pred_check_branch
          %5359 = sbr.rel (%p5357) target = $region120
        $region119: #{tpu_custom_call.1} parent=115 // pred_region
          %s5360 = sand.u32 %s340, 1
          %s5361 = scalar_lea.sflag [#allocation6], %s5360
          %s5362 = sand.u32 %s340, 1
          %s5363 = smul.addr %s5362, 64
          %s5364 = scalar_lea.vmem [#allocation14], %s5363
          %5365 = dma.done %s5361, 1024
        $region120: #{tpu_custom_call.1} parent=115 // pred_fallthru
          _
      $region116: #{tpu_custom_call.1} parent=5 // pred_fallthru
        _
    $region6: #{tpu_custom_call.1} parent=1 // loop_footer
      %s30 = sadd.s32 1, %s26
    $region7: #{tpu_custom_call.1} parent=1 // loop_footer_branch
      %25 = sbr.rel target = $region3
    $region8: #{tpu_custom_call.1} parent=1 // loop_exit
      _
    %5366 = vsyncpa [#allocation5], 1
    %s5367 = scalar_lea.sflag [#allocation5], 1
    %5368 = vsyncpa %s5367, 1
    %5369 = vsyncpa [#allocation8], 1
    %5370 = vsyncpa [#allocation13], 1
    %5371 = vsyncpa [#allocation6], 1
    %s5372 = scalar_lea.sflag [#allocation6], 1
    %5373 = vsyncpa %s5372, 1

</llo_original>
